<compile_context>
chip_gen: v7x
topology: tpu7x:2x2x1
jax: 0.10.0
libtpu: 0.0.40
codegen_flags: <defaults>
</compile_context>

<pallas_src>
import jax
import jax.numpy as jnp
from jax.experimental import pallas as pl
from jax.experimental.pallas import tpu as pltpu

_LN_EPS = 1e-5


# ---------------------------------------------------------------------------
# Fused kernel: 4 x (Linear -> LayerNorm -> ReLU) -> Linear(128, 1)
# ---------------------------------------------------------------------------
def _nd_fused_kernel(
    x_ref,
    w1_ref, b1_ref, g1_ref, be1_ref,
    w2_ref, b2_ref, g2_ref, be2_ref,
    w3_ref, b3_ref, g3_ref, be3_ref,
    w4_ref, b4_ref, g4_ref, be4_ref,
    wo_ref, bo_ref,
    o_ref,
):
    def block(h_bf16, w_ref, b_ref, g_ref, beta_ref):
        # MXU matmul in bf16, accumulate in f32.
        y = jnp.dot(h_bf16, w_ref[...], preferred_element_type=jnp.float32)
        y = y + b_ref[...]                          # bias (1, N), broadcast over batch
        # LayerNorm over the feature (lane) axis in f32, single-pass stats:
        # sum(y) and sum(y*y) are independent cross-lane reductions -> overlap
        # on the XLU; var = E[y^2] - mean^2 (clamped >= 0), eps=1e-5 matches
        # torch.nn.LayerNorm (biased variance).
        inv_n = 1.0 / y.shape[-1]
        mean = jnp.sum(y, axis=-1, keepdims=True) * inv_n
        ex2 = jnp.sum(y * y, axis=-1, keepdims=True) * inv_n
        var = jnp.maximum(ex2 - mean * mean, 0.0)
        y = (y - mean) * jax.lax.rsqrt(var + _LN_EPS)
        y = y * g_ref[...] + beta_ref[...]
        # ReLU, back to bf16 for the next matmul.  Dropout = identity (eval).
        return jnp.maximum(y, 0.0).astype(jnp.bfloat16)

    h = x_ref[...].astype(jnp.bfloat16)             # no-op if caller passes bf16
    h = block(h, w1_ref, b1_ref, g1_ref, be1_ref)
    h = block(h, w2_ref, b2_ref, g2_ref, be2_ref)
    h = block(h, w3_ref, b3_ref, g3_ref, be3_ref)
    h = block(h, w4_ref, b4_ref, g4_ref, be4_ref)

    # Final Linear(128 -> 1) as VPU multiply + lane reduction (an N=1 MXU
    # matmul would use 1/256 of the MXU columns for nothing).  Store the
    # result lane-dense: batch on the lane axis -> unmasked vst.
    tile_b = h.shape[0]
    out = jnp.sum(h.astype(jnp.float32) * wo_ref[...], axis=-1)   # (tile_b,)
    o_ref[...] = out.reshape(1, tile_b) + bo_ref[...]


# ---------------------------------------------------------------------------
# Wrapper
# ---------------------------------------------------------------------------
def _round_up(x, m):
    return ((x + m - 1) // m) * m


def _resident_spec(shape):
    """Whole-array block whose index never changes -> DMA'd once, VMEM-resident.

    Single-buffered: double-buffering a constant-index block just doubles its
    VMEM footprint for no benefit (weights are ~5.3 MiB at input_size=2048).
    """
    index_map = lambda i: (0,) * len(shape)
    try:
        return pl.BlockSpec(shape, index_map,
                            pipeline_mode=pl.Buffered(buffer_count=1))
    except TypeError:       # older jax without pipeline_mode: default 2 buffers
        return pl.BlockSpec(shape, index_map)


def _choose_tile_b(B):
    """Batch tile.  Big tiles amortize the ~0.35us/grid-step overhead; when
    grid > 1 the tile is a multiple of 128 (keeps the lane-dense output block
    aligned) and the grid has >= 2 'parallel' steps so both v7x TCs get work.
    """
    if B >= 1024:
        return 512
    if B >= 512:
        return 256
    if B > 128:
        return 128
    # Small batch: one tile, rounded to 16 rows (bf16 sublane packing).
    return _round_up(max(B, 8), 16)


def _vmem_limit_bytes(resident_bytes, x_tile_bytes, tile_b):
    """Derive the scoped-VMEM limit from the actual requirement (+margin),
    capped well below v7x's 64 MiB/TC so the kernel stays portable."""
    act_bytes = 8 * tile_b * 1024 * 4          # f32 activations / temporaries allowance
    need = (2 * resident_bytes                 # conservative (covers 2-buffer fallback)
            + 2 * x_tile_bytes                 # double-buffered x tile
            + 2 * tile_b * 4                   # output tile
            + act_bytes
            + (4 << 20))                       # fixed margin
    return int(min(max(need, 16 << 20), 56 << 20))


@jax.jit
def nd_forward(params, x):
    """4x (Linear -> LayerNorm -> ReLU -> Dropout[identity]) -> Linear(128,1).

    x may be f32 or bf16; passing bf16 end-to-end halves input HBM traffic.
    """
    B, in_dim = x.shape

    tile_b = _choose_tile_b(B)
    b_pad = _round_up(B, tile_b)
    if b_pad != B:
        x = jnp.pad(x, ((0, b_pad - B), (0, 0)))   # padded rows sliced off below
    grid = (b_pad // tile_b,)

    flat_inputs = (
        x,
        params["w1"], params["b1"], params["g1"], params["beta1"],
        params["w2"], params["b2"], params["g2"], params["beta2"],
        params["w3"], params["b3"], params["g3"], params["beta3"],
        params["w4"], params["b4"], params["g4"], params["beta4"],
        params["w_out"], params["b_out"],
    )

    in_specs = [pl.BlockSpec((tile_b, in_dim), lambda i: (i, 0))]
    for arr in flat_inputs[1:]:
        in_specs.append(_resident_spec(arr.shape))

    resident_bytes = sum(int(a.size) * a.dtype.itemsize for a in flat_inputs[1:])
    x_tile_bytes = tile_b * in_dim * x.dtype.itemsize

    # Lane-dense output: (1, b_pad) with (1, tile_b) blocks (batch on lanes).
    out = pl.pallas_call(
        _nd_fused_kernel,
        out_shape=jax.ShapeDtypeStruct((1, b_pad), jnp.float32),
        grid_spec=pltpu.PrefetchScalarGridSpec(
            num_scalar_prefetch=0,
            grid=grid,
            in_specs=in_specs,
            out_specs=pl.BlockSpec((1, tile_b), lambda i: (0, i)),
        ),
        compiler_params=pltpu.CompilerParams(
            dimension_semantics=("parallel",),     # megacore / 2 TCs on v7x
            vmem_limit_bytes=_vmem_limit_bytes(resident_bytes, x_tile_bytes, tile_b),
        ),
    )(*flat_inputs)

    return out[0, :B].reshape(B, 1)


# ---------------------------------------------------------------------------
# Parameters (weights stored [in, out] = transpose of torch Linear.weight,
# matmul weights in bf16, biases / LayerNorm params in f32)
# ---------------------------------------------------------------------------
def init_nd_params(key, input_size):
    dims = [input_size, 1024, 512, 256, 128]
    params = {}
    for i in range(4):  # layer1..layer4 (+ their LayerNorms)
        key, kw, kb = jax.random.split(key, 3)
        fan_in, fan_out = dims[i], dims[i + 1]
        bound = 1.0 / jnp.sqrt(fan_in)
        params[f"w{i + 1}"] = jax.random.uniform(
            kw, (fan_in, fan_out), jnp.float32, -bound, bound
        ).astype(jnp.bfloat16)
        params[f"b{i + 1}"] = jax.random.uniform(
            kb, (1, fan_out), jnp.float32, -bound, bound)
        params[f"g{i + 1}"] = jnp.ones((1, fan_out), jnp.float32)
        params[f"beta{i + 1}"] = jnp.zeros((1, fan_out), jnp.float32)
    key, kw, kb = jax.random.split(key, 3)
    bound = 1.0 / jnp.sqrt(128.0)
    params["w_out"] = jax.random.uniform(kw, (1, 128), jnp.float32, -bound, bound)
    params["b_out"] = jax.random.uniform(kb, (1, 1), jnp.float32, -bound, bound)
    return params


def _reference_forward(params, x):
    """Pure-JAX reference (two-pass LayerNorm) with the same bf16 casts."""
    h = x.astype(jnp.bfloat16)
    for i in range(1, 5):
        y = jnp.dot(h, params[f"w{i}"], preferred_element_type=jnp.float32)
        y = y + params[f"b{i}"]
        mean = jnp.mean(y, axis=-1, keepdims=True)
        c = y - mean
        var = jnp.mean(c * c, axis=-1, keepdims=True)
        y = c * jax.lax.rsqrt(var + _LN_EPS)
        y = y * params[f"g{i}"] + params[f"beta{i}"]
        h = jnp.maximum(y, 0.0).astype(jnp.bfloat16)
    out = jnp.sum(h.astype(jnp.float32) * params["w_out"], axis=-1, keepdims=True)
    return out + params["b_out"]


if __name__ == "__main__":
    key = jax.random.PRNGKey(0)
    key, kp = jax.random.split(key)

    INPUT_SIZE = 256   # module default is 2048; constructor-parameterized, kept small here
    params = init_nd_params(kp, INPUT_SIZE)

    # Case 1: small batch (single 16-row-rounded tile, grid=1).
    # Case 2: moderate batch (128-row tiles, grid=2, padded last tile).
    for batch in (16, 200):
        key, kx = jax.random.split(key)
        x = jax.random.normal(kx, (batch, INPUT_SIZE), jnp.float32)

        out = jax.block_until_ready(nd_forward(params, x))
        assert out.shape == (batch, 1), out.shape

        ref = jax.block_until_ready(_reference_forward(params, x))
        assert jnp.all(jnp.isfinite(out))
        assert jnp.allclose(out, ref, atol=5e-2, rtol=5e-2), float(
            jnp.max(jnp.abs(out - ref)))

    print("KERNEL_OK")
</pallas_src>

<mosaic_0001>
module attributes {stable_mosaic.version = 11 : i64} {
  func.func @_nd_fused_kernel(%arg0: i32, %arg1: memref<16x256xf32, #tpu.memory_space<vmem>>, %arg2: memref<256x1024xbf16, #tpu.memory_space<vmem>>, %arg3: memref<1x1024xf32, #tpu.memory_space<vmem>>, %arg4: memref<1x1024xf32, #tpu.memory_space<vmem>>, %arg5: memref<1x1024xf32, #tpu.memory_space<vmem>>, %arg6: memref<1024x512xbf16, #tpu.memory_space<vmem>>, %arg7: memref<1x512xf32, #tpu.memory_space<vmem>>, %arg8: memref<1x512xf32, #tpu.memory_space<vmem>>, %arg9: memref<1x512xf32, #tpu.memory_space<vmem>>, %arg10: memref<512x256xbf16, #tpu.memory_space<vmem>>, %arg11: memref<1x256xf32, #tpu.memory_space<vmem>>, %arg12: memref<1x256xf32, #tpu.memory_space<vmem>>, %arg13: memref<1x256xf32, #tpu.memory_space<vmem>>, %arg14: memref<256x128xbf16, #tpu.memory_space<vmem>>, %arg15: memref<1x128xf32, #tpu.memory_space<vmem>>, %arg16: memref<1x128xf32, #tpu.memory_space<vmem>>, %arg17: memref<1x128xf32, #tpu.memory_space<vmem>>, %arg18: memref<1x128xf32, #tpu.memory_space<vmem>>, %arg19: memref<1x1xf32, #tpu.memory_space<vmem>>, %arg20: memref<1x16xf32, #tpu.memory_space<vmem>>) attributes {dimension_semantics = [#tpu.dimension_semantics<parallel>], iteration_bounds = array<i64: 1>, scalar_prefetch = 0 : i64, scratch_operands = 0 : i64, tpu.core_type = #tpu.core_type<tc>, window_params = [{transform_indices = @transform_0, window_bounds = array<i64: 16, 256>}, {pipeline_mode = #tpu.pipeline_mode<synchronous>, transform_indices = @transform_1, window_bounds = array<i64: 256, 1024>}, {pipeline_mode = #tpu.pipeline_mode<synchronous>, transform_indices = @transform_2, window_bounds = array<i64: 1, 1024>}, {pipeline_mode = #tpu.pipeline_mode<synchronous>, transform_indices = @transform_3, window_bounds = array<i64: 1, 1024>}, {pipeline_mode = #tpu.pipeline_mode<synchronous>, transform_indices = @transform_4, window_bounds = array<i64: 1, 1024>}, {pipeline_mode = #tpu.pipeline_mode<synchronous>, transform_indices = @transform_5, window_bounds = array<i64: 1024, 512>}, {pipeline_mode = #tpu.pipeline_mode<synchronous>, transform_indices = @transform_6, window_bounds = array<i64: 1, 512>}, {pipeline_mode = #tpu.pipeline_mode<synchronous>, transform_indices = @transform_7, window_bounds = array<i64: 1, 512>}, {pipeline_mode = #tpu.pipeline_mode<synchronous>, transform_indices = @transform_8, window_bounds = array<i64: 1, 512>}, {pipeline_mode = #tpu.pipeline_mode<synchronous>, transform_indices = @transform_9, window_bounds = array<i64: 512, 256>}, {pipeline_mode = #tpu.pipeline_mode<synchronous>, transform_indices = @transform_10, window_bounds = array<i64: 1, 256>}, {pipeline_mode = #tpu.pipeline_mode<synchronous>, transform_indices = @transform_11, window_bounds = array<i64: 1, 256>}, {pipeline_mode = #tpu.pipeline_mode<synchronous>, transform_indices = @transform_12, window_bounds = array<i64: 1, 256>}, {pipeline_mode = #tpu.pipeline_mode<synchronous>, transform_indices = @transform_13, window_bounds = array<i64: 256, 128>}, {pipeline_mode = #tpu.pipeline_mode<synchronous>, transform_indices = @transform_14, window_bounds = array<i64: 1, 128>}, {pipeline_mode = #tpu.pipeline_mode<synchronous>, transform_indices = @transform_15, window_bounds = array<i64: 1, 128>}, {pipeline_mode = #tpu.pipeline_mode<synchronous>, transform_indices = @transform_16, window_bounds = array<i64: 1, 128>}, {pipeline_mode = #tpu.pipeline_mode<synchronous>, transform_indices = @transform_17, window_bounds = array<i64: 1, 128>}, {pipeline_mode = #tpu.pipeline_mode<synchronous>, transform_indices = @transform_18, window_bounds = array<i64: 1, 1>}, {transform_indices = @transform_19, window_bounds = array<i64: 1, 16>}]} {
    %c0 = arith.constant 0 : index
    %c0_0 = arith.constant 0 : index
    %0 = vector.load %arg1[%c0, %c0_0] : memref<16x256xf32, #tpu.memory_space<vmem>>, vector<16x256xf32>
    %1 = arith.truncf %0 : vector<16x256xf32> to vector<16x256xbf16>
    %c0_1 = arith.constant 0 : index
    %c0_2 = arith.constant 0 : index
    %2 = vector.load %arg2[%c0_1, %c0_2] : memref<256x1024xbf16, #tpu.memory_space<vmem>>, vector<256x1024xbf16>
    %cst = arith.constant dense<0.000000e+00> : vector<16x1024xf32>
    %3 = tpu.matmul %1, %2, %cst {dimension_numbers = #tpu.dot_dimension_numbers<[1], [0], [0], [1], [0, 0, 1, 1], [], []>} : vector<16x256xbf16>, vector<256x1024xbf16>, vector<16x1024xf32> -> vector<16x1024xf32>
    %c0_3 = arith.constant 0 : index
    %c0_4 = arith.constant 0 : index
    %4 = vector.load %arg3[%c0_3, %c0_4] : memref<1x1024xf32, #tpu.memory_space<vmem>>, vector<1x1024xf32>
    %5 = vector.broadcast %4 : vector<1x1024xf32> to vector<16x1024xf32>
    %6 = arith.addf %3, %5 : vector<16x1024xf32>
    %cst_5 = arith.constant dense<0.000000e+00> : vector<16xf32>
    %7 = vector.multi_reduction <add>, %6, %cst_5 [1] : vector<16x1024xf32> to vector<16xf32>
    %8 = vector.shape_cast %7 : vector<16xf32> to vector<16x1xf32>
    %cst_6 = arith.constant 9.765625E-4 : f32
    %9 = vector.broadcast %cst_6 : f32 to vector<16x1xf32>
    %10 = arith.mulf %8, %9 : vector<16x1xf32>
    %11 = arith.mulf %6, %6 : vector<16x1024xf32>
    %cst_7 = arith.constant dense<0.000000e+00> : vector<16xf32>
    %12 = vector.multi_reduction <add>, %11, %cst_7 [1] : vector<16x1024xf32> to vector<16xf32>
    %13 = vector.shape_cast %12 : vector<16xf32> to vector<16x1xf32>
    %cst_8 = arith.constant 9.765625E-4 : f32
    %14 = vector.broadcast %cst_8 : f32 to vector<16x1xf32>
    %15 = arith.mulf %13, %14 : vector<16x1xf32>
    %16 = arith.mulf %10, %10 : vector<16x1xf32>
    %17 = arith.subf %15, %16 : vector<16x1xf32>
    %cst_9 = arith.constant 0.000000e+00 : f32
    %18 = vector.broadcast %cst_9 : f32 to vector<16x1xf32>
    %19 = arith.maximumf %17, %18 : vector<16x1xf32>
    %20 = vector.broadcast %10 : vector<16x1xf32> to vector<16x1024xf32>
    %21 = arith.subf %6, %20 : vector<16x1024xf32>
    %cst_10 = arith.constant 9.99999974E-6 : f32
    %22 = vector.broadcast %cst_10 : f32 to vector<16x1xf32>
    %23 = arith.addf %19, %22 : vector<16x1xf32>
    %24 = math.rsqrt %23 : vector<16x1xf32>
    %25 = vector.broadcast %24 : vector<16x1xf32> to vector<16x1024xf32>
    %26 = arith.mulf %21, %25 : vector<16x1024xf32>
    %c0_11 = arith.constant 0 : index
    %c0_12 = arith.constant 0 : index
    %27 = vector.load %arg4[%c0_11, %c0_12] : memref<1x1024xf32, #tpu.memory_space<vmem>>, vector<1x1024xf32>
    %28 = vector.broadcast %27 : vector<1x1024xf32> to vector<16x1024xf32>
    %29 = arith.mulf %26, %28 : vector<16x1024xf32>
    %c0_13 = arith.constant 0 : index
    %c0_14 = arith.constant 0 : index
    %30 = vector.load %arg5[%c0_13, %c0_14] : memref<1x1024xf32, #tpu.memory_space<vmem>>, vector<1x1024xf32>
    %31 = vector.broadcast %30 : vector<1x1024xf32> to vector<16x1024xf32>
    %32 = arith.addf %29, %31 : vector<16x1024xf32>
    %cst_15 = arith.constant 0.000000e+00 : f32
    %33 = vector.broadcast %cst_15 : f32 to vector<16x1024xf32>
    %34 = arith.maximumf %32, %33 : vector<16x1024xf32>
    %35 = arith.truncf %34 : vector<16x1024xf32> to vector<16x1024xbf16>
    %c0_16 = arith.constant 0 : index
    %c0_17 = arith.constant 0 : index
    %36 = vector.load %arg6[%c0_16, %c0_17] : memref<1024x512xbf16, #tpu.memory_space<vmem>>, vector<1024x512xbf16>
    %cst_18 = arith.constant dense<0.000000e+00> : vector<16x512xf32>
    %37 = tpu.matmul %35, %36, %cst_18 {dimension_numbers = #tpu.dot_dimension_numbers<[1], [0], [0], [1], [0, 0, 1, 1], [], []>} : vector<16x1024xbf16>, vector<1024x512xbf16>, vector<16x512xf32> -> vector<16x512xf32>
    %c0_19 = arith.constant 0 : index
    %c0_20 = arith.constant 0 : index
    %38 = vector.load %arg7[%c0_19, %c0_20] : memref<1x512xf32, #tpu.memory_space<vmem>>, vector<1x512xf32>
    %39 = vector.broadcast %38 : vector<1x512xf32> to vector<16x512xf32>
    %40 = arith.addf %37, %39 : vector<16x512xf32>
    %cst_21 = arith.constant dense<0.000000e+00> : vector<16xf32>
    %41 = vector.multi_reduction <add>, %40, %cst_21 [1] : vector<16x512xf32> to vector<16xf32>
    %42 = vector.shape_cast %41 : vector<16xf32> to vector<16x1xf32>
    %cst_22 = arith.constant 0.001953125 : f32
    %43 = vector.broadcast %cst_22 : f32 to vector<16x1xf32>
    %44 = arith.mulf %42, %43 : vector<16x1xf32>
    %45 = arith.mulf %40, %40 : vector<16x512xf32>
    %cst_23 = arith.constant dense<0.000000e+00> : vector<16xf32>
    %46 = vector.multi_reduction <add>, %45, %cst_23 [1] : vector<16x512xf32> to vector<16xf32>
    %47 = vector.shape_cast %46 : vector<16xf32> to vector<16x1xf32>
    %cst_24 = arith.constant 0.001953125 : f32
    %48 = vector.broadcast %cst_24 : f32 to vector<16x1xf32>
    %49 = arith.mulf %47, %48 : vector<16x1xf32>
    %50 = arith.mulf %44, %44 : vector<16x1xf32>
    %51 = arith.subf %49, %50 : vector<16x1xf32>
    %cst_25 = arith.constant 0.000000e+00 : f32
    %52 = vector.broadcast %cst_25 : f32 to vector<16x1xf32>
    %53 = arith.maximumf %51, %52 : vector<16x1xf32>
    %54 = vector.broadcast %44 : vector<16x1xf32> to vector<16x512xf32>
    %55 = arith.subf %40, %54 : vector<16x512xf32>
    %cst_26 = arith.constant 9.99999974E-6 : f32
    %56 = vector.broadcast %cst_26 : f32 to vector<16x1xf32>
    %57 = arith.addf %53, %56 : vector<16x1xf32>
    %58 = math.rsqrt %57 : vector<16x1xf32>
    %59 = vector.broadcast %58 : vector<16x1xf32> to vector<16x512xf32>
    %60 = arith.mulf %55, %59 : vector<16x512xf32>
    %c0_27 = arith.constant 0 : index
    %c0_28 = arith.constant 0 : index
    %61 = vector.load %arg8[%c0_27, %c0_28] : memref<1x512xf32, #tpu.memory_space<vmem>>, vector<1x512xf32>
    %62 = vector.broadcast %61 : vector<1x512xf32> to vector<16x512xf32>
    %63 = arith.mulf %60, %62 : vector<16x512xf32>
    %c0_29 = arith.constant 0 : index
    %c0_30 = arith.constant 0 : index
    %64 = vector.load %arg9[%c0_29, %c0_30] : memref<1x512xf32, #tpu.memory_space<vmem>>, vector<1x512xf32>
    %65 = vector.broadcast %64 : vector<1x512xf32> to vector<16x512xf32>
    %66 = arith.addf %63, %65 : vector<16x512xf32>
    %cst_31 = arith.constant 0.000000e+00 : f32
    %67 = vector.broadcast %cst_31 : f32 to vector<16x512xf32>
    %68 = arith.maximumf %66, %67 : vector<16x512xf32>
    %69 = arith.truncf %68 : vector<16x512xf32> to vector<16x512xbf16>
    %c0_32 = arith.constant 0 : index
    %c0_33 = arith.constant 0 : index
    %70 = vector.load %arg10[%c0_32, %c0_33] : memref<512x256xbf16, #tpu.memory_space<vmem>>, vector<512x256xbf16>
    %cst_34 = arith.constant dense<0.000000e+00> : vector<16x256xf32>
    %71 = tpu.matmul %69, %70, %cst_34 {dimension_numbers = #tpu.dot_dimension_numbers<[1], [0], [0], [1], [0, 0, 1, 1], [], []>} : vector<16x512xbf16>, vector<512x256xbf16>, vector<16x256xf32> -> vector<16x256xf32>
    %c0_35 = arith.constant 0 : index
    %c0_36 = arith.constant 0 : index
    %72 = vector.load %arg11[%c0_35, %c0_36] : memref<1x256xf32, #tpu.memory_space<vmem>>, vector<1x256xf32>
    %73 = vector.broadcast %72 : vector<1x256xf32> to vector<16x256xf32>
    %74 = arith.addf %71, %73 : vector<16x256xf32>
    %cst_37 = arith.constant dense<0.000000e+00> : vector<16xf32>
    %75 = vector.multi_reduction <add>, %74, %cst_37 [1] : vector<16x256xf32> to vector<16xf32>
    %76 = vector.shape_cast %75 : vector<16xf32> to vector<16x1xf32>
    %cst_38 = arith.constant 3.906250e-03 : f32
    %77 = vector.broadcast %cst_38 : f32 to vector<16x1xf32>
    %78 = arith.mulf %76, %77 : vector<16x1xf32>
    %79 = arith.mulf %74, %74 : vector<16x256xf32>
    %cst_39 = arith.constant dense<0.000000e+00> : vector<16xf32>
    %80 = vector.multi_reduction <add>, %79, %cst_39 [1] : vector<16x256xf32> to vector<16xf32>
    %81 = vector.shape_cast %80 : vector<16xf32> to vector<16x1xf32>
    %cst_40 = arith.constant 3.906250e-03 : f32
    %82 = vector.broadcast %cst_40 : f32 to vector<16x1xf32>
    %83 = arith.mulf %81, %82 : vector<16x1xf32>
    %84 = arith.mulf %78, %78 : vector<16x1xf32>
    %85 = arith.subf %83, %84 : vector<16x1xf32>
    %cst_41 = arith.constant 0.000000e+00 : f32
    %86 = vector.broadcast %cst_41 : f32 to vector<16x1xf32>
    %87 = arith.maximumf %85, %86 : vector<16x1xf32>
    %88 = vector.broadcast %78 : vector<16x1xf32> to vector<16x256xf32>
    %89 = arith.subf %74, %88 : vector<16x256xf32>
    %cst_42 = arith.constant 9.99999974E-6 : f32
    %90 = vector.broadcast %cst_42 : f32 to vector<16x1xf32>
    %91 = arith.addf %87, %90 : vector<16x1xf32>
    %92 = math.rsqrt %91 : vector<16x1xf32>
    %93 = vector.broadcast %92 : vector<16x1xf32> to vector<16x256xf32>
    %94 = arith.mulf %89, %93 : vector<16x256xf32>
    %c0_43 = arith.constant 0 : index
    %c0_44 = arith.constant 0 : index
    %95 = vector.load %arg12[%c0_43, %c0_44] : memref<1x256xf32, #tpu.memory_space<vmem>>, vector<1x256xf32>
    %96 = vector.broadcast %95 : vector<1x256xf32> to vector<16x256xf32>
    %97 = arith.mulf %94, %96 : vector<16x256xf32>
    %c0_45 = arith.constant 0 : index
    %c0_46 = arith.constant 0 : index
    %98 = vector.load %arg13[%c0_45, %c0_46] : memref<1x256xf32, #tpu.memory_space<vmem>>, vector<1x256xf32>
    %99 = vector.broadcast %98 : vector<1x256xf32> to vector<16x256xf32>
    %100 = arith.addf %97, %99 : vector<16x256xf32>
    %cst_47 = arith.constant 0.000000e+00 : f32
    %101 = vector.broadcast %cst_47 : f32 to vector<16x256xf32>
    %102 = arith.maximumf %100, %101 : vector<16x256xf32>
    %103 = arith.truncf %102 : vector<16x256xf32> to vector<16x256xbf16>
    %c0_48 = arith.constant 0 : index
    %c0_49 = arith.constant 0 : index
    %104 = vector.load %arg14[%c0_48, %c0_49] : memref<256x128xbf16, #tpu.memory_space<vmem>>, vector<256x128xbf16>
    %cst_50 = arith.constant dense<0.000000e+00> : vector<16x128xf32>
    %105 = tpu.matmul %103, %104, %cst_50 {dimension_numbers = #tpu.dot_dimension_numbers<[1], [0], [0], [1], [0, 0, 1, 1], [], []>} : vector<16x256xbf16>, vector<256x128xbf16>, vector<16x128xf32> -> vector<16x128xf32>
    %c0_51 = arith.constant 0 : index
    %c0_52 = arith.constant 0 : index
    %106 = vector.load %arg15[%c0_51, %c0_52] : memref<1x128xf32, #tpu.memory_space<vmem>>, vector<1x128xf32>
    %107 = vector.broadcast %106 : vector<1x128xf32> to vector<16x128xf32>
    %108 = arith.addf %105, %107 : vector<16x128xf32>
    %cst_53 = arith.constant dense<0.000000e+00> : vector<16xf32>
    %109 = vector.multi_reduction <add>, %108, %cst_53 [1] : vector<16x128xf32> to vector<16xf32>
    %110 = vector.shape_cast %109 : vector<16xf32> to vector<16x1xf32>
    %cst_54 = arith.constant 7.812500e-03 : f32
    %111 = vector.broadcast %cst_54 : f32 to vector<16x1xf32>
    %112 = arith.mulf %110, %111 : vector<16x1xf32>
    %113 = arith.mulf %108, %108 : vector<16x128xf32>
    %cst_55 = arith.constant dense<0.000000e+00> : vector<16xf32>
    %114 = vector.multi_reduction <add>, %113, %cst_55 [1] : vector<16x128xf32> to vector<16xf32>
    %115 = vector.shape_cast %114 : vector<16xf32> to vector<16x1xf32>
    %cst_56 = arith.constant 7.812500e-03 : f32
    %116 = vector.broadcast %cst_56 : f32 to vector<16x1xf32>
    %117 = arith.mulf %115, %116 : vector<16x1xf32>
    %118 = arith.mulf %112, %112 : vector<16x1xf32>
    %119 = arith.subf %117, %118 : vector<16x1xf32>
    %cst_57 = arith.constant 0.000000e+00 : f32
    %120 = vector.broadcast %cst_57 : f32 to vector<16x1xf32>
    %121 = arith.maximumf %119, %120 : vector<16x1xf32>
    %122 = vector.broadcast %112 : vector<16x1xf32> to vector<16x128xf32>
    %123 = arith.subf %108, %122 : vector<16x128xf32>
    %cst_58 = arith.constant 9.99999974E-6 : f32
    %124 = vector.broadcast %cst_58 : f32 to vector<16x1xf32>
    %125 = arith.addf %121, %124 : vector<16x1xf32>
    %126 = math.rsqrt %125 : vector<16x1xf32>
    %127 = vector.broadcast %126 : vector<16x1xf32> to vector<16x128xf32>
    %128 = arith.mulf %123, %127 : vector<16x128xf32>
    %c0_59 = arith.constant 0 : index
    %c0_60 = arith.constant 0 : index
    %129 = vector.load %arg16[%c0_59, %c0_60] : memref<1x128xf32, #tpu.memory_space<vmem>>, vector<1x128xf32>
    %130 = vector.broadcast %129 : vector<1x128xf32> to vector<16x128xf32>
    %131 = arith.mulf %128, %130 : vector<16x128xf32>
    %c0_61 = arith.constant 0 : index
    %c0_62 = arith.constant 0 : index
    %132 = vector.load %arg17[%c0_61, %c0_62] : memref<1x128xf32, #tpu.memory_space<vmem>>, vector<1x128xf32>
    %133 = vector.broadcast %132 : vector<1x128xf32> to vector<16x128xf32>
    %134 = arith.addf %131, %133 : vector<16x128xf32>
    %cst_63 = arith.constant 0.000000e+00 : f32
    %135 = vector.broadcast %cst_63 : f32 to vector<16x128xf32>
    %136 = arith.maximumf %134, %135 : vector<16x128xf32>
    %137 = arith.truncf %136 : vector<16x128xf32> to vector<16x128xbf16>
    %138 = arith.extf %137 : vector<16x128xbf16> to vector<16x128xf32>
    %c0_64 = arith.constant 0 : index
    %c0_65 = arith.constant 0 : index
    %139 = vector.load %arg18[%c0_64, %c0_65] : memref<1x128xf32, #tpu.memory_space<vmem>>, vector<1x128xf32>
    %140 = vector.broadcast %139 : vector<1x128xf32> to vector<16x128xf32>
    %141 = arith.mulf %138, %140 : vector<16x128xf32>
    %cst_66 = arith.constant dense<0.000000e+00> : vector<16xf32>
    %142 = vector.multi_reduction <add>, %141, %cst_66 [1] : vector<16x128xf32> to vector<16xf32>
    %143 = vector.shape_cast %142 : vector<16xf32> to vector<1x16xf32>
    %c0_67 = arith.constant 0 : index
    %c0_68 = arith.constant 0 : index
    %144 = vector.load %arg19[%c0_67, %c0_68] : memref<1x1xf32, #tpu.memory_space<vmem>>, vector<1x1xf32>
    %145 = vector.broadcast %144 : vector<1x1xf32> to vector<1x16xf32>
    %146 = arith.addf %143, %145 : vector<1x16xf32>
    %c0_69 = arith.constant 0 : index
    %c0_70 = arith.constant 0 : index
    %147 = vector.load %arg20[%c0_69, %c0_70] : memref<1x16xf32, #tpu.memory_space<vmem>>, vector<1x16xf32>
    tpu.vector_store %arg20[%c0_69, %c0_70], %146 {strides = array<i32>} : memref<1x16xf32, #tpu.memory_space<vmem>>, vector<1x16xf32>,
    return
  }
  func.func @transform_0(%arg0: i32) -> (i32, i32) {
    %c0_i32 = arith.constant 0 : i32
    %c0_i32_0 = arith.constant 0 : i32
    return %arg0, %c0_i32 : i32, i32
  }
  func.func @transform_1(%arg0: i32) -> (i32, i32) {
    %c0_i32 = arith.constant 0 : i32
    %c0_i32_0 = arith.constant 0 : i32
    %c0_i32_1 = arith.constant 0 : i32
    return %c0_i32, %c0_i32_0 : i32, i32
  }
  func.func @transform_2(%arg0: i32) -> (i32, i32) {
    %c0_i32 = arith.constant 0 : i32
    %c0_i32_0 = arith.constant 0 : i32
    %c0_i32_1 = arith.constant 0 : i32
    return %c0_i32, %c0_i32_0 : i32, i32
  }
  func.func @transform_3(%arg0: i32) -> (i32, i32) {
    %c0_i32 = arith.constant 0 : i32
    %c0_i32_0 = arith.constant 0 : i32
    %c0_i32_1 = arith.constant 0 : i32
    return %c0_i32, %c0_i32_0 : i32, i32
  }
  func.func @transform_4(%arg0: i32) -> (i32, i32) {
    %c0_i32 = arith.constant 0 : i32
    %c0_i32_0 = arith.constant 0 : i32
    %c0_i32_1 = arith.constant 0 : i32
    return %c0_i32, %c0_i32_0 : i32, i32
  }
  func.func @transform_5(%arg0: i32) -> (i32, i32) {
    %c0_i32 = arith.constant 0 : i32
    %c0_i32_0 = arith.constant 0 : i32
    %c0_i32_1 = arith.constant 0 : i32
    return %c0_i32, %c0_i32_0 : i32, i32
  }
  func.func @transform_6(%arg0: i32) -> (i32, i32) {
    %c0_i32 = arith.constant 0 : i32
    %c0_i32_0 = arith.constant 0 : i32
    %c0_i32_1 = arith.constant 0 : i32
    return %c0_i32, %c0_i32_0 : i32, i32
  }
  func.func @transform_7(%arg0: i32) -> (i32, i32) {
    %c0_i32 = arith.constant 0 : i32
    %c0_i32_0 = arith.constant 0 : i32
    %c0_i32_1 = arith.constant 0 : i32
    return %c0_i32, %c0_i32_0 : i32, i32
  }
  func.func @transform_8(%arg0: i32) -> (i32, i32) {
    %c0_i32 = arith.constant 0 : i32
    %c0_i32_0 = arith.constant 0 : i32
    %c0_i32_1 = arith.constant 0 : i32
    return %c0_i32, %c0_i32_0 : i32, i32
  }
  func.func @transform_9(%arg0: i32) -> (i32, i32) {
    %c0_i32 = arith.constant 0 : i32
    %c0_i32_0 = arith.constant 0 : i32
    %c0_i32_1 = arith.constant 0 : i32
    return %c0_i32, %c0_i32_0 : i32, i32
  }
  func.func @transform_10(%arg0: i32) -> (i32, i32) {
    %c0_i32 = arith.constant 0 : i32
    %c0_i32_0 = arith.constant 0 : i32
    %c0_i32_1 = arith.constant 0 : i32
    return %c0_i32, %c0_i32_0 : i32, i32
  }
  func.func @transform_11(%arg0: i32) -> (i32, i32) {
    %c0_i32 = arith.constant 0 : i32
    %c0_i32_0 = arith.constant 0 : i32
    %c0_i32_1 = arith.constant 0 : i32
    return %c0_i32, %c0_i32_0 : i32, i32
  }
  func.func @transform_12(%arg0: i32) -> (i32, i32) {
    %c0_i32 = arith.constant 0 : i32
    %c0_i32_0 = arith.constant 0 : i32
    %c0_i32_1 = arith.constant 0 : i32
    return %c0_i32, %c0_i32_0 : i32, i32
  }
  func.func @transform_13(%arg0: i32) -> (i32, i32) {
    %c0_i32 = arith.constant 0 : i32
    %c0_i32_0 = arith.constant 0 : i32
    %c0_i32_1 = arith.constant 0 : i32
    return %c0_i32, %c0_i32_0 : i32, i32
  }
  func.func @transform_14(%arg0: i32) -> (i32, i32) {
    %c0_i32 = arith.constant 0 : i32
    %c0_i32_0 = arith.constant 0 : i32
    %c0_i32_1 = arith.constant 0 : i32
    return %c0_i32, %c0_i32_0 : i32, i32
  }
  func.func @transform_15(%arg0: i32) -> (i32, i32) {
    %c0_i32 = arith.constant 0 : i32
    %c0_i32_0 = arith.constant 0 : i32
    %c0_i32_1 = arith.constant 0 : i32
    return %c0_i32, %c0_i32_0 : i32, i32
  }
  func.func @transform_16(%arg0: i32) -> (i32, i32) {
    %c0_i32 = arith.constant 0 : i32
    %c0_i32_0 = arith.constant 0 : i32
    %c0_i32_1 = arith.constant 0 : i32
    return %c0_i32, %c0_i32_0 : i32, i32
  }
  func.func @transform_17(%arg0: i32) -> (i32, i32) {
    %c0_i32 = arith.constant 0 : i32
    %c0_i32_0 = arith.constant 0 : i32
    %c0_i32_1 = arith.constant 0 : i32
    return %c0_i32, %c0_i32_0 : i32, i32
  }
  func.func @transform_18(%arg0: i32) -> (i32, i32) {
    %c0_i32 = arith.constant 0 : i32
    %c0_i32_0 = arith.constant 0 : i32
    %c0_i32_1 = arith.constant 0 : i32
    return %c0_i32, %c0_i32_0 : i32, i32
  }
  func.func @transform_19(%arg0: i32) -> (i32, i32) {
    %c0_i32 = arith.constant 0 : i32
    %c0_i32_0 = arith.constant 0 : i32
    return %c0_i32, %arg0 : i32, i32
  }
}

</mosaic_0001>

<llo_original>
// kernel: nd_forward.1
$region0: #{nd_forward.1}
  #allocation0 [shape = 'u32[]', space=smem, size = 0x4, offset = 0x4, fixed_abs, tag = 'smem constant byte address 0x4 - core index']
  #allocation1 [shape = 'u32[144,128]{1,0:T(1,128)}', space=vmem, size = 0x12000, scoped, tag = 'internal scratch']
  #allocation2 [shape = 'f32[1,1]{1,0:T(1,128)S(1)}', space=vmem, size = 0x200, scoped, tag = 'scoped memory for nd_forward.1']
  %s0 = inlined_call_operand.vmem [shape: f32[16,256], index: 0, kind: input, shape index: {}]
  %s1 = inlined_call_operand.hbm [shape: bf16[256,1024], index: 1, kind: input, shape index: {}]
  %s2 = inlined_call_operand.hbm [shape: f32[1,1024], index: 2, kind: input, shape index: {}]
  %s3 = inlined_call_operand.vmem [shape: f32[1,1024], index: 3, kind: input, shape index: {}]
  %s4 = inlined_call_operand.vmem [shape: f32[1,1024], index: 4, kind: input, shape index: {}]
  %s5 = inlined_call_operand.hbm [shape: bf16[1024,512], index: 5, kind: input, shape index: {}]
  %s6 = inlined_call_operand.hbm [shape: f32[1,512], index: 6, kind: input, shape index: {}]
  %s7 = inlined_call_operand.vmem [shape: f32[1,512], index: 7, kind: input, shape index: {}]
  %s8 = inlined_call_operand.hbm [shape: f32[1,512], index: 8, kind: input, shape index: {}]
  %s9 = inlined_call_operand.hbm [shape: bf16[512,256], index: 9, kind: input, shape index: {}]
  %s10 = inlined_call_operand.vmem [shape: f32[1,256], index: 10, kind: input, shape index: {}]
  %s11 = inlined_call_operand.vmem [shape: f32[1,256], index: 11, kind: input, shape index: {}]
  %s12 = inlined_call_operand.vmem [shape: f32[1,256], index: 12, kind: input, shape index: {}]
  %s13 = inlined_call_operand.hbm [shape: bf16[256,128], index: 13, kind: input, shape index: {}]
  %s14 = inlined_call_operand.hbm [shape: f32[1,128], index: 14, kind: input, shape index: {}]
  %s15 = inlined_call_operand.vmem [shape: f32[1,128], index: 15, kind: input, shape index: {}]
  %s16 = inlined_call_operand.vmem [shape: f32[1,128], index: 16, kind: input, shape index: {}]
  %s17 = inlined_call_operand.vmem [shape: f32[1,128], index: 17, kind: input, shape index: {}]
  %s18 = inlined_call_operand.<no memory space> [shape: f32[1,1], index: 18, kind: input, shape index: {}]
  %s19 = inlined_call_operand.hbm [shape: f32[1,16], index: 19, kind: output, shape index: {}]
  %s20 = sld [smem:[#allocation0]]
  $region118: #{nd_forward.1} parent=0
    _
  %s22 = ssub.s32 1, %s20
  %s23 = scalar_select 0, %s22, %s20
  %v24 = vstv %s18
  %25 = vst [vmem:[#allocation2] sm:$0x1] %v24
  $region1: #{nd_forward.1} parent=0
    #allocation3 [shape = 'u8[524288]{0}', space=vmem, size = 0x80000, scoped, tag = 'input window, operand 1, single buffered']
    #allocation4 [shape = 's32[1]{0}', space=sflag, size = 0x4, scoped, tag = 'scoped memory for nd_forward.1']
    #allocation5 [shape = 's32[1]{0}', space=sflag, size = 0x4, scoped, tag = 'scoped memory for nd_forward.1']
    #allocation6 [shape = 'u8[4096]{0}', space=vmem, size = 0x1000, scoped, tag = 'input window, operand 2, single buffered']
    #allocation7 [shape = 's32[1]{0}', space=sflag, size = 0x4, scoped, tag = 'scoped memory for nd_forward.1']
    #allocation8 [shape = 'u8[1048576]{0}', space=vmem, size = 0x100000, scoped, tag = 'input window, operand 5, single buffered']
    #allocation9 [shape = 'u8[2048]{0}', space=vmem, size = 0x800, scoped, tag = 'input window, operand 6, single buffered']
    #allocation10 [shape = 's32[1]{0}', space=sflag, size = 0x4, scoped, tag = 'scoped memory for nd_forward.1']
    #allocation11 [shape = 'u8[2048]{0}', space=vmem, size = 0x800, scoped, tag = 'input window, operand 8, single buffered']
    #allocation12 [shape = 'u8[262144]{0}', space=vmem, size = 0x40000, scoped, tag = 'input window, operand 9, single buffered']
    #allocation13 [shape = 's32[1]{0}', space=sflag, size = 0x4, scoped, tag = 'scoped memory for nd_forward.1']
    #allocation14 [shape = 'u8[65536]{0}', space=vmem, size = 0x10000, scoped, tag = 'input window, operand 13, single buffered']
    #allocation15 [shape = 'u8[512]{0}', space=vmem, size = 0x400, scoped, tag = 'input window, operand 14, single buffered']
    #allocation16 [shape = 's32[1]{0}', space=sflag, size = 0x4, scoped, tag = 'scoped memory for nd_forward.1']
    #allocation17 [shape = 'u8[512]{0}', space=vmem, size = 0x400, scoped, tag = 'output window, operand 0, single buffered']
    %26 = vsyncpa [#allocation4], 0
    %27 = vsyncpa [#allocation7], 0
    %28 = vsyncpa [#allocation10], 0
    %29 = vsyncpa [#allocation13], 0
    %30 = vsyncpa [#allocation16], 0
    %31 = vsyncpa [#allocation5], 0
    // Predicated region
    $region2: #{nd_forward.1} parent=1 // pred_check
      _
    $region3: #{nd_forward.1} parent=1 // pred_check_branch
      %33 = sbr.rel (0) target = $region5
    $region4: #{nd_forward.1} parent=1 // pred_region
      _
    $region5: #{nd_forward.1} parent=1 // pred_fallthru
      _
    // Predicated region
    $region6: #{nd_forward.1} parent=1 // pred_check
      _
    $region7: #{nd_forward.1} parent=1 // pred_check_branch
      %35 = sbr.rel (0) target = $region9
    $region8: #{nd_forward.1} parent=1 // pred_region
      %s37 = ssub.s32 16384, 16384
      %38 = vsyncadd [#allocation4], %s37
      %s39 = sshll.u32 [#allocation3], 4
      %s40 = int_to_ptr.vmem [resolvable:$true] %s39
      %45 = dma.hbm_to_vmem [thread:$0]  %s1, 16384, %s40, [#allocation4], 512, 512, 32
    $region9: #{nd_forward.1} parent=1 // pred_fallthru
      _
    // Predicated region
    $region10: #{nd_forward.1} parent=1 // pred_check
      _
    $region11: #{nd_forward.1} parent=1 // pred_check_branch
      %47 = sbr.rel (0) target = $region13
    $region12: #{nd_forward.1} parent=1 // pred_region
      %s49 = ssub.s32 128, 128
      %50 = vsyncadd [#allocation7], %s49
      %s52 = sshll.u32 [#allocation6], 4
      %s53 = int_to_ptr.vmem [resolvable:$true] %s52
      %55 = dma.hbm_to_vmem [thread:$0]  %s2, 128, %s53, [#allocation7]
    $region13: #{nd_forward.1} parent=1 // pred_fallthru
      _
    // Predicated region
    $region14: #{nd_forward.1} parent=1 // pred_check
      _
    $region15: #{nd_forward.1} parent=1 // pred_check_branch
      %57 = sbr.rel (0) target = $region17
    $region16: #{nd_forward.1} parent=1 // pred_region
      _
    $region17: #{nd_forward.1} parent=1 // pred_fallthru
      _
    // Predicated region
    $region18: #{nd_forward.1} parent=1 // pred_check
      _
    $region19: #{nd_forward.1} parent=1 // pred_check_branch
      %59 = sbr.rel (0) target = $region21
    $region20: #{nd_forward.1} parent=1 // pred_region
      _
    $region21: #{nd_forward.1} parent=1 // pred_fallthru
      _
    // Predicated region
    $region22: #{nd_forward.1} parent=1 // pred_check
      _
    $region23: #{nd_forward.1} parent=1 // pred_check_branch
      %61 = sbr.rel (0) target = $region25
    $region24: #{nd_forward.1} parent=1 // pred_region
      %s63 = ssub.s32 32768, 32768
      %64 = vsyncadd [#allocation7], %s63
      %s65 = sshll.u32 [#allocation8], 4
      %s66 = int_to_ptr.vmem [resolvable:$true] %s65
      %71 = dma.hbm_to_vmem [thread:$0]  %s5, 32768, %s66, [#allocation7], 256, 256, 16
    $region25: #{nd_forward.1} parent=1 // pred_fallthru
      _
    // Predicated region
    $region26: #{nd_forward.1} parent=1 // pred_check
      _
    $region27: #{nd_forward.1} parent=1 // pred_check_branch
      %73 = sbr.rel (0) target = $region29
    $region28: #{nd_forward.1} parent=1 // pred_region
      %s75 = ssub.s32 64, 64
      %76 = vsyncadd [#allocation10], %s75
      %s78 = sshll.u32 [#allocation9], 4
      %s79 = int_to_ptr.vmem [resolvable:$true] %s78
      %81 = dma.hbm_to_vmem [thread:$0]  %s6, 64, %s79, [#allocation10]
    $region29: #{nd_forward.1} parent=1 // pred_fallthru
      _
    // Predicated region
    $region30: #{nd_forward.1} parent=1 // pred_check
      _
    $region31: #{nd_forward.1} parent=1 // pred_check_branch
      %83 = sbr.rel (0) target = $region33
    $region32: #{nd_forward.1} parent=1 // pred_region
      _
    $region33: #{nd_forward.1} parent=1 // pred_fallthru
      _
    // Predicated region
    $region34: #{nd_forward.1} parent=1 // pred_check
      _
    $region35: #{nd_forward.1} parent=1 // pred_check_branch
      %85 = sbr.rel (0) target = $region37
    $region36: #{nd_forward.1} parent=1 // pred_region
      %s87 = ssub.s32 64, 64
      %88 = vsyncadd [#allocation10], %s87
      %s90 = sshll.u32 [#allocation11], 4
      %s91 = int_to_ptr.vmem [resolvable:$true] %s90
      %93 = dma.hbm_to_vmem [thread:$0]  %s8, 64, %s91, [#allocation10]
    $region37: #{nd_forward.1} parent=1 // pred_fallthru
      _
    // Predicated region
    $region38: #{nd_forward.1} parent=1 // pred_check
      _
    $region39: #{nd_forward.1} parent=1 // pred_check_branch
      %95 = sbr.rel (0) target = $region41
    $region40: #{nd_forward.1} parent=1 // pred_region
      %s97 = ssub.s32 8192, 8192
      %98 = vsyncadd [#allocation13], %s97
      %s99 = sshll.u32 [#allocation12], 4
      %s100 = int_to_ptr.vmem [resolvable:$true] %s99
      %105 = dma.hbm_to_vmem [thread:$0]  %s9, 8192, %s100, [#allocation13], 128, 128, 8
    $region41: #{nd_forward.1} parent=1 // pred_fallthru
      _
    // Predicated region
    $region42: #{nd_forward.1} parent=1 // pred_check
      _
    $region43: #{nd_forward.1} parent=1 // pred_check_branch
      %107 = sbr.rel (0) target = $region45
    $region44: #{nd_forward.1} parent=1 // pred_region
      _
    $region45: #{nd_forward.1} parent=1 // pred_fallthru
      _
    // Predicated region
    $region46: #{nd_forward.1} parent=1 // pred_check
      _
    $region47: #{nd_forward.1} parent=1 // pred_check_branch
      %109 = sbr.rel (0) target = $region49
    $region48: #{nd_forward.1} parent=1 // pred_region
      _
    $region49: #{nd_forward.1} parent=1 // pred_fallthru
      _
    // Predicated region
    $region50: #{nd_forward.1} parent=1 // pred_check
      _
    $region51: #{nd_forward.1} parent=1 // pred_check_branch
      %111 = sbr.rel (0) target = $region53
    $region52: #{nd_forward.1} parent=1 // pred_region
      _
    $region53: #{nd_forward.1} parent=1 // pred_fallthru
      _
    // Predicated region
    $region54: #{nd_forward.1} parent=1 // pred_check
      _
    $region55: #{nd_forward.1} parent=1 // pred_check_branch
      %113 = sbr.rel (0) target = $region57
    $region56: #{nd_forward.1} parent=1 // pred_region
      %s115 = ssub.s32 2048, 2048
      %116 = vsyncadd [#allocation13], %s115
      %s117 = sshll.u32 [#allocation14], 4
      %s118 = int_to_ptr.vmem [resolvable:$true] %s117
      %123 = dma.hbm_to_vmem [thread:$0]  %s13, 2048, %s118, [#allocation13], 64, 64, 4
    $region57: #{nd_forward.1} parent=1 // pred_fallthru
      _
    // Predicated region
    $region58: #{nd_forward.1} parent=1 // pred_check
      _
    $region59: #{nd_forward.1} parent=1 // pred_check_branch
      %125 = sbr.rel (0) target = $region61
    $region60: #{nd_forward.1} parent=1 // pred_region
      %s127 = ssub.s32 16, 16
      %128 = vsyncadd [#allocation16], %s127
      %s130 = sshll.u32 [#allocation15], 4
      %s131 = int_to_ptr.vmem [resolvable:$true] %s130
      %133 = dma.hbm_to_vmem [thread:$0]  %s14, 16, %s131, [#allocation16]
    $region61: #{nd_forward.1} parent=1 // pred_fallthru
      _
    // Predicated region
    $region62: #{nd_forward.1} parent=1 // pred_check
      _
    $region63: #{nd_forward.1} parent=1 // pred_check_branch
      %135 = sbr.rel (0) target = $region65
    $region64: #{nd_forward.1} parent=1 // pred_region
      _
    $region65: #{nd_forward.1} parent=1 // pred_fallthru
      _
    // Predicated region
    $region66: #{nd_forward.1} parent=1 // pred_check
      _
    $region67: #{nd_forward.1} parent=1 // pred_check_branch
      %137 = sbr.rel (0) target = $region69
    $region68: #{nd_forward.1} parent=1 // pred_region
      _
    $region69: #{nd_forward.1} parent=1 // pred_fallthru
      _
    // Predicated region
    $region70: #{nd_forward.1} parent=1 // pred_check
      _
    $region71: #{nd_forward.1} parent=1 // pred_check_branch
      %139 = sbr.rel (0) target = $region73
    $region72: #{nd_forward.1} parent=1 // pred_region
      _
    $region73: #{nd_forward.1} parent=1 // pred_fallthru
      _
    // Predicated region
    $region74: #{nd_forward.1} parent=1 // pred_check
      _
    $region75: #{nd_forward.1} parent=1 // pred_check_branch
      %141 = sbr.rel (0) target = $region77
    $region76: #{nd_forward.1} parent=1 // pred_region
      _
    $region77: #{nd_forward.1} parent=1 // pred_fallthru
      _
    // Predicated region
    $region78: #{nd_forward.1} parent=1 // pred_check
      _
    $region79: #{nd_forward.1} parent=1 // pred_check_branch
      %143 = sbr.rel (0) target = $region81
    $region80: #{nd_forward.1} parent=1 // pred_region
      %144 = dma.done [#allocation4], 16384
    $region81: #{nd_forward.1} parent=1 // pred_fallthru
      _
    // Predicated region
    $region82: #{nd_forward.1} parent=1 // pred_check
      _
    $region83: #{nd_forward.1} parent=1 // pred_check_branch
      %146 = sbr.rel (0) target = $region85
    $region84: #{nd_forward.1} parent=1 // pred_region
      %147 = dma.done [#allocation7], 128
    $region85: #{nd_forward.1} parent=1 // pred_fallthru
      _
    // Predicated region
    $region86: #{nd_forward.1} parent=1 // pred_check
      _
    $region87: #{nd_forward.1} parent=1 // pred_check_branch
      %149 = sbr.rel (0) target = $region89
    $region88: #{nd_forward.1} parent=1 // pred_region
      %150 = dma.done [#allocation7], 32768
    $region89: #{nd_forward.1} parent=1 // pred_fallthru
      _
    // Predicated region
    $region90: #{nd_forward.1} parent=1 // pred_check
      _
    $region91: #{nd_forward.1} parent=1 // pred_check_branch
      %152 = sbr.rel (0) target = $region93
    $region92: #{nd_forward.1} parent=1 // pred_region
      %153 = dma.done [#allocation10], 64
    $region93: #{nd_forward.1} parent=1 // pred_fallthru
      _
    // Predicated region
    $region94: #{nd_forward.1} parent=1 // pred_check
      _
    $region95: #{nd_forward.1} parent=1 // pred_check_branch
      %155 = sbr.rel (0) target = $region97
    $region96: #{nd_forward.1} parent=1 // pred_region
      %156 = dma.done [#allocation10], 64
    $region97: #{nd_forward.1} parent=1 // pred_fallthru
      _
    // Predicated region
    $region98: #{nd_forward.1} parent=1 // pred_check
      _
    $region99: #{nd_forward.1} parent=1 // pred_check_branch
      %158 = sbr.rel (0) target = $region101
    $region100: #{nd_forward.1} parent=1 // pred_region
      %159 = dma.done [#allocation13], 8192
    $region101: #{nd_forward.1} parent=1 // pred_fallthru
      _
    // Predicated region
    $region102: #{nd_forward.1} parent=1 // pred_check
      _
    $region103: #{nd_forward.1} parent=1 // pred_check_branch
      %161 = sbr.rel (0) target = $region105
    $region104: #{nd_forward.1} parent=1 // pred_region
      %162 = dma.done [#allocation13], 2048
    $region105: #{nd_forward.1} parent=1 // pred_fallthru
      _
    // Predicated region
    $region106: #{nd_forward.1} parent=1 // pred_check
      _
    $region107: #{nd_forward.1} parent=1 // pred_check_branch
      %164 = sbr.rel (0) target = $region109
    $region108: #{nd_forward.1} parent=1 // pred_region
      %165 = dma.done [#allocation16], 16
    $region109: #{nd_forward.1} parent=1 // pred_fallthru
      _
    %v167 = vld [vmem:[%s0] sm:$0xff]
    %v168 = vld [vmem:[%s0 + $0x8] sm:$0xff]
    %v169 = vld [vmem:[%s0 + $0x10] sm:$0xff]
    %v170 = vld [vmem:[%s0 + $0x18] sm:$0xff]
    %v171 = vpack.c.bf16 %v169, %v167
    %v172 = vpack.c.bf16 %v170, %v168
    %v173 = vld [vmem:[#allocation3] sm:$0xff]
    %v174 = vld [vmem:[#allocation3 + $0x8] sm:$0xff]
    %v175 = vld [vmem:[#allocation3 + $0x10] sm:$0xff]
    %v176 = vld [vmem:[#allocation3 + $0x18] sm:$0xff]
    %v177 = vld [vmem:[#allocation3 + $0x20] sm:$0xff]
    %v178 = vld [vmem:[#allocation3 + $0x28] sm:$0xff]
    %v179 = vld [vmem:[#allocation3 + $0x30] sm:$0xff]
    %v180 = vld [vmem:[#allocation3 + $0x38] sm:$0xff]
    %v181 = vld [vmem:[#allocation3 + $0x40] sm:$0xff]
    %v182 = vld [vmem:[#allocation3 + $0x48] sm:$0xff]
    %v183 = vld [vmem:[#allocation3 + $0x50] sm:$0xff]
    %v184 = vld [vmem:[#allocation3 + $0x58] sm:$0xff]
    %v185 = vld [vmem:[#allocation3 + $0x60] sm:$0xff]
    %v186 = vld [vmem:[#allocation3 + $0x68] sm:$0xff]
    %v187 = vld [vmem:[#allocation3 + $0x70] sm:$0xff]
    %v188 = vld [vmem:[#allocation3 + $0x78] sm:$0xff]
    %v189 = vld [vmem:[#allocation3 + $0x80] sm:$0xff]
    %v190 = vld [vmem:[#allocation3 + $0x88] sm:$0xff]
    %v191 = vld [vmem:[#allocation3 + $0x90] sm:$0xff]
    %v192 = vld [vmem:[#allocation3 + $0x98] sm:$0xff]
    %v193 = vld [vmem:[#allocation3 + $0xa0] sm:$0xff]
    %v194 = vld [vmem:[#allocation3 + $0xa8] sm:$0xff]
    %v195 = vld [vmem:[#allocation3 + $0xb0] sm:$0xff]
    %v196 = vld [vmem:[#allocation3 + $0xb8] sm:$0xff]
    %v197 = vld [vmem:[#allocation3 + $0xc0] sm:$0xff]
    %v198 = vld [vmem:[#allocation3 + $0xc8] sm:$0xff]
    %v199 = vld [vmem:[#allocation3 + $0xd0] sm:$0xff]
    %v200 = vld [vmem:[#allocation3 + $0xd8] sm:$0xff]
    %v201 = vld [vmem:[#allocation3 + $0xe0] sm:$0xff]
    %v202 = vld [vmem:[#allocation3 + $0xe8] sm:$0xff]
    %v203 = vld [vmem:[#allocation3 + $0xf0] sm:$0xff]
    %v204 = vld [vmem:[#allocation3 + $0xf8] sm:$0xff]
    %v205 = vld [vmem:[#allocation3 + $0x100] sm:$0xff]
    %v206 = vld [vmem:[#allocation3 + $0x108] sm:$0xff]
    %v207 = vld [vmem:[#allocation3 + $0x110] sm:$0xff]
    %v208 = vld [vmem:[#allocation3 + $0x118] sm:$0xff]
    %v209 = vld [vmem:[#allocation3 + $0x120] sm:$0xff]
    %v210 = vld [vmem:[#allocation3 + $0x128] sm:$0xff]
    %v211 = vld [vmem:[#allocation3 + $0x130] sm:$0xff]
    %v212 = vld [vmem:[#allocation3 + $0x138] sm:$0xff]
    %v213 = vld [vmem:[#allocation3 + $0x140] sm:$0xff]
    %v214 = vld [vmem:[#allocation3 + $0x148] sm:$0xff]
    %v215 = vld [vmem:[#allocation3 + $0x150] sm:$0xff]
    %v216 = vld [vmem:[#allocation3 + $0x158] sm:$0xff]
    %v217 = vld [vmem:[#allocation3 + $0x160] sm:$0xff]
    %v218 = vld [vmem:[#allocation3 + $0x168] sm:$0xff]
    %v219 = vld [vmem:[#allocation3 + $0x170] sm:$0xff]
    %v220 = vld [vmem:[#allocation3 + $0x178] sm:$0xff]
    %v221 = vld [vmem:[#allocation3 + $0x180] sm:$0xff]
    %v222 = vld [vmem:[#allocation3 + $0x188] sm:$0xff]
    %v223 = vld [vmem:[#allocation3 + $0x190] sm:$0xff]
    %v224 = vld [vmem:[#allocation3 + $0x198] sm:$0xff]
    %v225 = vld [vmem:[#allocation3 + $0x1a0] sm:$0xff]
    %v226 = vld [vmem:[#allocation3 + $0x1a8] sm:$0xff]
    %v227 = vld [vmem:[#allocation3 + $0x1b0] sm:$0xff]
    %v228 = vld [vmem:[#allocation3 + $0x1b8] sm:$0xff]
    %v229 = vld [vmem:[#allocation3 + $0x1c0] sm:$0xff]
    %v230 = vld [vmem:[#allocation3 + $0x1c8] sm:$0xff]
    %v231 = vld [vmem:[#allocation3 + $0x1d0] sm:$0xff]
    %v232 = vld [vmem:[#allocation3 + $0x1d8] sm:$0xff]
    %v233 = vld [vmem:[#allocation3 + $0x1e0] sm:$0xff]
    %v234 = vld [vmem:[#allocation3 + $0x1e8] sm:$0xff]
    %v235 = vld [vmem:[#allocation3 + $0x1f0] sm:$0xff]
    %v236 = vld [vmem:[#allocation3 + $0x1f8] sm:$0xff]
    %v237 = vld [vmem:[#allocation3 + $0x200] sm:$0xff]
    %v238 = vld [vmem:[#allocation3 + $0x208] sm:$0xff]
    %v239 = vld [vmem:[#allocation3 + $0x210] sm:$0xff]
    %v240 = vld [vmem:[#allocation3 + $0x218] sm:$0xff]
    %v241 = vld [vmem:[#allocation3 + $0x220] sm:$0xff]
    %v242 = vld [vmem:[#allocation3 + $0x228] sm:$0xff]
    %v243 = vld [vmem:[#allocation3 + $0x230] sm:$0xff]
    %v244 = vld [vmem:[#allocation3 + $0x238] sm:$0xff]
    %v245 = vld [vmem:[#allocation3 + $0x240] sm:$0xff]
    %v246 = vld [vmem:[#allocation3 + $0x248] sm:$0xff]
    %v247 = vld [vmem:[#allocation3 + $0x250] sm:$0xff]
    %v248 = vld [vmem:[#allocation3 + $0x258] sm:$0xff]
    %v249 = vld [vmem:[#allocation3 + $0x260] sm:$0xff]
    %v250 = vld [vmem:[#allocation3 + $0x268] sm:$0xff]
    %v251 = vld [vmem:[#allocation3 + $0x270] sm:$0xff]
    %v252 = vld [vmem:[#allocation3 + $0x278] sm:$0xff]
    %v253 = vld [vmem:[#allocation3 + $0x280] sm:$0xff]
    %v254 = vld [vmem:[#allocation3 + $0x288] sm:$0xff]
    %v255 = vld [vmem:[#allocation3 + $0x290] sm:$0xff]
    %v256 = vld [vmem:[#allocation3 + $0x298] sm:$0xff]
    %v257 = vld [vmem:[#allocation3 + $0x2a0] sm:$0xff]
    %v258 = vld [vmem:[#allocation3 + $0x2a8] sm:$0xff]
    %v259 = vld [vmem:[#allocation3 + $0x2b0] sm:$0xff]
    %v260 = vld [vmem:[#allocation3 + $0x2b8] sm:$0xff]
    %v261 = vld [vmem:[#allocation3 + $0x2c0] sm:$0xff]
    %v262 = vld [vmem:[#allocation3 + $0x2c8] sm:$0xff]
    %v263 = vld [vmem:[#allocation3 + $0x2d0] sm:$0xff]
    %v264 = vld [vmem:[#allocation3 + $0x2d8] sm:$0xff]
    %v265 = vld [vmem:[#allocation3 + $0x2e0] sm:$0xff]
    %v266 = vld [vmem:[#allocation3 + $0x2e8] sm:$0xff]
    %v267 = vld [vmem:[#allocation3 + $0x2f0] sm:$0xff]
    %v268 = vld [vmem:[#allocation3 + $0x2f8] sm:$0xff]
    %v269 = vld [vmem:[#allocation3 + $0x300] sm:$0xff]
    %v270 = vld [vmem:[#allocation3 + $0x308] sm:$0xff]
    %v271 = vld [vmem:[#allocation3 + $0x310] sm:$0xff]
    %v272 = vld [vmem:[#allocation3 + $0x318] sm:$0xff]
    %v273 = vld [vmem:[#allocation3 + $0x320] sm:$0xff]
    %v274 = vld [vmem:[#allocation3 + $0x328] sm:$0xff]
    %v275 = vld [vmem:[#allocation3 + $0x330] sm:$0xff]
    %v276 = vld [vmem:[#allocation3 + $0x338] sm:$0xff]
    %v277 = vld [vmem:[#allocation3 + $0x340] sm:$0xff]
    %v278 = vld [vmem:[#allocation3 + $0x348] sm:$0xff]
    %v279 = vld [vmem:[#allocation3 + $0x350] sm:$0xff]
    %v280 = vld [vmem:[#allocation3 + $0x358] sm:$0xff]
    %v281 = vld [vmem:[#allocation3 + $0x360] sm:$0xff]
    %v282 = vld [vmem:[#allocation3 + $0x368] sm:$0xff]
    %v283 = vld [vmem:[#allocation3 + $0x370] sm:$0xff]
    %v284 = vld [vmem:[#allocation3 + $0x378] sm:$0xff]
    %v285 = vld [vmem:[#allocation3 + $0x380] sm:$0xff]
    %v286 = vld [vmem:[#allocation3 + $0x388] sm:$0xff]
    %v287 = vld [vmem:[#allocation3 + $0x390] sm:$0xff]
    %v288 = vld [vmem:[#allocation3 + $0x398] sm:$0xff]
    %v289 = vld [vmem:[#allocation3 + $0x3a0] sm:$0xff]
    %v290 = vld [vmem:[#allocation3 + $0x3a8] sm:$0xff]
    %v291 = vld [vmem:[#allocation3 + $0x3b0] sm:$0xff]
    %v292 = vld [vmem:[#allocation3 + $0x3b8] sm:$0xff]
    %v293 = vld [vmem:[#allocation3 + $0x3c0] sm:$0xff]
    %v294 = vld [vmem:[#allocation3 + $0x3c8] sm:$0xff]
    %v295 = vld [vmem:[#allocation3 + $0x3d0] sm:$0xff]
    %v296 = vld [vmem:[#allocation3 + $0x3d8] sm:$0xff]
    %v297 = vld [vmem:[#allocation3 + $0x3e0] sm:$0xff]
    %v298 = vld [vmem:[#allocation3 + $0x3e8] sm:$0xff]
    %v299 = vld [vmem:[#allocation3 + $0x3f0] sm:$0xff]
    %v300 = vld [vmem:[#allocation3 + $0x3f8] sm:$0xff]
    %v301 = vld [vmem:[#allocation6] sm:$0xff]
    %v303 = vlaneseq
    %v304 = vshrl.u32 %v303, 7
    %v305 = vsub.s32 0, %v304
    %v306 = vrot.slane %v301, %v305
    %v307 = vlaneseq
    %v308 = vshrl.u32 %v307, 7
    %v309 = vsub.s32 1, %v308
    %v310 = vrot.slane %v301, %v309
    %v311 = vlaneseq
    %v312 = vshrl.u32 %v311, 7
    %v313 = vsub.s32 2, %v312
    %v314 = vrot.slane %v301, %v313
    %v315 = vlaneseq
    %v316 = vshrl.u32 %v315, 7
    %v317 = vsub.s32 3, %v316
    %v318 = vrot.slane %v301, %v317
    %v319 = vlaneseq
    %v320 = vshrl.u32 %v319, 7
    %v321 = vsub.s32 4, %v320
    %v322 = vrot.slane %v301, %v321
    %v323 = vlaneseq
    %v324 = vshrl.u32 %v323, 7
    %v325 = vsub.s32 5, %v324
    %v326 = vrot.slane %v301, %v325
    %v327 = vlaneseq
    %v328 = vshrl.u32 %v327, 7
    %v329 = vsub.s32 6, %v328
    %v330 = vrot.slane %v301, %v329
    %v331 = vlaneseq
    %v332 = vshrl.u32 %v331, 7
    %v333 = vsub.s32 7, %v332
    %v334 = vrot.slane %v301, %v333
    %v471 = vunpack.c.l.b16 %v173
    %v472 = vunpack.c.h.b16 %v173
    %v473 = vunpack.c.l.b16 %v174
    %v474 = vunpack.c.h.b16 %v174
    %v475 = vunpack.c.l.b16 %v175
    %v476 = vunpack.c.h.b16 %v175
    %v477 = vunpack.c.l.b16 %v176
    %v478 = vunpack.c.h.b16 %v176
    %v479 = vunpack.c.l.b16 %v177
    %v480 = vunpack.c.h.b16 %v177
    %v481 = vunpack.c.l.b16 %v178
    %v482 = vunpack.c.h.b16 %v178
    %v483 = vunpack.c.l.b16 %v179
    %v484 = vunpack.c.h.b16 %v179
    %v485 = vunpack.c.l.b16 %v180
    %v486 = vunpack.c.h.b16 %v180
    %v487 = vunpack.c.l.b16 %v181
    %v488 = vunpack.c.h.b16 %v181
    %v489 = vunpack.c.l.b16 %v182
    %v490 = vunpack.c.h.b16 %v182
    %v491 = vunpack.c.l.b16 %v183
    %v492 = vunpack.c.h.b16 %v183
    %v493 = vunpack.c.l.b16 %v184
    %v494 = vunpack.c.h.b16 %v184
    %v495 = vunpack.c.l.b16 %v185
    %v496 = vunpack.c.h.b16 %v185
    %v497 = vunpack.c.l.b16 %v186
    %v498 = vunpack.c.h.b16 %v186
    %v499 = vunpack.c.l.b16 %v187
    %v500 = vunpack.c.h.b16 %v187
    %v501 = vunpack.c.l.b16 %v188
    %v502 = vunpack.c.h.b16 %v188
    %v503 = vunpack.c.l.b16 %v189
    %v504 = vunpack.c.h.b16 %v189
    %v505 = vunpack.c.l.b16 %v190
    %v506 = vunpack.c.h.b16 %v190
    %v507 = vunpack.c.l.b16 %v191
    %v508 = vunpack.c.h.b16 %v191
    %v509 = vunpack.c.l.b16 %v192
    %v510 = vunpack.c.h.b16 %v192
    %v511 = vunpack.c.l.b16 %v193
    %v512 = vunpack.c.h.b16 %v193
    %v513 = vunpack.c.l.b16 %v194
    %v514 = vunpack.c.h.b16 %v194
    %v515 = vunpack.c.l.b16 %v195
    %v516 = vunpack.c.h.b16 %v195
    %v517 = vunpack.c.l.b16 %v196
    %v518 = vunpack.c.h.b16 %v196
    %v519 = vunpack.c.l.b16 %v197
    %v520 = vunpack.c.h.b16 %v197
    %v521 = vunpack.c.l.b16 %v198
    %v522 = vunpack.c.h.b16 %v198
    %v523 = vunpack.c.l.b16 %v199
    %v524 = vunpack.c.h.b16 %v199
    %v525 = vunpack.c.l.b16 %v200
    %v526 = vunpack.c.h.b16 %v200
    %v527 = vunpack.c.l.b16 %v201
    %v528 = vunpack.c.h.b16 %v201
    %v529 = vunpack.c.l.b16 %v202
    %v530 = vunpack.c.h.b16 %v202
    %v531 = vunpack.c.l.b16 %v203
    %v532 = vunpack.c.h.b16 %v203
    %v533 = vunpack.c.l.b16 %v204
    %v534 = vunpack.c.h.b16 %v204
    %v535 = vunpack.c.l.b16 %v205
    %v536 = vunpack.c.h.b16 %v205
    %v537 = vunpack.c.l.b16 %v206
    %v538 = vunpack.c.h.b16 %v206
    %v539 = vunpack.c.l.b16 %v207
    %v540 = vunpack.c.h.b16 %v207
    %v541 = vunpack.c.l.b16 %v208
    %v542 = vunpack.c.h.b16 %v208
    %v543 = vunpack.c.l.b16 %v209
    %v544 = vunpack.c.h.b16 %v209
    %v545 = vunpack.c.l.b16 %v210
    %v546 = vunpack.c.h.b16 %v210
    %v547 = vunpack.c.l.b16 %v211
    %v548 = vunpack.c.h.b16 %v211
    %v549 = vunpack.c.l.b16 %v212
    %v550 = vunpack.c.h.b16 %v212
    %v551 = vunpack.c.l.b16 %v213
    %v552 = vunpack.c.h.b16 %v213
    %v553 = vunpack.c.l.b16 %v214
    %v554 = vunpack.c.h.b16 %v214
    %v555 = vunpack.c.l.b16 %v215
    %v556 = vunpack.c.h.b16 %v215
    %v557 = vunpack.c.l.b16 %v216
    %v558 = vunpack.c.h.b16 %v216
    %v559 = vunpack.c.l.b16 %v217
    %v560 = vunpack.c.h.b16 %v217
    %v561 = vunpack.c.l.b16 %v218
    %v562 = vunpack.c.h.b16 %v218
    %v563 = vunpack.c.l.b16 %v219
    %v564 = vunpack.c.h.b16 %v219
    %v565 = vunpack.c.l.b16 %v220
    %v566 = vunpack.c.h.b16 %v220
    %v567 = vunpack.c.l.b16 %v221
    %v568 = vunpack.c.h.b16 %v221
    %v569 = vunpack.c.l.b16 %v222
    %v570 = vunpack.c.h.b16 %v222
    %v571 = vunpack.c.l.b16 %v223
    %v572 = vunpack.c.h.b16 %v223
    %v573 = vunpack.c.l.b16 %v224
    %v574 = vunpack.c.h.b16 %v224
    %v575 = vunpack.c.l.b16 %v225
    %v576 = vunpack.c.h.b16 %v225
    %v577 = vunpack.c.l.b16 %v226
    %v578 = vunpack.c.h.b16 %v226
    %v579 = vunpack.c.l.b16 %v227
    %v580 = vunpack.c.h.b16 %v227
    %v581 = vunpack.c.l.b16 %v228
    %v582 = vunpack.c.h.b16 %v228
    %v583 = vunpack.c.l.b16 %v229
    %v584 = vunpack.c.h.b16 %v229
    %v585 = vunpack.c.l.b16 %v230
    %v586 = vunpack.c.h.b16 %v230
    %v587 = vunpack.c.l.b16 %v231
    %v588 = vunpack.c.h.b16 %v231
    %v589 = vunpack.c.l.b16 %v232
    %v590 = vunpack.c.h.b16 %v232
    %v591 = vunpack.c.l.b16 %v233
    %v592 = vunpack.c.h.b16 %v233
    %v593 = vunpack.c.l.b16 %v234
    %v594 = vunpack.c.h.b16 %v234
    %v595 = vunpack.c.l.b16 %v235
    %v596 = vunpack.c.h.b16 %v235
    %v597 = vunpack.c.l.b16 %v236
    %v598 = vunpack.c.h.b16 %v236
    %v599 = vunpack.c.l.b16 %v237
    %v600 = vunpack.c.h.b16 %v237
    %v601 = vunpack.c.l.b16 %v238
    %v602 = vunpack.c.h.b16 %v238
    %v603 = vunpack.c.l.b16 %v239
    %v604 = vunpack.c.h.b16 %v239
    %v605 = vunpack.c.l.b16 %v240
    %v606 = vunpack.c.h.b16 %v240
    %v607 = vunpack.c.l.b16 %v241
    %v608 = vunpack.c.h.b16 %v241
    %v609 = vunpack.c.l.b16 %v242
    %v610 = vunpack.c.h.b16 %v242
    %v611 = vunpack.c.l.b16 %v243
    %v612 = vunpack.c.h.b16 %v243
    %v613 = vunpack.c.l.b16 %v244
    %v614 = vunpack.c.h.b16 %v244
    %v615 = vunpack.c.l.b16 %v245
    %v616 = vunpack.c.h.b16 %v245
    %v617 = vunpack.c.l.b16 %v246
    %v618 = vunpack.c.h.b16 %v246
    %v619 = vunpack.c.l.b16 %v247
    %v620 = vunpack.c.h.b16 %v247
    %v621 = vunpack.c.l.b16 %v248
    %v622 = vunpack.c.h.b16 %v248
    %v623 = vunpack.c.l.b16 %v249
    %v624 = vunpack.c.h.b16 %v249
    %v625 = vunpack.c.l.b16 %v250
    %v626 = vunpack.c.h.b16 %v250
    %v627 = vunpack.c.l.b16 %v251
    %v628 = vunpack.c.h.b16 %v251
    %v629 = vunpack.c.l.b16 %v252
    %v630 = vunpack.c.h.b16 %v252
    %v631 = vunpack.c.l.b16 %v253
    %v632 = vunpack.c.h.b16 %v253
    %v633 = vunpack.c.l.b16 %v254
    %v634 = vunpack.c.h.b16 %v254
    %v635 = vunpack.c.l.b16 %v255
    %v636 = vunpack.c.h.b16 %v255
    %v637 = vunpack.c.l.b16 %v256
    %v638 = vunpack.c.h.b16 %v256
    %v639 = vunpack.c.l.b16 %v257
    %v640 = vunpack.c.h.b16 %v257
    %v641 = vunpack.c.l.b16 %v258
    %v642 = vunpack.c.h.b16 %v258
    %v643 = vunpack.c.l.b16 %v259
    %v644 = vunpack.c.h.b16 %v259
    %v645 = vunpack.c.l.b16 %v260
    %v646 = vunpack.c.h.b16 %v260
    %v647 = vunpack.c.l.b16 %v261
    %v648 = vunpack.c.h.b16 %v261
    %v649 = vunpack.c.l.b16 %v262
    %v650 = vunpack.c.h.b16 %v262
    %v651 = vunpack.c.l.b16 %v263
    %v652 = vunpack.c.h.b16 %v263
    %v653 = vunpack.c.l.b16 %v264
    %v654 = vunpack.c.h.b16 %v264
    %v655 = vunpack.c.l.b16 %v265
    %v656 = vunpack.c.h.b16 %v265
    %v657 = vunpack.c.l.b16 %v266
    %v658 = vunpack.c.h.b16 %v266
    %v659 = vunpack.c.l.b16 %v267
    %v660 = vunpack.c.h.b16 %v267
    %v661 = vunpack.c.l.b16 %v268
    %v662 = vunpack.c.h.b16 %v268
    %v663 = vunpack.c.l.b16 %v269
    %v664 = vunpack.c.h.b16 %v269
    %v665 = vunpack.c.l.b16 %v270
    %v666 = vunpack.c.h.b16 %v270
    %v667 = vunpack.c.l.b16 %v271
    %v668 = vunpack.c.h.b16 %v271
    %v669 = vunpack.c.l.b16 %v272
    %v670 = vunpack.c.h.b16 %v272
    %v671 = vunpack.c.l.b16 %v273
    %v672 = vunpack.c.h.b16 %v273
    %v673 = vunpack.c.l.b16 %v274
    %v674 = vunpack.c.h.b16 %v274
    %v675 = vunpack.c.l.b16 %v275
    %v676 = vunpack.c.h.b16 %v275
    %v677 = vunpack.c.l.b16 %v276
    %v678 = vunpack.c.h.b16 %v276
    %v679 = vunpack.c.l.b16 %v277
    %v680 = vunpack.c.h.b16 %v277
    %v681 = vunpack.c.l.b16 %v278
    %v682 = vunpack.c.h.b16 %v278
    %v683 = vunpack.c.l.b16 %v279
    %v684 = vunpack.c.h.b16 %v279
    %v685 = vunpack.c.l.b16 %v280
    %v686 = vunpack.c.h.b16 %v280
    %v687 = vunpack.c.l.b16 %v281
    %v688 = vunpack.c.h.b16 %v281
    %v689 = vunpack.c.l.b16 %v282
    %v690 = vunpack.c.h.b16 %v282
    %v691 = vunpack.c.l.b16 %v283
    %v692 = vunpack.c.h.b16 %v283
    %v693 = vunpack.c.l.b16 %v284
    %v694 = vunpack.c.h.b16 %v284
    %v695 = vunpack.c.l.b16 %v285
    %v696 = vunpack.c.h.b16 %v285
    %v697 = vunpack.c.l.b16 %v286
    %v698 = vunpack.c.h.b16 %v286
    %v699 = vunpack.c.l.b16 %v287
    %v700 = vunpack.c.h.b16 %v287
    %v701 = vunpack.c.l.b16 %v288
    %v702 = vunpack.c.h.b16 %v288
    %v703 = vunpack.c.l.b16 %v289
    %v704 = vunpack.c.h.b16 %v289
    %v705 = vunpack.c.l.b16 %v290
    %v706 = vunpack.c.h.b16 %v290
    %v707 = vunpack.c.l.b16 %v291
    %v708 = vunpack.c.h.b16 %v291
    %v709 = vunpack.c.l.b16 %v292
    %v710 = vunpack.c.h.b16 %v292
    %v711 = vunpack.c.l.b16 %v293
    %v712 = vunpack.c.h.b16 %v293
    %v713 = vunpack.c.l.b16 %v294
    %v714 = vunpack.c.h.b16 %v294
    %v715 = vunpack.c.l.b16 %v295
    %v716 = vunpack.c.h.b16 %v295
    %v717 = vunpack.c.l.b16 %v296
    %v718 = vunpack.c.h.b16 %v296
    %v719 = vunpack.c.l.b16 %v297
    %v720 = vunpack.c.h.b16 %v297
    %v721 = vunpack.c.l.b16 %v298
    %v722 = vunpack.c.h.b16 %v298
    %v723 = vunpack.c.l.b16 %v299
    %v724 = vunpack.c.h.b16 %v299
    %v725 = vunpack.c.l.b16 %v300
    %v726 = vunpack.c.h.b16 %v300
    %v727 = vpack.c.b16 %v479, %v471
    %v728 = vpack.c.b16 %v480, %v472
    %v729 = vpack.c.b16 %v481, %v473
    %v730 = vpack.c.b16 %v482, %v474
    %v731 = vpack.c.b16 %v483, %v475
    %v732 = vpack.c.b16 %v484, %v476
    %v733 = vpack.c.b16 %v485, %v477
    %v734 = vpack.c.b16 %v486, %v478
    %v735 = vpack.c.b16 %v495, %v487
    %v736 = vpack.c.b16 %v496, %v488
    %v737 = vpack.c.b16 %v497, %v489
    %v738 = vpack.c.b16 %v498, %v490
    %v739 = vpack.c.b16 %v499, %v491
    %v740 = vpack.c.b16 %v500, %v492
    %v741 = vpack.c.b16 %v501, %v493
    %v742 = vpack.c.b16 %v502, %v494
    %v743 = vpack.c.b16 %v511, %v503
    %v744 = vpack.c.b16 %v512, %v504
    %v745 = vpack.c.b16 %v513, %v505
    %v746 = vpack.c.b16 %v514, %v506
    %v747 = vpack.c.b16 %v515, %v507
    %v748 = vpack.c.b16 %v516, %v508
    %v749 = vpack.c.b16 %v517, %v509
    %v750 = vpack.c.b16 %v518, %v510
    %v751 = vpack.c.b16 %v527, %v519
    %v752 = vpack.c.b16 %v528, %v520
    %v753 = vpack.c.b16 %v529, %v521
    %v754 = vpack.c.b16 %v530, %v522
    %v755 = vpack.c.b16 %v531, %v523
    %v756 = vpack.c.b16 %v532, %v524
    %v757 = vpack.c.b16 %v533, %v525
    %v758 = vpack.c.b16 %v534, %v526
    %v759 = vpack.c.b16 %v543, %v535
    %v760 = vpack.c.b16 %v544, %v536
    %v761 = vpack.c.b16 %v545, %v537
    %v762 = vpack.c.b16 %v546, %v538
    %v763 = vpack.c.b16 %v547, %v539
    %v764 = vpack.c.b16 %v548, %v540
    %v765 = vpack.c.b16 %v549, %v541
    %v766 = vpack.c.b16 %v550, %v542
    %v767 = vpack.c.b16 %v559, %v551
    %v768 = vpack.c.b16 %v560, %v552
    %v769 = vpack.c.b16 %v561, %v553
    %v770 = vpack.c.b16 %v562, %v554
    %v771 = vpack.c.b16 %v563, %v555
    %v772 = vpack.c.b16 %v564, %v556
    %v773 = vpack.c.b16 %v565, %v557
    %v774 = vpack.c.b16 %v566, %v558
    %v775 = vpack.c.b16 %v575, %v567
    %v776 = vpack.c.b16 %v576, %v568
    %v777 = vpack.c.b16 %v577, %v569
    %v778 = vpack.c.b16 %v578, %v570
    %v779 = vpack.c.b16 %v579, %v571
    %v780 = vpack.c.b16 %v580, %v572
    %v781 = vpack.c.b16 %v581, %v573
    %v782 = vpack.c.b16 %v582, %v574
    %v783 = vpack.c.b16 %v591, %v583
    %v784 = vpack.c.b16 %v592, %v584
    %v785 = vpack.c.b16 %v593, %v585
    %v786 = vpack.c.b16 %v594, %v586
    %v787 = vpack.c.b16 %v595, %v587
    %v788 = vpack.c.b16 %v596, %v588
    %v789 = vpack.c.b16 %v597, %v589
    %v790 = vpack.c.b16 %v598, %v590
    %v791 = vpack.c.b16 %v607, %v599
    %v792 = vpack.c.b16 %v608, %v600
    %v793 = vpack.c.b16 %v609, %v601
    %v794 = vpack.c.b16 %v610, %v602
    %v795 = vpack.c.b16 %v611, %v603
    %v796 = vpack.c.b16 %v612, %v604
    %v797 = vpack.c.b16 %v613, %v605
    %v798 = vpack.c.b16 %v614, %v606
    %v799 = vpack.c.b16 %v623, %v615
    %v800 = vpack.c.b16 %v624, %v616
    %v801 = vpack.c.b16 %v625, %v617
    %v802 = vpack.c.b16 %v626, %v618
    %v803 = vpack.c.b16 %v627, %v619
    %v804 = vpack.c.b16 %v628, %v620
    %v805 = vpack.c.b16 %v629, %v621
    %v806 = vpack.c.b16 %v630, %v622
    %v807 = vpack.c.b16 %v639, %v631
    %v808 = vpack.c.b16 %v640, %v632
    %v809 = vpack.c.b16 %v641, %v633
    %v810 = vpack.c.b16 %v642, %v634
    %v811 = vpack.c.b16 %v643, %v635
    %v812 = vpack.c.b16 %v644, %v636
    %v813 = vpack.c.b16 %v645, %v637
    %v814 = vpack.c.b16 %v646, %v638
    %v815 = vpack.c.b16 %v655, %v647
    %v816 = vpack.c.b16 %v656, %v648
    %v817 = vpack.c.b16 %v657, %v649
    %v818 = vpack.c.b16 %v658, %v650
    %v819 = vpack.c.b16 %v659, %v651
    %v820 = vpack.c.b16 %v660, %v652
    %v821 = vpack.c.b16 %v661, %v653
    %v822 = vpack.c.b16 %v662, %v654
    %v823 = vpack.c.b16 %v671, %v663
    %v824 = vpack.c.b16 %v672, %v664
    %v825 = vpack.c.b16 %v673, %v665
    %v826 = vpack.c.b16 %v674, %v666
    %v827 = vpack.c.b16 %v675, %v667
    %v828 = vpack.c.b16 %v676, %v668
    %v829 = vpack.c.b16 %v677, %v669
    %v830 = vpack.c.b16 %v678, %v670
    %v831 = vpack.c.b16 %v687, %v679
    %v832 = vpack.c.b16 %v688, %v680
    %v833 = vpack.c.b16 %v689, %v681
    %v834 = vpack.c.b16 %v690, %v682
    %v835 = vpack.c.b16 %v691, %v683
    %v836 = vpack.c.b16 %v692, %v684
    %v837 = vpack.c.b16 %v693, %v685
    %v838 = vpack.c.b16 %v694, %v686
    %v839 = vpack.c.b16 %v703, %v695
    %v840 = vpack.c.b16 %v704, %v696
    %v841 = vpack.c.b16 %v705, %v697
    %v842 = vpack.c.b16 %v706, %v698
    %v843 = vpack.c.b16 %v707, %v699
    %v844 = vpack.c.b16 %v708, %v700
    %v845 = vpack.c.b16 %v709, %v701
    %v846 = vpack.c.b16 %v710, %v702
    %v847 = vpack.c.b16 %v719, %v711
    %v848 = vpack.c.b16 %v720, %v712
    %v849 = vpack.c.b16 %v721, %v713
    %v850 = vpack.c.b16 %v722, %v714
    %v851 = vpack.c.b16 %v723, %v715
    %v852 = vpack.c.b16 %v724, %v716
    %v853 = vpack.c.b16 %v725, %v717
    %v854 = vpack.c.b16 %v726, %v718
    %983 = vmatprep.subr.bf16.mxu0 %v728
    %984 = vmatpush1.bf16.msra.mxu0 %v727
    %985 = vmatprep.subr.bf16.mxu0 %v736
    %986 = vmatpush1.bf16.msra.mxu0 %v735
    %987 = vmatprep.subr.bf16.mxu0 %v744
    %988 = vmatpush1.bf16.msra.mxu0 %v743
    %989 = vmatprep.subr.bf16.mxu0 %v752
    %990 = vmatpush1.bf16.msra.mxu0 %v751
    %991 = vmatprep.subr.bf16.mxu0 %v760
    %992 = vmatpush1.bf16.msra.mxu0 %v759
    %993 = vmatprep.subr.bf16.mxu0 %v768
    %994 = vmatpush1.bf16.msra.mxu0 %v767
    %995 = vmatprep.subr.bf16.mxu0 %v776
    %996 = vmatpush1.bf16.msra.mxu0 %v775
    %997 = vmatprep.subr.bf16.mxu0 %v784
    %998 = vmatpush1.bf16.msra.mxu0 %v783
    %999 = vmatprep.subr.bf16.mxu0 %v792
    %1000 = vmatpush1.bf16.msra.mxu0 %v791
    %1001 = vmatprep.subr.bf16.mxu0 %v800
    %1002 = vmatpush1.bf16.msra.mxu0 %v799
    %1003 = vmatprep.subr.bf16.mxu0 %v808
    %1004 = vmatpush1.bf16.msra.mxu0 %v807
    %1005 = vmatprep.subr.bf16.mxu0 %v816
    %1006 = vmatpush1.bf16.msra.mxu0 %v815
    %1007 = vmatprep.subr.bf16.mxu0 %v824
    %1008 = vmatpush1.bf16.msra.mxu0 %v823
    %1009 = vmatprep.subr.bf16.mxu0 %v832
    %1010 = vmatpush1.bf16.msra.mxu0 %v831
    %1011 = vmatprep.subr.bf16.mxu0 %v840
    %1012 = vmatpush1.bf16.msra.mxu0 %v839
    %1013 = vmatprep.subr.bf16.mxu0 %v848
    %1014 = vmatpush1.bf16.msra.mxu0 %v847
    %1015 = vmatprep.mubr.bf16.mxu0 %v172
    %1016 = vmatmul.mubr.bf16.gmra.mrb[0].mxu0 %v171
    %v1017 = vpop.f32.mrb[0].mxu0
    %v1018 = vadd.f32 %v306, %v1017
    %v1019 = vpop.f32.mrb[0].mxu0
    %v1020 = vadd.f32 %v310, %v1019
    %v1021 = vpop.f32.mrb[0].mxu0
    %v1022 = vadd.f32 %v306, %v1021
    %v1023 = vpop.f32.mrb[0].mxu0
    %v1024 = vadd.f32 %v310, %v1023
    %1025 = vdwg.mxu0
    %1026 = vmatprep.subr.bf16.mxu0 %v730
    %1027 = vmatpush1.bf16.msra.mxu0 %v729
    %1028 = vmatprep.subr.bf16.mxu0 %v738
    %1029 = vmatpush1.bf16.msra.mxu0 %v737
    %1030 = vmatprep.subr.bf16.mxu0 %v746
    %1031 = vmatpush1.bf16.msra.mxu0 %v745
    %1032 = vmatprep.subr.bf16.mxu0 %v754
    %1033 = vmatpush1.bf16.msra.mxu0 %v753
    %1034 = vmatprep.subr.bf16.mxu0 %v762
    %1035 = vmatpush1.bf16.msra.mxu0 %v761
    %1036 = vmatprep.subr.bf16.mxu0 %v770
    %1037 = vmatpush1.bf16.msra.mxu0 %v769
    %1038 = vmatprep.subr.bf16.mxu0 %v778
    %1039 = vmatpush1.bf16.msra.mxu0 %v777
    %1040 = vmatprep.subr.bf16.mxu0 %v786
    %1041 = vmatpush1.bf16.msra.mxu0 %v785
    %1042 = vmatprep.subr.bf16.mxu0 %v794
    %1043 = vmatpush1.bf16.msra.mxu0 %v793
    %1044 = vmatprep.subr.bf16.mxu0 %v802
    %1045 = vmatpush1.bf16.msra.mxu0 %v801
    %1046 = vmatprep.subr.bf16.mxu0 %v810
    %1047 = vmatpush1.bf16.msra.mxu0 %v809
    %1048 = vmatprep.subr.bf16.mxu0 %v818
    %1049 = vmatpush1.bf16.msra.mxu0 %v817
    %1050 = vmatprep.subr.bf16.mxu0 %v826
    %1051 = vmatpush1.bf16.msra.mxu0 %v825
    %1052 = vmatprep.subr.bf16.mxu0 %v834
    %1053 = vmatpush1.bf16.msra.mxu0 %v833
    %1054 = vmatprep.subr.bf16.mxu0 %v842
    %1055 = vmatpush1.bf16.msra.mxu0 %v841
    %1056 = vmatprep.subr.bf16.mxu0 %v850
    %1057 = vmatpush1.bf16.msra.mxu0 %v849
    %1058 = vmatprep.mubr.bf16.mxu0 %v172
    %1059 = vmatmul.mubr.bf16.gmra.mrb[0].mxu0 %v171
    %v1060 = vpop.f32.mrb[0].mxu0
    %v1061 = vadd.f32 %v314, %v1060
    %v1062 = vpop.f32.mrb[0].mxu0
    %v1063 = vadd.f32 %v318, %v1062
    %v1064 = vpop.f32.mrb[0].mxu0
    %v1065 = vadd.f32 %v314, %v1064
    %v1066 = vpop.f32.mrb[0].mxu0
    %v1067 = vadd.f32 %v318, %v1066
    %1068 = vdwg.mxu0
    %1069 = vmatprep.subr.bf16.mxu0 %v732
    %1070 = vmatpush1.bf16.msra.mxu0 %v731
    %1071 = vmatprep.subr.bf16.mxu0 %v740
    %1072 = vmatpush1.bf16.msra.mxu0 %v739
    %1073 = vmatprep.subr.bf16.mxu0 %v748
    %1074 = vmatpush1.bf16.msra.mxu0 %v747
    %1075 = vmatprep.subr.bf16.mxu0 %v756
    %1076 = vmatpush1.bf16.msra.mxu0 %v755
    %1077 = vmatprep.subr.bf16.mxu0 %v764
    %1078 = vmatpush1.bf16.msra.mxu0 %v763
    %1079 = vmatprep.subr.bf16.mxu0 %v772
    %1080 = vmatpush1.bf16.msra.mxu0 %v771
    %1081 = vmatprep.subr.bf16.mxu0 %v780
    %1082 = vmatpush1.bf16.msra.mxu0 %v779
    %1083 = vmatprep.subr.bf16.mxu0 %v788
    %1084 = vmatpush1.bf16.msra.mxu0 %v787
    %1085 = vmatprep.subr.bf16.mxu0 %v796
    %1086 = vmatpush1.bf16.msra.mxu0 %v795
    %1087 = vmatprep.subr.bf16.mxu0 %v804
    %1088 = vmatpush1.bf16.msra.mxu0 %v803
    %1089 = vmatprep.subr.bf16.mxu0 %v812
    %1090 = vmatpush1.bf16.msra.mxu0 %v811
    %1091 = vmatprep.subr.bf16.mxu0 %v820
    %1092 = vmatpush1.bf16.msra.mxu0 %v819
    %1093 = vmatprep.subr.bf16.mxu0 %v828
    %1094 = vmatpush1.bf16.msra.mxu0 %v827
    %1095 = vmatprep.subr.bf16.mxu0 %v836
    %1096 = vmatpush1.bf16.msra.mxu0 %v835
    %1097 = vmatprep.subr.bf16.mxu0 %v844
    %1098 = vmatpush1.bf16.msra.mxu0 %v843
    %1099 = vmatprep.subr.bf16.mxu0 %v852
    %1100 = vmatpush1.bf16.msra.mxu0 %v851
    %1101 = vmatprep.mubr.bf16.mxu0 %v172
    %1102 = vmatmul.mubr.bf16.gmra.mrb[0].mxu0 %v171
    %v1103 = vpop.f32.mrb[0].mxu0
    %v1104 = vadd.f32 %v322, %v1103
    %v1105 = vpop.f32.mrb[0].mxu0
    %v1106 = vadd.f32 %v326, %v1105
    %v1107 = vpop.f32.mrb[0].mxu0
    %v1108 = vadd.f32 %v322, %v1107
    %v1109 = vpop.f32.mrb[0].mxu0
    %v1110 = vadd.f32 %v326, %v1109
    %1111 = vdwg.mxu0
    %1112 = vmatprep.subr.bf16.mxu0 %v734
    %1113 = vmatpush1.bf16.msra.mxu0 %v733
    %1114 = vmatprep.subr.bf16.mxu0 %v742
    %1115 = vmatpush1.bf16.msra.mxu0 %v741
    %1116 = vmatprep.subr.bf16.mxu0 %v750
    %1117 = vmatpush1.bf16.msra.mxu0 %v749
    %1118 = vmatprep.subr.bf16.mxu0 %v758
    %1119 = vmatpush1.bf16.msra.mxu0 %v757
    %1120 = vmatprep.subr.bf16.mxu0 %v766
    %1121 = vmatpush1.bf16.msra.mxu0 %v765
    %1122 = vmatprep.subr.bf16.mxu0 %v774
    %1123 = vmatpush1.bf16.msra.mxu0 %v773
    %1124 = vmatprep.subr.bf16.mxu0 %v782
    %1125 = vmatpush1.bf16.msra.mxu0 %v781
    %1126 = vmatprep.subr.bf16.mxu0 %v790
    %1127 = vmatpush1.bf16.msra.mxu0 %v789
    %1128 = vmatprep.subr.bf16.mxu0 %v798
    %1129 = vmatpush1.bf16.msra.mxu0 %v797
    %1130 = vmatprep.subr.bf16.mxu0 %v806
    %1131 = vmatpush1.bf16.msra.mxu0 %v805
    %1132 = vmatprep.subr.bf16.mxu0 %v814
    %1133 = vmatpush1.bf16.msra.mxu0 %v813
    %1134 = vmatprep.subr.bf16.mxu0 %v822
    %1135 = vmatpush1.bf16.msra.mxu0 %v821
    %1136 = vmatprep.subr.bf16.mxu0 %v830
    %1137 = vmatpush1.bf16.msra.mxu0 %v829
    %1138 = vmatprep.subr.bf16.mxu0 %v838
    %1139 = vmatpush1.bf16.msra.mxu0 %v837
    %1140 = vmatprep.subr.bf16.mxu0 %v846
    %1141 = vmatpush1.bf16.msra.mxu0 %v845
    %1142 = vmatprep.subr.bf16.mxu0 %v854
    %1143 = vmatpush1.bf16.msra.mxu0 %v853
    %1144 = vmatprep.mubr.bf16.mxu0 %v172
    %1145 = vmatmul.mubr.bf16.gmra.mrb[0].mxu0 %v171
    %v1146 = vpop.f32.mrb[0].mxu0
    %v1147 = vadd.f32 %v330, %v1146
    %v1148 = vpop.f32.mrb[0].mxu0
    %v1149 = vadd.f32 %v334, %v1148
    %v1150 = vpop.f32.mrb[0].mxu0
    %v1151 = vadd.f32 %v330, %v1150
    %v1152 = vpop.f32.mrb[0].mxu0
    %v1153 = vadd.f32 %v334, %v1152
    %1154 = vdwg.mxu0
    %v1155 = vadd.f32 %v1018, %v1020
    %v1156 = vadd.f32 %v1155, %v1061
    %v1157 = vadd.f32 %v1156, %v1063
    %v1158 = vadd.f32 %v1157, %v1104
    %v1159 = vadd.f32 %v1158, %v1106
    %v1160 = vadd.f32 %v1159, %v1147
    %v1161 = vadd.f32 %v1160, %v1149
    %1162 = vadd.xlane.f32.xlu0 %v1161
    %v1163 = vpop.xlane.xlu0 %1162
    %v1164 = vadd.f32 %v1022, %v1024
    %v1165 = vadd.f32 %v1164, %v1065
    %v1166 = vadd.f32 %v1165, %v1067
    %v1167 = vadd.f32 %v1166, %v1108
    %v1168 = vadd.f32 %v1167, %v1110
    %v1169 = vadd.f32 %v1168, %v1151
    %v1170 = vadd.f32 %v1169, %v1153
    %1171 = vadd.xlane.f32.xlu0 %v1170
    %v1172 = vpop.xlane.xlu0 %1171
    %v1173 = vmul.f32 %v1163, 0.0009765625
    %v1174 = vmul.f32 %v1172, 0.0009765625
    %v1175 = vmul.f32 %v1018, %v1018
    %v1176 = vmul.f32 %v1020, %v1020
    %v1177 = vmul.f32 %v1061, %v1061
    %v1178 = vmul.f32 %v1063, %v1063
    %v1179 = vmul.f32 %v1104, %v1104
    %v1180 = vmul.f32 %v1106, %v1106
    %v1181 = vmul.f32 %v1147, %v1147
    %v1182 = vmul.f32 %v1149, %v1149
    %v1183 = vmul.f32 %v1022, %v1022
    %v1184 = vmul.f32 %v1024, %v1024
    %v1185 = vmul.f32 %v1065, %v1065
    %v1186 = vmul.f32 %v1067, %v1067
    %v1187 = vmul.f32 %v1108, %v1108
    %v1188 = vmul.f32 %v1110, %v1110
    %v1189 = vmul.f32 %v1151, %v1151
    %v1190 = vmul.f32 %v1153, %v1153
    %v1191 = vadd.f32 %v1175, %v1176
    %v1192 = vadd.f32 %v1191, %v1177
    %v1193 = vadd.f32 %v1192, %v1178
    %v1194 = vadd.f32 %v1193, %v1179
    %v1195 = vadd.f32 %v1194, %v1180
    %v1196 = vadd.f32 %v1195, %v1181
    %v1197 = vadd.f32 %v1196, %v1182
    %1198 = vadd.xlane.f32.xlu0 %v1197
    %v1199 = vpop.xlane.xlu0 %1198
    %v1200 = vadd.f32 %v1183, %v1184
    %v1201 = vadd.f32 %v1200, %v1185
    %v1202 = vadd.f32 %v1201, %v1186
    %v1203 = vadd.f32 %v1202, %v1187
    %v1204 = vadd.f32 %v1203, %v1188
    %v1205 = vadd.f32 %v1204, %v1189
    %v1206 = vadd.f32 %v1205, %v1190
    %1207 = vadd.xlane.f32.xlu0 %v1206
    %v1208 = vpop.xlane.xlu0 %1207
    %v1209 = vmul.f32 %v1199, 0.0009765625
    %v1210 = vmul.f32 %v1208, 0.0009765625
    %v1211 = vmul.f32 %v1173, %v1173
    %v1212 = vmul.f32 %v1174, %v1174
    %v1213 = vsub.f32 %v1209, %v1211
    %v1214 = vsub.f32 %v1210, %v1212
    %v1215 = vmax.f32 %v1213, 0.0
    %v1216 = vmax.f32 %v1214, 0.0
    %v1217 = vsub.f32 %v1018, %v1173
    %v1218 = vsub.f32 %v1020, %v1173
    %v1219 = vsub.f32 %v1061, %v1173
    %v1220 = vsub.f32 %v1063, %v1173
    %v1221 = vsub.f32 %v1104, %v1173
    %v1222 = vsub.f32 %v1106, %v1173
    %v1223 = vsub.f32 %v1147, %v1173
    %v1224 = vsub.f32 %v1149, %v1173
    %v1225 = vsub.f32 %v1022, %v1174
    %v1226 = vsub.f32 %v1024, %v1174
    %v1227 = vsub.f32 %v1065, %v1174
    %v1228 = vsub.f32 %v1067, %v1174
    %v1229 = vsub.f32 %v1108, %v1174
    %v1230 = vsub.f32 %v1110, %v1174
    %v1231 = vsub.f32 %v1151, %v1174
    %v1232 = vsub.f32 %v1153, %v1174
    %v1233 = vadd.f32 %v1215, 1e-05
    %v1234 = vadd.f32 %v1216, 1e-05
    %v1235 = vrsqrt.pop %v1233
    %v1236 = vrsqrt.pop %v1234
    %v1237 = vmul.f32 %v1217, %v1235
    %v1238 = vmul.f32 %v1218, %v1235
    %v1239 = vmul.f32 %v1219, %v1235
    %v1240 = vmul.f32 %v1220, %v1235
    %v1241 = vmul.f32 %v1221, %v1235
    %v1242 = vmul.f32 %v1222, %v1235
    %v1243 = vmul.f32 %v1223, %v1235
    %v1244 = vmul.f32 %v1224, %v1235
    %v1245 = vmul.f32 %v1225, %v1236
    %v1246 = vmul.f32 %v1226, %v1236
    %v1247 = vmul.f32 %v1227, %v1236
    %v1248 = vmul.f32 %v1228, %v1236
    %v1249 = vmul.f32 %v1229, %v1236
    %v1250 = vmul.f32 %v1230, %v1236
    %v1251 = vmul.f32 %v1231, %v1236
    %v1252 = vmul.f32 %v1232, %v1236
    %v1253 = vld [vmem:[%s3] sm:$0xff]
    %v1255 = vlaneseq
    %v1256 = vshrl.u32 %v1255, 7
    %v1257 = vsub.s32 0, %v1256
    %v1258 = vrot.slane %v1253, %v1257
    %v1259 = vlaneseq
    %v1260 = vshrl.u32 %v1259, 7
    %v1261 = vsub.s32 1, %v1260
    %v1262 = vrot.slane %v1253, %v1261
    %v1263 = vlaneseq
    %v1264 = vshrl.u32 %v1263, 7
    %v1265 = vsub.s32 2, %v1264
    %v1266 = vrot.slane %v1253, %v1265
    %v1267 = vlaneseq
    %v1268 = vshrl.u32 %v1267, 7
    %v1269 = vsub.s32 3, %v1268
    %v1270 = vrot.slane %v1253, %v1269
    %v1271 = vlaneseq
    %v1272 = vshrl.u32 %v1271, 7
    %v1273 = vsub.s32 4, %v1272
    %v1274 = vrot.slane %v1253, %v1273
    %v1275 = vlaneseq
    %v1276 = vshrl.u32 %v1275, 7
    %v1277 = vsub.s32 5, %v1276
    %v1278 = vrot.slane %v1253, %v1277
    %v1279 = vlaneseq
    %v1280 = vshrl.u32 %v1279, 7
    %v1281 = vsub.s32 6, %v1280
    %v1282 = vrot.slane %v1253, %v1281
    %v1283 = vlaneseq
    %v1284 = vshrl.u32 %v1283, 7
    %v1285 = vsub.s32 7, %v1284
    %v1286 = vrot.slane %v1253, %v1285
    %v1295 = vmul.f32 %v1237, %v1258
    %v1296 = vmul.f32 %v1238, %v1262
    %v1297 = vmul.f32 %v1239, %v1266
    %v1298 = vmul.f32 %v1240, %v1270
    %v1299 = vmul.f32 %v1241, %v1274
    %v1300 = vmul.f32 %v1242, %v1278
    %v1301 = vmul.f32 %v1243, %v1282
    %v1302 = vmul.f32 %v1244, %v1286
    %v1303 = vmul.f32 %v1245, %v1258
    %v1304 = vmul.f32 %v1246, %v1262
    %v1305 = vmul.f32 %v1247, %v1266
    %v1306 = vmul.f32 %v1248, %v1270
    %v1307 = vmul.f32 %v1249, %v1274
    %v1308 = vmul.f32 %v1250, %v1278
    %v1309 = vmul.f32 %v1251, %v1282
    %v1310 = vmul.f32 %v1252, %v1286
    %v1311 = vld [vmem:[%s4] sm:$0xff]
    %v1313 = vlaneseq
    %v1314 = vshrl.u32 %v1313, 7
    %v1315 = vsub.s32 0, %v1314
    %v1316 = vrot.slane %v1311, %v1315
    %v1317 = vlaneseq
    %v1318 = vshrl.u32 %v1317, 7
    %v1319 = vsub.s32 1, %v1318
    %v1320 = vrot.slane %v1311, %v1319
    %v1321 = vlaneseq
    %v1322 = vshrl.u32 %v1321, 7
    %v1323 = vsub.s32 2, %v1322
    %v1324 = vrot.slane %v1311, %v1323
    %v1325 = vlaneseq
    %v1326 = vshrl.u32 %v1325, 7
    %v1327 = vsub.s32 3, %v1326
    %v1328 = vrot.slane %v1311, %v1327
    %v1329 = vlaneseq
    %v1330 = vshrl.u32 %v1329, 7
    %v1331 = vsub.s32 4, %v1330
    %v1332 = vrot.slane %v1311, %v1331
    %v1333 = vlaneseq
    %v1334 = vshrl.u32 %v1333, 7
    %v1335 = vsub.s32 5, %v1334
    %v1336 = vrot.slane %v1311, %v1335
    %v1337 = vlaneseq
    %v1338 = vshrl.u32 %v1337, 7
    %v1339 = vsub.s32 6, %v1338
    %v1340 = vrot.slane %v1311, %v1339
    %v1341 = vlaneseq
    %v1342 = vshrl.u32 %v1341, 7
    %v1343 = vsub.s32 7, %v1342
    %v1344 = vrot.slane %v1311, %v1343
    %v1353 = vadd.f32 %v1295, %v1316
    %v1354 = vadd.f32 %v1296, %v1320
    %v1355 = vadd.f32 %v1297, %v1324
    %v1356 = vadd.f32 %v1298, %v1328
    %v1357 = vadd.f32 %v1299, %v1332
    %v1358 = vadd.f32 %v1300, %v1336
    %v1359 = vadd.f32 %v1301, %v1340
    %v1360 = vadd.f32 %v1302, %v1344
    %v1361 = vadd.f32 %v1303, %v1316
    %v1362 = vadd.f32 %v1304, %v1320
    %v1363 = vadd.f32 %v1305, %v1324
    %v1364 = vadd.f32 %v1306, %v1328
    %v1365 = vadd.f32 %v1307, %v1332
    %v1366 = vadd.f32 %v1308, %v1336
    %v1367 = vadd.f32 %v1309, %v1340
    %v1368 = vadd.f32 %v1310, %v1344
    %v1369 = vmax.f32 %v1353, 0.0
    %v1370 = vmax.f32 %v1354, 0.0
    %v1371 = vmax.f32 %v1355, 0.0
    %v1372 = vmax.f32 %v1356, 0.0
    %v1373 = vmax.f32 %v1357, 0.0
    %v1374 = vmax.f32 %v1358, 0.0
    %v1375 = vmax.f32 %v1359, 0.0
    %v1376 = vmax.f32 %v1360, 0.0
    %v1377 = vmax.f32 %v1361, 0.0
    %v1378 = vmax.f32 %v1362, 0.0
    %v1379 = vmax.f32 %v1363, 0.0
    %v1380 = vmax.f32 %v1364, 0.0
    %v1381 = vmax.f32 %v1365, 0.0
    %v1382 = vmax.f32 %v1366, 0.0
    %v1383 = vmax.f32 %v1367, 0.0
    %v1384 = vmax.f32 %v1368, 0.0
    %v1385 = vpack.c.bf16 %v1377, %v1369
    %v1386 = vpack.c.bf16 %v1378, %v1370
    %v1387 = vpack.c.bf16 %v1379, %v1371
    %v1388 = vpack.c.bf16 %v1380, %v1372
    %v1389 = vpack.c.bf16 %v1381, %v1373
    %v1390 = vpack.c.bf16 %v1382, %v1374
    %v1391 = vpack.c.bf16 %v1383, %v1375
    %v1392 = vpack.c.bf16 %v1384, %v1376
    %v1393 = vld [vmem:[#allocation8] sm:$0xff]
    %v1394 = vld [vmem:[#allocation8 + $0x8] sm:$0xff]
    %v1395 = vld [vmem:[#allocation8 + $0x10] sm:$0xff]
    %v1396 = vld [vmem:[#allocation8 + $0x18] sm:$0xff]
    %v1397 = vld [vmem:[#allocation8 + $0x20] sm:$0xff]
    %v1398 = vld [vmem:[#allocation8 + $0x28] sm:$0xff]
    %v1399 = vld [vmem:[#allocation8 + $0x30] sm:$0xff]
    %v1400 = vld [vmem:[#allocation8 + $0x38] sm:$0xff]
    %v1401 = vld [vmem:[#allocation8 + $0x40] sm:$0xff]
    %v1402 = vld [vmem:[#allocation8 + $0x48] sm:$0xff]
    %v1403 = vld [vmem:[#allocation8 + $0x50] sm:$0xff]
    %v1404 = vld [vmem:[#allocation8 + $0x58] sm:$0xff]
    %v1405 = vld [vmem:[#allocation8 + $0x60] sm:$0xff]
    %v1406 = vld [vmem:[#allocation8 + $0x68] sm:$0xff]
    %v1407 = vld [vmem:[#allocation8 + $0x70] sm:$0xff]
    %v1408 = vld [vmem:[#allocation8 + $0x78] sm:$0xff]
    %v1409 = vld [vmem:[#allocation8 + $0x80] sm:$0xff]
    %v1410 = vld [vmem:[#allocation8 + $0x88] sm:$0xff]
    %v1411 = vld [vmem:[#allocation8 + $0x90] sm:$0xff]
    %v1412 = vld [vmem:[#allocation8 + $0x98] sm:$0xff]
    %v1413 = vld [vmem:[#allocation8 + $0xa0] sm:$0xff]
    %v1414 = vld [vmem:[#allocation8 + $0xa8] sm:$0xff]
    %v1415 = vld [vmem:[#allocation8 + $0xb0] sm:$0xff]
    %v1416 = vld [vmem:[#allocation8 + $0xb8] sm:$0xff]
    %v1417 = vld [vmem:[#allocation8 + $0xc0] sm:$0xff]
    %v1418 = vld [vmem:[#allocation8 + $0xc8] sm:$0xff]
    %v1419 = vld [vmem:[#allocation8 + $0xd0] sm:$0xff]
    %v1420 = vld [vmem:[#allocation8 + $0xd8] sm:$0xff]
    %v1421 = vld [vmem:[#allocation8 + $0xe0] sm:$0xff]
    %v1422 = vld [vmem:[#allocation8 + $0xe8] sm:$0xff]
    %v1423 = vld [vmem:[#allocation8 + $0xf0] sm:$0xff]
    %v1424 = vld [vmem:[#allocation8 + $0xf8] sm:$0xff]
    %v1425 = vld [vmem:[#allocation8 + $0x100] sm:$0xff]
    %v1426 = vld [vmem:[#allocation8 + $0x108] sm:$0xff]
    %v1427 = vld [vmem:[#allocation8 + $0x110] sm:$0xff]
    %v1428 = vld [vmem:[#allocation8 + $0x118] sm:$0xff]
    %v1429 = vld [vmem:[#allocation8 + $0x120] sm:$0xff]
    %v1430 = vld [vmem:[#allocation8 + $0x128] sm:$0xff]
    %v1431 = vld [vmem:[#allocation8 + $0x130] sm:$0xff]
    %v1432 = vld [vmem:[#allocation8 + $0x138] sm:$0xff]
    %v1433 = vld [vmem:[#allocation8 + $0x140] sm:$0xff]
    %v1434 = vld [vmem:[#allocation8 + $0x148] sm:$0xff]
    %v1435 = vld [vmem:[#allocation8 + $0x150] sm:$0xff]
    %v1436 = vld [vmem:[#allocation8 + $0x158] sm:$0xff]
    %v1437 = vld [vmem:[#allocation8 + $0x160] sm:$0xff]
    %v1438 = vld [vmem:[#allocation8 + $0x168] sm:$0xff]
    %v1439 = vld [vmem:[#allocation8 + $0x170] sm:$0xff]
    %v1440 = vld [vmem:[#allocation8 + $0x178] sm:$0xff]
    %v1441 = vld [vmem:[#allocation8 + $0x180] sm:$0xff]
    %v1442 = vld [vmem:[#allocation8 + $0x188] sm:$0xff]
    %v1443 = vld [vmem:[#allocation8 + $0x190] sm:$0xff]
    %v1444 = vld [vmem:[#allocation8 + $0x198] sm:$0xff]
    %v1445 = vld [vmem:[#allocation8 + $0x1a0] sm:$0xff]
    %v1446 = vld [vmem:[#allocation8 + $0x1a8] sm:$0xff]
    %v1447 = vld [vmem:[#allocation8 + $0x1b0] sm:$0xff]
    %v1448 = vld [vmem:[#allocation8 + $0x1b8] sm:$0xff]
    %v1449 = vld [vmem:[#allocation8 + $0x1c0] sm:$0xff]
    %v1450 = vld [vmem:[#allocation8 + $0x1c8] sm:$0xff]
    %v1451 = vld [vmem:[#allocation8 + $0x1d0] sm:$0xff]
    %v1452 = vld [vmem:[#allocation8 + $0x1d8] sm:$0xff]
    %v1453 = vld [vmem:[#allocation8 + $0x1e0] sm:$0xff]
    %v1454 = vld [vmem:[#allocation8 + $0x1e8] sm:$0xff]
    %v1455 = vld [vmem:[#allocation8 + $0x1f0] sm:$0xff]
    %v1456 = vld [vmem:[#allocation8 + $0x1f8] sm:$0xff]
    %v1457 = vld [vmem:[#allocation8 + $0x200] sm:$0xff]
    %v1458 = vld [vmem:[#allocation8 + $0x208] sm:$0xff]
    %v1459 = vld [vmem:[#allocation8 + $0x210] sm:$0xff]
    %v1460 = vld [vmem:[#allocation8 + $0x218] sm:$0xff]
    %v1461 = vld [vmem:[#allocation8 + $0x220] sm:$0xff]
    %v1462 = vld [vmem:[#allocation8 + $0x228] sm:$0xff]
    %v1463 = vld [vmem:[#allocation8 + $0x230] sm:$0xff]
    %v1464 = vld [vmem:[#allocation8 + $0x238] sm:$0xff]
    %v1465 = vld [vmem:[#allocation8 + $0x240] sm:$0xff]
    %v1466 = vld [vmem:[#allocation8 + $0x248] sm:$0xff]
    %v1467 = vld [vmem:[#allocation8 + $0x250] sm:$0xff]
    %v1468 = vld [vmem:[#allocation8 + $0x258] sm:$0xff]
    %v1469 = vld [vmem:[#allocation8 + $0x260] sm:$0xff]
    %v1470 = vld [vmem:[#allocation8 + $0x268] sm:$0xff]
    %v1471 = vld [vmem:[#allocation8 + $0x270] sm:$0xff]
    %v1472 = vld [vmem:[#allocation8 + $0x278] sm:$0xff]
    %v1473 = vld [vmem:[#allocation8 + $0x280] sm:$0xff]
    %v1474 = vld [vmem:[#allocation8 + $0x288] sm:$0xff]
    %v1475 = vld [vmem:[#allocation8 + $0x290] sm:$0xff]
    %v1476 = vld [vmem:[#allocation8 + $0x298] sm:$0xff]
    %v1477 = vld [vmem:[#allocation8 + $0x2a0] sm:$0xff]
    %v1478 = vld [vmem:[#allocation8 + $0x2a8] sm:$0xff]
    %v1479 = vld [vmem:[#allocation8 + $0x2b0] sm:$0xff]
    %v1480 = vld [vmem:[#allocation8 + $0x2b8] sm:$0xff]
    %v1481 = vld [vmem:[#allocation8 + $0x2c0] sm:$0xff]
    %v1482 = vld [vmem:[#allocation8 + $0x2c8] sm:$0xff]
    %v1483 = vld [vmem:[#allocation8 + $0x2d0] sm:$0xff]
    %v1484 = vld [vmem:[#allocation8 + $0x2d8] sm:$0xff]
    %v1485 = vld [vmem:[#allocation8 + $0x2e0] sm:$0xff]
    %v1486 = vld [vmem:[#allocation8 + $0x2e8] sm:$0xff]
    %v1487 = vld [vmem:[#allocation8 + $0x2f0] sm:$0xff]
    %v1488 = vld [vmem:[#allocation8 + $0x2f8] sm:$0xff]
    %v1489 = vld [vmem:[#allocation8 + $0x300] sm:$0xff]
    %v1490 = vld [vmem:[#allocation8 + $0x308] sm:$0xff]
    %v1491 = vld [vmem:[#allocation8 + $0x310] sm:$0xff]
    %v1492 = vld [vmem:[#allocation8 + $0x318] sm:$0xff]
    %v1493 = vld [vmem:[#allocation8 + $0x320] sm:$0xff]
    %v1494 = vld [vmem:[#allocation8 + $0x328] sm:$0xff]
    %v1495 = vld [vmem:[#allocation8 + $0x330] sm:$0xff]
    %v1496 = vld [vmem:[#allocation8 + $0x338] sm:$0xff]
    %v1497 = vld [vmem:[#allocation8 + $0x340] sm:$0xff]
    %v1498 = vld [vmem:[#allocation8 + $0x348] sm:$0xff]
    %v1499 = vld [vmem:[#allocation8 + $0x350] sm:$0xff]
    %v1500 = vld [vmem:[#allocation8 + $0x358] sm:$0xff]
    %v1501 = vld [vmem:[#allocation8 + $0x360] sm:$0xff]
    %v1502 = vld [vmem:[#allocation8 + $0x368] sm:$0xff]
    %v1503 = vld [vmem:[#allocation8 + $0x370] sm:$0xff]
    %v1504 = vld [vmem:[#allocation8 + $0x378] sm:$0xff]
    %v1505 = vld [vmem:[#allocation8 + $0x380] sm:$0xff]
    %v1506 = vld [vmem:[#allocation8 + $0x388] sm:$0xff]
    %v1507 = vld [vmem:[#allocation8 + $0x390] sm:$0xff]
    %v1508 = vld [vmem:[#allocation8 + $0x398] sm:$0xff]
    %v1509 = vld [vmem:[#allocation8 + $0x3a0] sm:$0xff]
    %v1510 = vld [vmem:[#allocation8 + $0x3a8] sm:$0xff]
    %v1511 = vld [vmem:[#allocation8 + $0x3b0] sm:$0xff]
    %v1512 = vld [vmem:[#allocation8 + $0x3b8] sm:$0xff]
    %v1513 = vld [vmem:[#allocation8 + $0x3c0] sm:$0xff]
    %v1514 = vld [vmem:[#allocation8 + $0x3c8] sm:$0xff]
    %v1515 = vld [vmem:[#allocation8 + $0x3d0] sm:$0xff]
    %v1516 = vld [vmem:[#allocation8 + $0x3d8] sm:$0xff]
    %v1517 = vld [vmem:[#allocation8 + $0x3e0] sm:$0xff]
    %v1518 = vld [vmem:[#allocation8 + $0x3e8] sm:$0xff]
    %v1519 = vld [vmem:[#allocation8 + $0x3f0] sm:$0xff]
    %v1520 = vld [vmem:[#allocation8 + $0x3f8] sm:$0xff]
    %v1521 = vld [vmem:[#allocation8 + $0x400] sm:$0xff]
    %v1522 = vld [vmem:[#allocation8 + $0x408] sm:$0xff]
    %v1523 = vld [vmem:[#allocation8 + $0x410] sm:$0xff]
    %v1524 = vld [vmem:[#allocation8 + $0x418] sm:$0xff]
    %v1525 = vld [vmem:[#allocation8 + $0x420] sm:$0xff]
    %v1526 = vld [vmem:[#allocation8 + $0x428] sm:$0xff]
    %v1527 = vld [vmem:[#allocation8 + $0x430] sm:$0xff]
    %v1528 = vld [vmem:[#allocation8 + $0x438] sm:$0xff]
    %v1529 = vld [vmem:[#allocation8 + $0x440] sm:$0xff]
    %v1530 = vld [vmem:[#allocation8 + $0x448] sm:$0xff]
    %v1531 = vld [vmem:[#allocation8 + $0x450] sm:$0xff]
    %v1532 = vld [vmem:[#allocation8 + $0x458] sm:$0xff]
    %v1533 = vld [vmem:[#allocation8 + $0x460] sm:$0xff]
    %v1534 = vld [vmem:[#allocation8 + $0x468] sm:$0xff]
    %v1535 = vld [vmem:[#allocation8 + $0x470] sm:$0xff]
    %v1536 = vld [vmem:[#allocation8 + $0x478] sm:$0xff]
    %v1537 = vld [vmem:[#allocation8 + $0x480] sm:$0xff]
    %v1538 = vld [vmem:[#allocation8 + $0x488] sm:$0xff]
    %v1539 = vld [vmem:[#allocation8 + $0x490] sm:$0xff]
    %v1540 = vld [vmem:[#allocation8 + $0x498] sm:$0xff]
    %v1541 = vld [vmem:[#allocation8 + $0x4a0] sm:$0xff]
    %v1542 = vld [vmem:[#allocation8 + $0x4a8] sm:$0xff]
    %v1543 = vld [vmem:[#allocation8 + $0x4b0] sm:$0xff]
    %v1544 = vld [vmem:[#allocation8 + $0x4b8] sm:$0xff]
    %v1545 = vld [vmem:[#allocation8 + $0x4c0] sm:$0xff]
    %v1546 = vld [vmem:[#allocation8 + $0x4c8] sm:$0xff]
    %v1547 = vld [vmem:[#allocation8 + $0x4d0] sm:$0xff]
    %v1548 = vld [vmem:[#allocation8 + $0x4d8] sm:$0xff]
    %v1549 = vld [vmem:[#allocation8 + $0x4e0] sm:$0xff]
    %v1550 = vld [vmem:[#allocation8 + $0x4e8] sm:$0xff]
    %v1551 = vld [vmem:[#allocation8 + $0x4f0] sm:$0xff]
    %v1552 = vld [vmem:[#allocation8 + $0x4f8] sm:$0xff]
    %v1553 = vld [vmem:[#allocation8 + $0x500] sm:$0xff]
    %v1554 = vld [vmem:[#allocation8 + $0x508] sm:$0xff]
    %v1555 = vld [vmem:[#allocation8 + $0x510] sm:$0xff]
    %v1556 = vld [vmem:[#allocation8 + $0x518] sm:$0xff]
    %v1557 = vld [vmem:[#allocation8 + $0x520] sm:$0xff]
    %v1558 = vld [vmem:[#allocation8 + $0x528] sm:$0xff]
    %v1559 = vld [vmem:[#allocation8 + $0x530] sm:$0xff]
    %v1560 = vld [vmem:[#allocation8 + $0x538] sm:$0xff]
    %v1561 = vld [vmem:[#allocation8 + $0x540] sm:$0xff]
    %v1562 = vld [vmem:[#allocation8 + $0x548] sm:$0xff]
    %v1563 = vld [vmem:[#allocation8 + $0x550] sm:$0xff]
    %v1564 = vld [vmem:[#allocation8 + $0x558] sm:$0xff]
    %v1565 = vld [vmem:[#allocation8 + $0x560] sm:$0xff]
    %v1566 = vld [vmem:[#allocation8 + $0x568] sm:$0xff]
    %v1567 = vld [vmem:[#allocation8 + $0x570] sm:$0xff]
    %v1568 = vld [vmem:[#allocation8 + $0x578] sm:$0xff]
    %v1569 = vld [vmem:[#allocation8 + $0x580] sm:$0xff]
    %v1570 = vld [vmem:[#allocation8 + $0x588] sm:$0xff]
    %v1571 = vld [vmem:[#allocation8 + $0x590] sm:$0xff]
    %v1572 = vld [vmem:[#allocation8 + $0x598] sm:$0xff]
    %v1573 = vld [vmem:[#allocation8 + $0x5a0] sm:$0xff]
    %v1574 = vld [vmem:[#allocation8 + $0x5a8] sm:$0xff]
    %v1575 = vld [vmem:[#allocation8 + $0x5b0] sm:$0xff]
    %v1576 = vld [vmem:[#allocation8 + $0x5b8] sm:$0xff]
    %v1577 = vld [vmem:[#allocation8 + $0x5c0] sm:$0xff]
    %v1578 = vld [vmem:[#allocation8 + $0x5c8] sm:$0xff]
    %v1579 = vld [vmem:[#allocation8 + $0x5d0] sm:$0xff]
    %v1580 = vld [vmem:[#allocation8 + $0x5d8] sm:$0xff]
    %v1581 = vld [vmem:[#allocation8 + $0x5e0] sm:$0xff]
    %v1582 = vld [vmem:[#allocation8 + $0x5e8] sm:$0xff]
    %v1583 = vld [vmem:[#allocation8 + $0x5f0] sm:$0xff]
    %v1584 = vld [vmem:[#allocation8 + $0x5f8] sm:$0xff]
    %v1585 = vld [vmem:[#allocation8 + $0x600] sm:$0xff]
    %v1586 = vld [vmem:[#allocation8 + $0x608] sm:$0xff]
    %v1587 = vld [vmem:[#allocation8 + $0x610] sm:$0xff]
    %v1588 = vld [vmem:[#allocation8 + $0x618] sm:$0xff]
    %v1589 = vld [vmem:[#allocation8 + $0x620] sm:$0xff]
    %v1590 = vld [vmem:[#allocation8 + $0x628] sm:$0xff]
    %v1591 = vld [vmem:[#allocation8 + $0x630] sm:$0xff]
    %v1592 = vld [vmem:[#allocation8 + $0x638] sm:$0xff]
    %v1593 = vld [vmem:[#allocation8 + $0x640] sm:$0xff]
    %v1594 = vld [vmem:[#allocation8 + $0x648] sm:$0xff]
    %v1595 = vld [vmem:[#allocation8 + $0x650] sm:$0xff]
    %v1596 = vld [vmem:[#allocation8 + $0x658] sm:$0xff]
    %v1597 = vld [vmem:[#allocation8 + $0x660] sm:$0xff]
    %v1598 = vld [vmem:[#allocation8 + $0x668] sm:$0xff]
    %v1599 = vld [vmem:[#allocation8 + $0x670] sm:$0xff]
    %v1600 = vld [vmem:[#allocation8 + $0x678] sm:$0xff]
    %v1601 = vld [vmem:[#allocation8 + $0x680] sm:$0xff]
    %v1602 = vld [vmem:[#allocation8 + $0x688] sm:$0xff]
    %v1603 = vld [vmem:[#allocation8 + $0x690] sm:$0xff]
    %v1604 = vld [vmem:[#allocation8 + $0x698] sm:$0xff]
    %v1605 = vld [vmem:[#allocation8 + $0x6a0] sm:$0xff]
    %v1606 = vld [vmem:[#allocation8 + $0x6a8] sm:$0xff]
    %v1607 = vld [vmem:[#allocation8 + $0x6b0] sm:$0xff]
    %v1608 = vld [vmem:[#allocation8 + $0x6b8] sm:$0xff]
    %v1609 = vld [vmem:[#allocation8 + $0x6c0] sm:$0xff]
    %v1610 = vld [vmem:[#allocation8 + $0x6c8] sm:$0xff]
    %v1611 = vld [vmem:[#allocation8 + $0x6d0] sm:$0xff]
    %v1612 = vld [vmem:[#allocation8 + $0x6d8] sm:$0xff]
    %v1613 = vld [vmem:[#allocation8 + $0x6e0] sm:$0xff]
    %v1614 = vld [vmem:[#allocation8 + $0x6e8] sm:$0xff]
    %v1615 = vld [vmem:[#allocation8 + $0x6f0] sm:$0xff]
    %v1616 = vld [vmem:[#allocation8 + $0x6f8] sm:$0xff]
    %v1617 = vld [vmem:[#allocation8 + $0x700] sm:$0xff]
    %v1618 = vld [vmem:[#allocation8 + $0x708] sm:$0xff]
    %v1619 = vld [vmem:[#allocation8 + $0x710] sm:$0xff]
    %v1620 = vld [vmem:[#allocation8 + $0x718] sm:$0xff]
    %v1621 = vld [vmem:[#allocation8 + $0x720] sm:$0xff]
    %v1622 = vld [vmem:[#allocation8 + $0x728] sm:$0xff]
    %v1623 = vld [vmem:[#allocation8 + $0x730] sm:$0xff]
    %v1624 = vld [vmem:[#allocation8 + $0x738] sm:$0xff]
    %v1625 = vld [vmem:[#allocation8 + $0x740] sm:$0xff]
    %v1626 = vld [vmem:[#allocation8 + $0x748] sm:$0xff]
    %v1627 = vld [vmem:[#allocation8 + $0x750] sm:$0xff]
    %v1628 = vld [vmem:[#allocation8 + $0x758] sm:$0xff]
    %v1629 = vld [vmem:[#allocation8 + $0x760] sm:$0xff]
    %v1630 = vld [vmem:[#allocation8 + $0x768] sm:$0xff]
    %v1631 = vld [vmem:[#allocation8 + $0x770] sm:$0xff]
    %v1632 = vld [vmem:[#allocation8 + $0x778] sm:$0xff]
    %v1633 = vld [vmem:[#allocation8 + $0x780] sm:$0xff]
    %v1634 = vld [vmem:[#allocation8 + $0x788] sm:$0xff]
    %v1635 = vld [vmem:[#allocation8 + $0x790] sm:$0xff]
    %v1636 = vld [vmem:[#allocation8 + $0x798] sm:$0xff]
    %v1637 = vld [vmem:[#allocation8 + $0x7a0] sm:$0xff]
    %v1638 = vld [vmem:[#allocation8 + $0x7a8] sm:$0xff]
    %v1639 = vld [vmem:[#allocation8 + $0x7b0] sm:$0xff]
    %v1640 = vld [vmem:[#allocation8 + $0x7b8] sm:$0xff]
    %v1641 = vld [vmem:[#allocation8 + $0x7c0] sm:$0xff]
    %v1642 = vld [vmem:[#allocation8 + $0x7c8] sm:$0xff]
    %v1643 = vld [vmem:[#allocation8 + $0x7d0] sm:$0xff]
    %v1644 = vld [vmem:[#allocation8 + $0x7d8] sm:$0xff]
    %v1645 = vld [vmem:[#allocation8 + $0x7e0] sm:$0xff]
    %v1646 = vld [vmem:[#allocation8 + $0x7e8] sm:$0xff]
    %v1647 = vld [vmem:[#allocation8 + $0x7f0] sm:$0xff]
    %v1648 = vld [vmem:[#allocation8 + $0x7f8] sm:$0xff]
    %v1649 = vld [vmem:[#allocation9] sm:$0xf]
    %v1651 = vlaneseq
    %v1652 = vshrl.u32 %v1651, 7
    %v1653 = vsub.s32 0, %v1652
    %v1654 = vrot.slane %v1649, %v1653
    %v1655 = vlaneseq
    %v1656 = vshrl.u32 %v1655, 7
    %v1657 = vsub.s32 1, %v1656
    %v1658 = vrot.slane %v1649, %v1657
    %v1659 = vlaneseq
    %v1660 = vshrl.u32 %v1659, 7
    %v1661 = vsub.s32 2, %v1660
    %v1662 = vrot.slane %v1649, %v1661
    %v1663 = vlaneseq
    %v1664 = vshrl.u32 %v1663, 7
    %v1665 = vsub.s32 3, %v1664
    %v1666 = vrot.slane %v1649, %v1665
    %v1927 = vunpack.c.l.b16 %v1393
    %v1928 = vunpack.c.h.b16 %v1393
    %v1929 = vunpack.c.l.b16 %v1394
    %v1930 = vunpack.c.h.b16 %v1394
    %v1931 = vunpack.c.l.b16 %v1395
    %v1932 = vunpack.c.h.b16 %v1395
    %v1933 = vunpack.c.l.b16 %v1396
    %v1934 = vunpack.c.h.b16 %v1396
    %v1935 = vunpack.c.l.b16 %v1397
    %v1936 = vunpack.c.h.b16 %v1397
    %v1937 = vunpack.c.l.b16 %v1398
    %v1938 = vunpack.c.h.b16 %v1398
    %v1939 = vunpack.c.l.b16 %v1399
    %v1940 = vunpack.c.h.b16 %v1399
    %v1941 = vunpack.c.l.b16 %v1400
    %v1942 = vunpack.c.h.b16 %v1400
    %v1943 = vunpack.c.l.b16 %v1401
    %v1944 = vunpack.c.h.b16 %v1401
    %v1945 = vunpack.c.l.b16 %v1402
    %v1946 = vunpack.c.h.b16 %v1402
    %v1947 = vunpack.c.l.b16 %v1403
    %v1948 = vunpack.c.h.b16 %v1403
    %v1949 = vunpack.c.l.b16 %v1404
    %v1950 = vunpack.c.h.b16 %v1404
    %v1951 = vunpack.c.l.b16 %v1405
    %v1952 = vunpack.c.h.b16 %v1405
    %v1953 = vunpack.c.l.b16 %v1406
    %v1954 = vunpack.c.h.b16 %v1406
    %v1955 = vunpack.c.l.b16 %v1407
    %v1956 = vunpack.c.h.b16 %v1407
    %v1957 = vunpack.c.l.b16 %v1408
    %v1958 = vunpack.c.h.b16 %v1408
    %v1959 = vunpack.c.l.b16 %v1409
    %v1960 = vunpack.c.h.b16 %v1409
    %v1961 = vunpack.c.l.b16 %v1410
    %v1962 = vunpack.c.h.b16 %v1410
    %v1963 = vunpack.c.l.b16 %v1411
    %v1964 = vunpack.c.h.b16 %v1411
    %v1965 = vunpack.c.l.b16 %v1412
    %v1966 = vunpack.c.h.b16 %v1412
    %v1967 = vunpack.c.l.b16 %v1413
    %v1968 = vunpack.c.h.b16 %v1413
    %v1969 = vunpack.c.l.b16 %v1414
    %v1970 = vunpack.c.h.b16 %v1414
    %v1971 = vunpack.c.l.b16 %v1415
    %v1972 = vunpack.c.h.b16 %v1415
    %v1973 = vunpack.c.l.b16 %v1416
    %v1974 = vunpack.c.h.b16 %v1416
    %v1975 = vunpack.c.l.b16 %v1417
    %v1976 = vunpack.c.h.b16 %v1417
    %v1977 = vunpack.c.l.b16 %v1418
    %v1978 = vunpack.c.h.b16 %v1418
    %v1979 = vunpack.c.l.b16 %v1419
    %v1980 = vunpack.c.h.b16 %v1419
    %v1981 = vunpack.c.l.b16 %v1420
    %v1982 = vunpack.c.h.b16 %v1420
    %v1983 = vunpack.c.l.b16 %v1421
    %v1984 = vunpack.c.h.b16 %v1421
    %v1985 = vunpack.c.l.b16 %v1422
    %v1986 = vunpack.c.h.b16 %v1422
    %v1987 = vunpack.c.l.b16 %v1423
    %v1988 = vunpack.c.h.b16 %v1423
    %v1989 = vunpack.c.l.b16 %v1424
    %v1990 = vunpack.c.h.b16 %v1424
    %v1991 = vunpack.c.l.b16 %v1425
    %v1992 = vunpack.c.h.b16 %v1425
    %v1993 = vunpack.c.l.b16 %v1426
    %v1994 = vunpack.c.h.b16 %v1426
    %v1995 = vunpack.c.l.b16 %v1427
    %v1996 = vunpack.c.h.b16 %v1427
    %v1997 = vunpack.c.l.b16 %v1428
    %v1998 = vunpack.c.h.b16 %v1428
    %v1999 = vunpack.c.l.b16 %v1429
    %v2000 = vunpack.c.h.b16 %v1429
    %v2001 = vunpack.c.l.b16 %v1430
    %v2002 = vunpack.c.h.b16 %v1430
    %v2003 = vunpack.c.l.b16 %v1431
    %v2004 = vunpack.c.h.b16 %v1431
    %v2005 = vunpack.c.l.b16 %v1432
    %v2006 = vunpack.c.h.b16 %v1432
    %v2007 = vunpack.c.l.b16 %v1433
    %v2008 = vunpack.c.h.b16 %v1433
    %v2009 = vunpack.c.l.b16 %v1434
    %v2010 = vunpack.c.h.b16 %v1434
    %v2011 = vunpack.c.l.b16 %v1435
    %v2012 = vunpack.c.h.b16 %v1435
    %v2013 = vunpack.c.l.b16 %v1436
    %v2014 = vunpack.c.h.b16 %v1436
    %v2015 = vunpack.c.l.b16 %v1437
    %v2016 = vunpack.c.h.b16 %v1437
    %v2017 = vunpack.c.l.b16 %v1438
    %v2018 = vunpack.c.h.b16 %v1438
    %v2019 = vunpack.c.l.b16 %v1439
    %v2020 = vunpack.c.h.b16 %v1439
    %v2021 = vunpack.c.l.b16 %v1440
    %v2022 = vunpack.c.h.b16 %v1440
    %v2023 = vunpack.c.l.b16 %v1441
    %v2024 = vunpack.c.h.b16 %v1441
    %v2025 = vunpack.c.l.b16 %v1442
    %v2026 = vunpack.c.h.b16 %v1442
    %v2027 = vunpack.c.l.b16 %v1443
    %v2028 = vunpack.c.h.b16 %v1443
    %v2029 = vunpack.c.l.b16 %v1444
    %v2030 = vunpack.c.h.b16 %v1444
    %v2031 = vunpack.c.l.b16 %v1445
    %v2032 = vunpack.c.h.b16 %v1445
    %v2033 = vunpack.c.l.b16 %v1446
    %v2034 = vunpack.c.h.b16 %v1446
    %v2035 = vunpack.c.l.b16 %v1447
    %v2036 = vunpack.c.h.b16 %v1447
    %v2037 = vunpack.c.l.b16 %v1448
    %v2038 = vunpack.c.h.b16 %v1448
    %v2039 = vunpack.c.l.b16 %v1449
    %v2040 = vunpack.c.h.b16 %v1449
    %v2041 = vunpack.c.l.b16 %v1450
    %v2042 = vunpack.c.h.b16 %v1450
    %v2043 = vunpack.c.l.b16 %v1451
    %v2044 = vunpack.c.h.b16 %v1451
    %v2045 = vunpack.c.l.b16 %v1452
    %v2046 = vunpack.c.h.b16 %v1452
    %v2047 = vunpack.c.l.b16 %v1453
    %v2048 = vunpack.c.h.b16 %v1453
    %v2049 = vunpack.c.l.b16 %v1454
    %v2050 = vunpack.c.h.b16 %v1454
    %v2051 = vunpack.c.l.b16 %v1455
    %v2052 = vunpack.c.h.b16 %v1455
    %v2053 = vunpack.c.l.b16 %v1456
    %v2054 = vunpack.c.h.b16 %v1456
    %v2055 = vunpack.c.l.b16 %v1457
    %v2056 = vunpack.c.h.b16 %v1457
    %v2057 = vunpack.c.l.b16 %v1458
    %v2058 = vunpack.c.h.b16 %v1458
    %v2059 = vunpack.c.l.b16 %v1459
    %v2060 = vunpack.c.h.b16 %v1459
    %v2061 = vunpack.c.l.b16 %v1460
    %v2062 = vunpack.c.h.b16 %v1460
    %v2063 = vunpack.c.l.b16 %v1461
    %v2064 = vunpack.c.h.b16 %v1461
    %v2065 = vunpack.c.l.b16 %v1462
    %v2066 = vunpack.c.h.b16 %v1462
    %v2067 = vunpack.c.l.b16 %v1463
    %v2068 = vunpack.c.h.b16 %v1463
    %v2069 = vunpack.c.l.b16 %v1464
    %v2070 = vunpack.c.h.b16 %v1464
    %v2071 = vunpack.c.l.b16 %v1465
    %v2072 = vunpack.c.h.b16 %v1465
    %v2073 = vunpack.c.l.b16 %v1466
    %v2074 = vunpack.c.h.b16 %v1466
    %v2075 = vunpack.c.l.b16 %v1467
    %v2076 = vunpack.c.h.b16 %v1467
    %v2077 = vunpack.c.l.b16 %v1468
    %v2078 = vunpack.c.h.b16 %v1468
    %v2079 = vunpack.c.l.b16 %v1469
    %v2080 = vunpack.c.h.b16 %v1469
    %v2081 = vunpack.c.l.b16 %v1470
    %v2082 = vunpack.c.h.b16 %v1470
    %v2083 = vunpack.c.l.b16 %v1471
    %v2084 = vunpack.c.h.b16 %v1471
    %v2085 = vunpack.c.l.b16 %v1472
    %v2086 = vunpack.c.h.b16 %v1472
    %v2087 = vunpack.c.l.b16 %v1473
    %v2088 = vunpack.c.h.b16 %v1473
    %v2089 = vunpack.c.l.b16 %v1474
    %v2090 = vunpack.c.h.b16 %v1474
    %v2091 = vunpack.c.l.b16 %v1475
    %v2092 = vunpack.c.h.b16 %v1475
    %v2093 = vunpack.c.l.b16 %v1476
    %v2094 = vunpack.c.h.b16 %v1476
    %v2095 = vunpack.c.l.b16 %v1477
    %v2096 = vunpack.c.h.b16 %v1477
    %v2097 = vunpack.c.l.b16 %v1478
    %v2098 = vunpack.c.h.b16 %v1478
    %v2099 = vunpack.c.l.b16 %v1479
    %v2100 = vunpack.c.h.b16 %v1479
    %v2101 = vunpack.c.l.b16 %v1480
    %v2102 = vunpack.c.h.b16 %v1480
    %v2103 = vunpack.c.l.b16 %v1481
    %v2104 = vunpack.c.h.b16 %v1481
    %v2105 = vunpack.c.l.b16 %v1482
    %v2106 = vunpack.c.h.b16 %v1482
    %v2107 = vunpack.c.l.b16 %v1483
    %v2108 = vunpack.c.h.b16 %v1483
    %v2109 = vunpack.c.l.b16 %v1484
    %v2110 = vunpack.c.h.b16 %v1484
    %v2111 = vunpack.c.l.b16 %v1485
    %v2112 = vunpack.c.h.b16 %v1485
    %v2113 = vunpack.c.l.b16 %v1486
    %v2114 = vunpack.c.h.b16 %v1486
    %v2115 = vunpack.c.l.b16 %v1487
    %v2116 = vunpack.c.h.b16 %v1487
    %v2117 = vunpack.c.l.b16 %v1488
    %v2118 = vunpack.c.h.b16 %v1488
    %v2119 = vunpack.c.l.b16 %v1489
    %v2120 = vunpack.c.h.b16 %v1489
    %v2121 = vunpack.c.l.b16 %v1490
    %v2122 = vunpack.c.h.b16 %v1490
    %v2123 = vunpack.c.l.b16 %v1491
    %v2124 = vunpack.c.h.b16 %v1491
    %v2125 = vunpack.c.l.b16 %v1492
    %v2126 = vunpack.c.h.b16 %v1492
    %v2127 = vunpack.c.l.b16 %v1493
    %v2128 = vunpack.c.h.b16 %v1493
    %v2129 = vunpack.c.l.b16 %v1494
    %v2130 = vunpack.c.h.b16 %v1494
    %v2131 = vunpack.c.l.b16 %v1495
    %v2132 = vunpack.c.h.b16 %v1495
    %v2133 = vunpack.c.l.b16 %v1496
    %v2134 = vunpack.c.h.b16 %v1496
    %v2135 = vunpack.c.l.b16 %v1497
    %v2136 = vunpack.c.h.b16 %v1497
    %v2137 = vunpack.c.l.b16 %v1498
    %v2138 = vunpack.c.h.b16 %v1498
    %v2139 = vunpack.c.l.b16 %v1499
    %v2140 = vunpack.c.h.b16 %v1499
    %v2141 = vunpack.c.l.b16 %v1500
    %v2142 = vunpack.c.h.b16 %v1500
    %v2143 = vunpack.c.l.b16 %v1501
    %v2144 = vunpack.c.h.b16 %v1501
    %v2145 = vunpack.c.l.b16 %v1502
    %v2146 = vunpack.c.h.b16 %v1502
    %v2147 = vunpack.c.l.b16 %v1503
    %v2148 = vunpack.c.h.b16 %v1503
    %v2149 = vunpack.c.l.b16 %v1504
    %v2150 = vunpack.c.h.b16 %v1504
    %v2151 = vunpack.c.l.b16 %v1505
    %v2152 = vunpack.c.h.b16 %v1505
    %v2153 = vunpack.c.l.b16 %v1506
    %v2154 = vunpack.c.h.b16 %v1506
    %v2155 = vunpack.c.l.b16 %v1507
    %v2156 = vunpack.c.h.b16 %v1507
    %v2157 = vunpack.c.l.b16 %v1508
    %v2158 = vunpack.c.h.b16 %v1508
    %v2159 = vunpack.c.l.b16 %v1509
    %v2160 = vunpack.c.h.b16 %v1509
    %v2161 = vunpack.c.l.b16 %v1510
    %v2162 = vunpack.c.h.b16 %v1510
    %v2163 = vunpack.c.l.b16 %v1511
    %v2164 = vunpack.c.h.b16 %v1511
    %v2165 = vunpack.c.l.b16 %v1512
    %v2166 = vunpack.c.h.b16 %v1512
    %v2167 = vunpack.c.l.b16 %v1513
    %v2168 = vunpack.c.h.b16 %v1513
    %v2169 = vunpack.c.l.b16 %v1514
    %v2170 = vunpack.c.h.b16 %v1514
    %v2171 = vunpack.c.l.b16 %v1515
    %v2172 = vunpack.c.h.b16 %v1515
    %v2173 = vunpack.c.l.b16 %v1516
    %v2174 = vunpack.c.h.b16 %v1516
    %v2175 = vunpack.c.l.b16 %v1517
    %v2176 = vunpack.c.h.b16 %v1517
    %v2177 = vunpack.c.l.b16 %v1518
    %v2178 = vunpack.c.h.b16 %v1518
    %v2179 = vunpack.c.l.b16 %v1519
    %v2180 = vunpack.c.h.b16 %v1519
    %v2181 = vunpack.c.l.b16 %v1520
    %v2182 = vunpack.c.h.b16 %v1520
    %v2183 = vunpack.c.l.b16 %v1521
    %v2184 = vunpack.c.h.b16 %v1521
    %v2185 = vunpack.c.l.b16 %v1522
    %v2186 = vunpack.c.h.b16 %v1522
    %v2187 = vunpack.c.l.b16 %v1523
    %v2188 = vunpack.c.h.b16 %v1523
    %v2189 = vunpack.c.l.b16 %v1524
    %v2190 = vunpack.c.h.b16 %v1524
    %v2191 = vunpack.c.l.b16 %v1525
    %v2192 = vunpack.c.h.b16 %v1525
    %v2193 = vunpack.c.l.b16 %v1526
    %v2194 = vunpack.c.h.b16 %v1526
    %v2195 = vunpack.c.l.b16 %v1527
    %v2196 = vunpack.c.h.b16 %v1527
    %v2197 = vunpack.c.l.b16 %v1528
    %v2198 = vunpack.c.h.b16 %v1528
    %v2199 = vunpack.c.l.b16 %v1529
    %v2200 = vunpack.c.h.b16 %v1529
    %v2201 = vunpack.c.l.b16 %v1530
    %v2202 = vunpack.c.h.b16 %v1530
    %v2203 = vunpack.c.l.b16 %v1531
    %v2204 = vunpack.c.h.b16 %v1531
    %v2205 = vunpack.c.l.b16 %v1532
    %v2206 = vunpack.c.h.b16 %v1532
    %v2207 = vunpack.c.l.b16 %v1533
    %v2208 = vunpack.c.h.b16 %v1533
    %v2209 = vunpack.c.l.b16 %v1534
    %v2210 = vunpack.c.h.b16 %v1534
    %v2211 = vunpack.c.l.b16 %v1535
    %v2212 = vunpack.c.h.b16 %v1535
    %v2213 = vunpack.c.l.b16 %v1536
    %v2214 = vunpack.c.h.b16 %v1536
    %v2215 = vunpack.c.l.b16 %v1537
    %v2216 = vunpack.c.h.b16 %v1537
    %v2217 = vunpack.c.l.b16 %v1538
    %v2218 = vunpack.c.h.b16 %v1538
    %v2219 = vunpack.c.l.b16 %v1539
    %v2220 = vunpack.c.h.b16 %v1539
    %v2221 = vunpack.c.l.b16 %v1540
    %v2222 = vunpack.c.h.b16 %v1540
    %v2223 = vunpack.c.l.b16 %v1541
    %v2224 = vunpack.c.h.b16 %v1541
    %v2225 = vunpack.c.l.b16 %v1542
    %v2226 = vunpack.c.h.b16 %v1542
    %v2227 = vunpack.c.l.b16 %v1543
    %v2228 = vunpack.c.h.b16 %v1543
    %v2229 = vunpack.c.l.b16 %v1544
    %v2230 = vunpack.c.h.b16 %v1544
    %v2231 = vunpack.c.l.b16 %v1545
    %v2232 = vunpack.c.h.b16 %v1545
    %v2233 = vunpack.c.l.b16 %v1546
    %v2234 = vunpack.c.h.b16 %v1546
    %v2235 = vunpack.c.l.b16 %v1547
    %v2236 = vunpack.c.h.b16 %v1547
    %v2237 = vunpack.c.l.b16 %v1548
    %v2238 = vunpack.c.h.b16 %v1548
    %v2239 = vunpack.c.l.b16 %v1549
    %v2240 = vunpack.c.h.b16 %v1549
    %v2241 = vunpack.c.l.b16 %v1550
    %v2242 = vunpack.c.h.b16 %v1550
    %v2243 = vunpack.c.l.b16 %v1551
    %v2244 = vunpack.c.h.b16 %v1551
    %v2245 = vunpack.c.l.b16 %v1552
    %v2246 = vunpack.c.h.b16 %v1552
    %v2247 = vunpack.c.l.b16 %v1553
    %v2248 = vunpack.c.h.b16 %v1553
    %v2249 = vunpack.c.l.b16 %v1554
    %v2250 = vunpack.c.h.b16 %v1554
    %v2251 = vunpack.c.l.b16 %v1555
    %v2252 = vunpack.c.h.b16 %v1555
    %v2253 = vunpack.c.l.b16 %v1556
    %v2254 = vunpack.c.h.b16 %v1556
    %v2255 = vunpack.c.l.b16 %v1557
    %v2256 = vunpack.c.h.b16 %v1557
    %v2257 = vunpack.c.l.b16 %v1558
    %v2258 = vunpack.c.h.b16 %v1558
    %v2259 = vunpack.c.l.b16 %v1559
    %v2260 = vunpack.c.h.b16 %v1559
    %v2261 = vunpack.c.l.b16 %v1560
    %v2262 = vunpack.c.h.b16 %v1560
    %v2263 = vunpack.c.l.b16 %v1561
    %v2264 = vunpack.c.h.b16 %v1561
    %v2265 = vunpack.c.l.b16 %v1562
    %v2266 = vunpack.c.h.b16 %v1562
    %v2267 = vunpack.c.l.b16 %v1563
    %v2268 = vunpack.c.h.b16 %v1563
    %v2269 = vunpack.c.l.b16 %v1564
    %v2270 = vunpack.c.h.b16 %v1564
    %v2271 = vunpack.c.l.b16 %v1565
    %v2272 = vunpack.c.h.b16 %v1565
    %v2273 = vunpack.c.l.b16 %v1566
    %v2274 = vunpack.c.h.b16 %v1566
    %v2275 = vunpack.c.l.b16 %v1567
    %v2276 = vunpack.c.h.b16 %v1567
    %v2277 = vunpack.c.l.b16 %v1568
    %v2278 = vunpack.c.h.b16 %v1568
    %v2279 = vunpack.c.l.b16 %v1569
    %v2280 = vunpack.c.h.b16 %v1569
    %v2281 = vunpack.c.l.b16 %v1570
    %v2282 = vunpack.c.h.b16 %v1570
    %v2283 = vunpack.c.l.b16 %v1571
    %v2284 = vunpack.c.h.b16 %v1571
    %v2285 = vunpack.c.l.b16 %v1572
    %v2286 = vunpack.c.h.b16 %v1572
    %v2287 = vunpack.c.l.b16 %v1573
    %v2288 = vunpack.c.h.b16 %v1573
    %v2289 = vunpack.c.l.b16 %v1574
    %v2290 = vunpack.c.h.b16 %v1574
    %v2291 = vunpack.c.l.b16 %v1575
    %v2292 = vunpack.c.h.b16 %v1575
    %v2293 = vunpack.c.l.b16 %v1576
    %v2294 = vunpack.c.h.b16 %v1576
    %v2295 = vunpack.c.l.b16 %v1577
    %v2296 = vunpack.c.h.b16 %v1577
    %v2297 = vunpack.c.l.b16 %v1578
    %v2298 = vunpack.c.h.b16 %v1578
    %v2299 = vunpack.c.l.b16 %v1579
    %v2300 = vunpack.c.h.b16 %v1579
    %v2301 = vunpack.c.l.b16 %v1580
    %v2302 = vunpack.c.h.b16 %v1580
    %v2303 = vunpack.c.l.b16 %v1581
    %v2304 = vunpack.c.h.b16 %v1581
    %v2305 = vunpack.c.l.b16 %v1582
    %v2306 = vunpack.c.h.b16 %v1582
    %v2307 = vunpack.c.l.b16 %v1583
    %v2308 = vunpack.c.h.b16 %v1583
    %v2309 = vunpack.c.l.b16 %v1584
    %v2310 = vunpack.c.h.b16 %v1584
    %v2311 = vunpack.c.l.b16 %v1585
    %v2312 = vunpack.c.h.b16 %v1585
    %v2313 = vunpack.c.l.b16 %v1586
    %v2314 = vunpack.c.h.b16 %v1586
    %v2315 = vunpack.c.l.b16 %v1587
    %v2316 = vunpack.c.h.b16 %v1587
    %v2317 = vunpack.c.l.b16 %v1588
    %v2318 = vunpack.c.h.b16 %v1588
    %v2319 = vunpack.c.l.b16 %v1589
    %v2320 = vunpack.c.h.b16 %v1589
    %v2321 = vunpack.c.l.b16 %v1590
    %v2322 = vunpack.c.h.b16 %v1590
    %v2323 = vunpack.c.l.b16 %v1591
    %v2324 = vunpack.c.h.b16 %v1591
    %v2325 = vunpack.c.l.b16 %v1592
    %v2326 = vunpack.c.h.b16 %v1592
    %v2327 = vunpack.c.l.b16 %v1593
    %v2328 = vunpack.c.h.b16 %v1593
    %v2329 = vunpack.c.l.b16 %v1594
    %v2330 = vunpack.c.h.b16 %v1594
    %v2331 = vunpack.c.l.b16 %v1595
    %v2332 = vunpack.c.h.b16 %v1595
    %v2333 = vunpack.c.l.b16 %v1596
    %v2334 = vunpack.c.h.b16 %v1596
    %v2335 = vunpack.c.l.b16 %v1597
    %v2336 = vunpack.c.h.b16 %v1597
    %v2337 = vunpack.c.l.b16 %v1598
    %v2338 = vunpack.c.h.b16 %v1598
    %v2339 = vunpack.c.l.b16 %v1599
    %v2340 = vunpack.c.h.b16 %v1599
    %v2341 = vunpack.c.l.b16 %v1600
    %v2342 = vunpack.c.h.b16 %v1600
    %v2343 = vunpack.c.l.b16 %v1601
    %v2344 = vunpack.c.h.b16 %v1601
    %v2345 = vunpack.c.l.b16 %v1602
    %v2346 = vunpack.c.h.b16 %v1602
    %v2347 = vunpack.c.l.b16 %v1603
    %v2348 = vunpack.c.h.b16 %v1603
    %v2349 = vunpack.c.l.b16 %v1604
    %v2350 = vunpack.c.h.b16 %v1604
    %v2351 = vunpack.c.l.b16 %v1605
    %v2352 = vunpack.c.h.b16 %v1605
    %v2353 = vunpack.c.l.b16 %v1606
    %v2354 = vunpack.c.h.b16 %v1606
    %v2355 = vunpack.c.l.b16 %v1607
    %v2356 = vunpack.c.h.b16 %v1607
    %v2357 = vunpack.c.l.b16 %v1608
    %v2358 = vunpack.c.h.b16 %v1608
    %v2359 = vunpack.c.l.b16 %v1609
    %v2360 = vunpack.c.h.b16 %v1609
    %v2361 = vunpack.c.l.b16 %v1610
    %v2362 = vunpack.c.h.b16 %v1610
    %v2363 = vunpack.c.l.b16 %v1611
    %v2364 = vunpack.c.h.b16 %v1611
    %v2365 = vunpack.c.l.b16 %v1612
    %v2366 = vunpack.c.h.b16 %v1612
    %v2367 = vunpack.c.l.b16 %v1613
    %v2368 = vunpack.c.h.b16 %v1613
    %v2369 = vunpack.c.l.b16 %v1614
    %v2370 = vunpack.c.h.b16 %v1614
    %v2371 = vunpack.c.l.b16 %v1615
    %v2372 = vunpack.c.h.b16 %v1615
    %v2373 = vunpack.c.l.b16 %v1616
    %v2374 = vunpack.c.h.b16 %v1616
    %v2375 = vunpack.c.l.b16 %v1617
    %v2376 = vunpack.c.h.b16 %v1617
    %v2377 = vunpack.c.l.b16 %v1618
    %v2378 = vunpack.c.h.b16 %v1618
    %v2379 = vunpack.c.l.b16 %v1619
    %v2380 = vunpack.c.h.b16 %v1619
    %v2381 = vunpack.c.l.b16 %v1620
    %v2382 = vunpack.c.h.b16 %v1620
    %v2383 = vunpack.c.l.b16 %v1621
    %v2384 = vunpack.c.h.b16 %v1621
    %v2385 = vunpack.c.l.b16 %v1622
    %v2386 = vunpack.c.h.b16 %v1622
    %v2387 = vunpack.c.l.b16 %v1623
    %v2388 = vunpack.c.h.b16 %v1623
    %v2389 = vunpack.c.l.b16 %v1624
    %v2390 = vunpack.c.h.b16 %v1624
    %v2391 = vunpack.c.l.b16 %v1625
    %v2392 = vunpack.c.h.b16 %v1625
    %v2393 = vunpack.c.l.b16 %v1626
    %v2394 = vunpack.c.h.b16 %v1626
    %v2395 = vunpack.c.l.b16 %v1627
    %v2396 = vunpack.c.h.b16 %v1627
    %v2397 = vunpack.c.l.b16 %v1628
    %v2398 = vunpack.c.h.b16 %v1628
    %v2399 = vunpack.c.l.b16 %v1629
    %v2400 = vunpack.c.h.b16 %v1629
    %v2401 = vunpack.c.l.b16 %v1630
    %v2402 = vunpack.c.h.b16 %v1630
    %v2403 = vunpack.c.l.b16 %v1631
    %v2404 = vunpack.c.h.b16 %v1631
    %v2405 = vunpack.c.l.b16 %v1632
    %v2406 = vunpack.c.h.b16 %v1632
    %v2407 = vunpack.c.l.b16 %v1633
    %v2408 = vunpack.c.h.b16 %v1633
    %v2409 = vunpack.c.l.b16 %v1634
    %v2410 = vunpack.c.h.b16 %v1634
    %v2411 = vunpack.c.l.b16 %v1635
    %v2412 = vunpack.c.h.b16 %v1635
    %v2413 = vunpack.c.l.b16 %v1636
    %v2414 = vunpack.c.h.b16 %v1636
    %v2415 = vunpack.c.l.b16 %v1637
    %v2416 = vunpack.c.h.b16 %v1637
    %v2417 = vunpack.c.l.b16 %v1638
    %v2418 = vunpack.c.h.b16 %v1638
    %v2419 = vunpack.c.l.b16 %v1639
    %v2420 = vunpack.c.h.b16 %v1639
    %v2421 = vunpack.c.l.b16 %v1640
    %v2422 = vunpack.c.h.b16 %v1640
    %v2423 = vunpack.c.l.b16 %v1641
    %v2424 = vunpack.c.h.b16 %v1641
    %v2425 = vunpack.c.l.b16 %v1642
    %v2426 = vunpack.c.h.b16 %v1642
    %v2427 = vunpack.c.l.b16 %v1643
    %v2428 = vunpack.c.h.b16 %v1643
    %v2429 = vunpack.c.l.b16 %v1644
    %v2430 = vunpack.c.h.b16 %v1644
    %v2431 = vunpack.c.l.b16 %v1645
    %v2432 = vunpack.c.h.b16 %v1645
    %v2433 = vunpack.c.l.b16 %v1646
    %v2434 = vunpack.c.h.b16 %v1646
    %v2435 = vunpack.c.l.b16 %v1647
    %v2436 = vunpack.c.h.b16 %v1647
    %v2437 = vunpack.c.l.b16 %v1648
    %v2438 = vunpack.c.h.b16 %v1648
    %v2439 = vpack.c.b16 %v1931, %v1927
    %v2440 = vpack.c.b16 %v1932, %v1928
    %v2441 = vpack.c.b16 %v1933, %v1929
    %v2442 = vpack.c.b16 %v1934, %v1930
    %v2443 = vpack.c.b16 %v1939, %v1935
    %v2444 = vpack.c.b16 %v1940, %v1936
    %v2445 = vpack.c.b16 %v1941, %v1937
    %v2446 = vpack.c.b16 %v1942, %v1938
    %v2447 = vpack.c.b16 %v1947, %v1943
    %v2448 = vpack.c.b16 %v1948, %v1944
    %v2449 = vpack.c.b16 %v1949, %v1945
    %v2450 = vpack.c.b16 %v1950, %v1946
    %v2451 = vpack.c.b16 %v1955, %v1951
    %v2452 = vpack.c.b16 %v1956, %v1952
    %v2453 = vpack.c.b16 %v1957, %v1953
    %v2454 = vpack.c.b16 %v1958, %v1954
    %v2455 = vpack.c.b16 %v1963, %v1959
    %v2456 = vpack.c.b16 %v1964, %v1960
    %v2457 = vpack.c.b16 %v1965, %v1961
    %v2458 = vpack.c.b16 %v1966, %v1962
    %v2459 = vpack.c.b16 %v1971, %v1967
    %v2460 = vpack.c.b16 %v1972, %v1968
    %v2461 = vpack.c.b16 %v1973, %v1969
    %v2462 = vpack.c.b16 %v1974, %v1970
    %v2463 = vpack.c.b16 %v1979, %v1975
    %v2464 = vpack.c.b16 %v1980, %v1976
    %v2465 = vpack.c.b16 %v1981, %v1977
    %v2466 = vpack.c.b16 %v1982, %v1978
    %v2467 = vpack.c.b16 %v1987, %v1983
    %v2468 = vpack.c.b16 %v1988, %v1984
    %v2469 = vpack.c.b16 %v1989, %v1985
    %v2470 = vpack.c.b16 %v1990, %v1986
    %v2471 = vpack.c.b16 %v1995, %v1991
    %v2472 = vpack.c.b16 %v1996, %v1992
    %v2473 = vpack.c.b16 %v1997, %v1993
    %v2474 = vpack.c.b16 %v1998, %v1994
    %v2475 = vpack.c.b16 %v2003, %v1999
    %v2476 = vpack.c.b16 %v2004, %v2000
    %v2477 = vpack.c.b16 %v2005, %v2001
    %v2478 = vpack.c.b16 %v2006, %v2002
    %v2479 = vpack.c.b16 %v2011, %v2007
    %v2480 = vpack.c.b16 %v2012, %v2008
    %v2481 = vpack.c.b16 %v2013, %v2009
    %v2482 = vpack.c.b16 %v2014, %v2010
    %v2483 = vpack.c.b16 %v2019, %v2015
    %v2484 = vpack.c.b16 %v2020, %v2016
    %v2485 = vpack.c.b16 %v2021, %v2017
    %v2486 = vpack.c.b16 %v2022, %v2018
    %v2487 = vpack.c.b16 %v2027, %v2023
    %v2488 = vpack.c.b16 %v2028, %v2024
    %v2489 = vpack.c.b16 %v2029, %v2025
    %v2490 = vpack.c.b16 %v2030, %v2026
    %v2491 = vpack.c.b16 %v2035, %v2031
    %v2492 = vpack.c.b16 %v2036, %v2032
    %v2493 = vpack.c.b16 %v2037, %v2033
    %v2494 = vpack.c.b16 %v2038, %v2034
    %v2495 = vpack.c.b16 %v2043, %v2039
    %v2496 = vpack.c.b16 %v2044, %v2040
    %v2497 = vpack.c.b16 %v2045, %v2041
    %v2498 = vpack.c.b16 %v2046, %v2042
    %v2499 = vpack.c.b16 %v2051, %v2047
    %v2500 = vpack.c.b16 %v2052, %v2048
    %v2501 = vpack.c.b16 %v2053, %v2049
    %v2502 = vpack.c.b16 %v2054, %v2050
    %v2503 = vpack.c.b16 %v2059, %v2055
    %v2504 = vpack.c.b16 %v2060, %v2056
    %v2505 = vpack.c.b16 %v2061, %v2057
    %v2506 = vpack.c.b16 %v2062, %v2058
    %v2507 = vpack.c.b16 %v2067, %v2063
    %v2508 = vpack.c.b16 %v2068, %v2064
    %v2509 = vpack.c.b16 %v2069, %v2065
    %v2510 = vpack.c.b16 %v2070, %v2066
    %v2511 = vpack.c.b16 %v2075, %v2071
    %v2512 = vpack.c.b16 %v2076, %v2072
    %v2513 = vpack.c.b16 %v2077, %v2073
    %v2514 = vpack.c.b16 %v2078, %v2074
    %v2515 = vpack.c.b16 %v2083, %v2079
    %v2516 = vpack.c.b16 %v2084, %v2080
    %v2517 = vpack.c.b16 %v2085, %v2081
    %v2518 = vpack.c.b16 %v2086, %v2082
    %v2519 = vpack.c.b16 %v2091, %v2087
    %v2520 = vpack.c.b16 %v2092, %v2088
    %v2521 = vpack.c.b16 %v2093, %v2089
    %v2522 = vpack.c.b16 %v2094, %v2090
    %v2523 = vpack.c.b16 %v2099, %v2095
    %v2524 = vpack.c.b16 %v2100, %v2096
    %v2525 = vpack.c.b16 %v2101, %v2097
    %v2526 = vpack.c.b16 %v2102, %v2098
    %v2527 = vpack.c.b16 %v2107, %v2103
    %v2528 = vpack.c.b16 %v2108, %v2104
    %v2529 = vpack.c.b16 %v2109, %v2105
    %v2530 = vpack.c.b16 %v2110, %v2106
    %v2531 = vpack.c.b16 %v2115, %v2111
    %v2532 = vpack.c.b16 %v2116, %v2112
    %v2533 = vpack.c.b16 %v2117, %v2113
    %v2534 = vpack.c.b16 %v2118, %v2114
    %v2535 = vpack.c.b16 %v2123, %v2119
    %v2536 = vpack.c.b16 %v2124, %v2120
    %v2537 = vpack.c.b16 %v2125, %v2121
    %v2538 = vpack.c.b16 %v2126, %v2122
    %v2539 = vpack.c.b16 %v2131, %v2127
    %v2540 = vpack.c.b16 %v2132, %v2128
    %v2541 = vpack.c.b16 %v2133, %v2129
    %v2542 = vpack.c.b16 %v2134, %v2130
    %v2543 = vpack.c.b16 %v2139, %v2135
    %v2544 = vpack.c.b16 %v2140, %v2136
    %v2545 = vpack.c.b16 %v2141, %v2137
    %v2546 = vpack.c.b16 %v2142, %v2138
    %v2547 = vpack.c.b16 %v2147, %v2143
    %v2548 = vpack.c.b16 %v2148, %v2144
    %v2549 = vpack.c.b16 %v2149, %v2145
    %v2550 = vpack.c.b16 %v2150, %v2146
    %v2551 = vpack.c.b16 %v2155, %v2151
    %v2552 = vpack.c.b16 %v2156, %v2152
    %v2553 = vpack.c.b16 %v2157, %v2153
    %v2554 = vpack.c.b16 %v2158, %v2154
    %v2555 = vpack.c.b16 %v2163, %v2159
    %v2556 = vpack.c.b16 %v2164, %v2160
    %v2557 = vpack.c.b16 %v2165, %v2161
    %v2558 = vpack.c.b16 %v2166, %v2162
    %v2559 = vpack.c.b16 %v2171, %v2167
    %v2560 = vpack.c.b16 %v2172, %v2168
    %v2561 = vpack.c.b16 %v2173, %v2169
    %v2562 = vpack.c.b16 %v2174, %v2170
    %v2563 = vpack.c.b16 %v2179, %v2175
    %v2564 = vpack.c.b16 %v2180, %v2176
    %v2565 = vpack.c.b16 %v2181, %v2177
    %v2566 = vpack.c.b16 %v2182, %v2178
    %v2567 = vpack.c.b16 %v2187, %v2183
    %v2568 = vpack.c.b16 %v2188, %v2184
    %v2569 = vpack.c.b16 %v2189, %v2185
    %v2570 = vpack.c.b16 %v2190, %v2186
    %v2571 = vpack.c.b16 %v2195, %v2191
    %v2572 = vpack.c.b16 %v2196, %v2192
    %v2573 = vpack.c.b16 %v2197, %v2193
    %v2574 = vpack.c.b16 %v2198, %v2194
    %v2575 = vpack.c.b16 %v2203, %v2199
    %v2576 = vpack.c.b16 %v2204, %v2200
    %v2577 = vpack.c.b16 %v2205, %v2201
    %v2578 = vpack.c.b16 %v2206, %v2202
    %v2579 = vpack.c.b16 %v2211, %v2207
    %v2580 = vpack.c.b16 %v2212, %v2208
    %v2581 = vpack.c.b16 %v2213, %v2209
    %v2582 = vpack.c.b16 %v2214, %v2210
    %v2583 = vpack.c.b16 %v2219, %v2215
    %v2584 = vpack.c.b16 %v2220, %v2216
    %v2585 = vpack.c.b16 %v2221, %v2217
    %v2586 = vpack.c.b16 %v2222, %v2218
    %v2587 = vpack.c.b16 %v2227, %v2223
    %v2588 = vpack.c.b16 %v2228, %v2224
    %v2589 = vpack.c.b16 %v2229, %v2225
    %v2590 = vpack.c.b16 %v2230, %v2226
    %v2591 = vpack.c.b16 %v2235, %v2231
    %v2592 = vpack.c.b16 %v2236, %v2232
    %v2593 = vpack.c.b16 %v2237, %v2233
    %v2594 = vpack.c.b16 %v2238, %v2234
    %v2595 = vpack.c.b16 %v2243, %v2239
    %v2596 = vpack.c.b16 %v2244, %v2240
    %v2597 = vpack.c.b16 %v2245, %v2241
    %v2598 = vpack.c.b16 %v2246, %v2242
    %v2599 = vpack.c.b16 %v2251, %v2247
    %v2600 = vpack.c.b16 %v2252, %v2248
    %v2601 = vpack.c.b16 %v2253, %v2249
    %v2602 = vpack.c.b16 %v2254, %v2250
    %v2603 = vpack.c.b16 %v2259, %v2255
    %v2604 = vpack.c.b16 %v2260, %v2256
    %v2605 = vpack.c.b16 %v2261, %v2257
    %v2606 = vpack.c.b16 %v2262, %v2258
    %v2607 = vpack.c.b16 %v2267, %v2263
    %v2608 = vpack.c.b16 %v2268, %v2264
    %v2609 = vpack.c.b16 %v2269, %v2265
    %v2610 = vpack.c.b16 %v2270, %v2266
    %v2611 = vpack.c.b16 %v2275, %v2271
    %v2612 = vpack.c.b16 %v2276, %v2272
    %v2613 = vpack.c.b16 %v2277, %v2273
    %v2614 = vpack.c.b16 %v2278, %v2274
    %v2615 = vpack.c.b16 %v2283, %v2279
    %v2616 = vpack.c.b16 %v2284, %v2280
    %v2617 = vpack.c.b16 %v2285, %v2281
    %v2618 = vpack.c.b16 %v2286, %v2282
    %v2619 = vpack.c.b16 %v2291, %v2287
    %v2620 = vpack.c.b16 %v2292, %v2288
    %v2621 = vpack.c.b16 %v2293, %v2289
    %v2622 = vpack.c.b16 %v2294, %v2290
    %v2623 = vpack.c.b16 %v2299, %v2295
    %v2624 = vpack.c.b16 %v2300, %v2296
    %v2625 = vpack.c.b16 %v2301, %v2297
    %v2626 = vpack.c.b16 %v2302, %v2298
    %v2627 = vpack.c.b16 %v2307, %v2303
    %v2628 = vpack.c.b16 %v2308, %v2304
    %v2629 = vpack.c.b16 %v2309, %v2305
    %v2630 = vpack.c.b16 %v2310, %v2306
    %v2631 = vpack.c.b16 %v2315, %v2311
    %v2632 = vpack.c.b16 %v2316, %v2312
    %v2633 = vpack.c.b16 %v2317, %v2313
    %v2634 = vpack.c.b16 %v2318, %v2314
    %v2635 = vpack.c.b16 %v2323, %v2319
    %v2636 = vpack.c.b16 %v2324, %v2320
    %v2637 = vpack.c.b16 %v2325, %v2321
    %v2638 = vpack.c.b16 %v2326, %v2322
    %v2639 = vpack.c.b16 %v2331, %v2327
    %v2640 = vpack.c.b16 %v2332, %v2328
    %v2641 = vpack.c.b16 %v2333, %v2329
    %v2642 = vpack.c.b16 %v2334, %v2330
    %v2643 = vpack.c.b16 %v2339, %v2335
    %v2644 = vpack.c.b16 %v2340, %v2336
    %v2645 = vpack.c.b16 %v2341, %v2337
    %v2646 = vpack.c.b16 %v2342, %v2338
    %v2647 = vpack.c.b16 %v2347, %v2343
    %v2648 = vpack.c.b16 %v2348, %v2344
    %v2649 = vpack.c.b16 %v2349, %v2345
    %v2650 = vpack.c.b16 %v2350, %v2346
    %v2651 = vpack.c.b16 %v2355, %v2351
    %v2652 = vpack.c.b16 %v2356, %v2352
    %v2653 = vpack.c.b16 %v2357, %v2353
    %v2654 = vpack.c.b16 %v2358, %v2354
    %v2655 = vpack.c.b16 %v2363, %v2359
    %v2656 = vpack.c.b16 %v2364, %v2360
    %v2657 = vpack.c.b16 %v2365, %v2361
    %v2658 = vpack.c.b16 %v2366, %v2362
    %v2659 = vpack.c.b16 %v2371, %v2367
    %v2660 = vpack.c.b16 %v2372, %v2368
    %v2661 = vpack.c.b16 %v2373, %v2369
    %v2662 = vpack.c.b16 %v2374, %v2370
    %v2663 = vpack.c.b16 %v2379, %v2375
    %v2664 = vpack.c.b16 %v2380, %v2376
    %v2665 = vpack.c.b16 %v2381, %v2377
    %v2666 = vpack.c.b16 %v2382, %v2378
    %v2667 = vpack.c.b16 %v2387, %v2383
    %v2668 = vpack.c.b16 %v2388, %v2384
    %v2669 = vpack.c.b16 %v2389, %v2385
    %v2670 = vpack.c.b16 %v2390, %v2386
    %v2671 = vpack.c.b16 %v2395, %v2391
    %v2672 = vpack.c.b16 %v2396, %v2392
    %v2673 = vpack.c.b16 %v2397, %v2393
    %v2674 = vpack.c.b16 %v2398, %v2394
    %v2675 = vpack.c.b16 %v2403, %v2399
    %v2676 = vpack.c.b16 %v2404, %v2400
    %v2677 = vpack.c.b16 %v2405, %v2401
    %v2678 = vpack.c.b16 %v2406, %v2402
    %v2679 = vpack.c.b16 %v2411, %v2407
    %v2680 = vpack.c.b16 %v2412, %v2408
    %v2681 = vpack.c.b16 %v2413, %v2409
    %v2682 = vpack.c.b16 %v2414, %v2410
    %v2683 = vpack.c.b16 %v2419, %v2415
    %v2684 = vpack.c.b16 %v2420, %v2416
    %v2685 = vpack.c.b16 %v2421, %v2417
    %v2686 = vpack.c.b16 %v2422, %v2418
    %v2687 = vpack.c.b16 %v2427, %v2423
    %v2688 = vpack.c.b16 %v2428, %v2424
    %v2689 = vpack.c.b16 %v2429, %v2425
    %v2690 = vpack.c.b16 %v2430, %v2426
    %v2691 = vpack.c.b16 %v2435, %v2431
    %v2692 = vpack.c.b16 %v2436, %v2432
    %v2693 = vpack.c.b16 %v2437, %v2433
    %v2694 = vpack.c.b16 %v2438, %v2434
    %2951 = vmatprep.subr.bf16.mxu0 %v2440
    %2952 = vmatpush1.bf16.msra.mxu0 %v2439
    %2953 = vmatprep.subr.bf16.mxu0 %v2444
    %2954 = vmatpush1.bf16.msra.mxu0 %v2443
    %2955 = vmatprep.subr.bf16.mxu0 %v2448
    %2956 = vmatpush1.bf16.msra.mxu0 %v2447
    %2957 = vmatprep.subr.bf16.mxu0 %v2452
    %2958 = vmatpush1.bf16.msra.mxu0 %v2451
    %2959 = vmatprep.subr.bf16.mxu0 %v2456
    %2960 = vmatpush1.bf16.msra.mxu0 %v2455
    %2961 = vmatprep.subr.bf16.mxu0 %v2460
    %2962 = vmatpush1.bf16.msra.mxu0 %v2459
    %2963 = vmatprep.subr.bf16.mxu0 %v2464
    %2964 = vmatpush1.bf16.msra.mxu0 %v2463
    %2965 = vmatprep.subr.bf16.mxu0 %v2468
    %2966 = vmatpush1.bf16.msra.mxu0 %v2467
    %2967 = vmatprep.subr.bf16.mxu0 %v2472
    %2968 = vmatpush1.bf16.msra.mxu0 %v2471
    %2969 = vmatprep.subr.bf16.mxu0 %v2476
    %2970 = vmatpush1.bf16.msra.mxu0 %v2475
    %2971 = vmatprep.subr.bf16.mxu0 %v2480
    %2972 = vmatpush1.bf16.msra.mxu0 %v2479
    %2973 = vmatprep.subr.bf16.mxu0 %v2484
    %2974 = vmatpush1.bf16.msra.mxu0 %v2483
    %2975 = vmatprep.subr.bf16.mxu0 %v2488
    %2976 = vmatpush1.bf16.msra.mxu0 %v2487
    %2977 = vmatprep.subr.bf16.mxu0 %v2492
    %2978 = vmatpush1.bf16.msra.mxu0 %v2491
    %2979 = vmatprep.subr.bf16.mxu0 %v2496
    %2980 = vmatpush1.bf16.msra.mxu0 %v2495
    %2981 = vmatprep.subr.bf16.mxu0 %v2500
    %2982 = vmatpush1.bf16.msra.mxu0 %v2499
    %2983 = vmatprep.mubr.bf16.mxu0 %v1386
    %2984 = vmatmul.mubr.bf16.gmra.mrb[0].mxu0 %v1385
    %v2985 = vpop.f32.mrb[0].mxu0
    %v2986 = vadd.f32 %v1654, %v2985
    %v2987 = vpop.f32.mrb[0].mxu0
    %v2988 = vadd.f32 %v1658, %v2987
    %v2989 = vpop.f32.mrb[0].mxu0
    %v2990 = vadd.f32 %v1654, %v2989
    %v2991 = vpop.f32.mrb[0].mxu0
    %v2992 = vadd.f32 %v1658, %v2991
    %2993 = vdwg.mxu0
    %2994 = vmatprep.subr.bf16.mxu0 %v2504
    %2995 = vmatpush1.bf16.msra.mxu0 %v2503
    %2996 = vmatprep.subr.bf16.mxu0 %v2508
    %2997 = vmatpush1.bf16.msra.mxu0 %v2507
    %2998 = vmatprep.subr.bf16.mxu0 %v2512
    %2999 = vmatpush1.bf16.msra.mxu0 %v2511
    %3000 = vmatprep.subr.bf16.mxu0 %v2516
    %3001 = vmatpush1.bf16.msra.mxu0 %v2515
    %3002 = vmatprep.subr.bf16.mxu0 %v2520
    %3003 = vmatpush1.bf16.msra.mxu0 %v2519
    %3004 = vmatprep.subr.bf16.mxu0 %v2524
    %3005 = vmatpush1.bf16.msra.mxu0 %v2523
    %3006 = vmatprep.subr.bf16.mxu0 %v2528
    %3007 = vmatpush1.bf16.msra.mxu0 %v2527
    %3008 = vmatprep.subr.bf16.mxu0 %v2532
    %3009 = vmatpush1.bf16.msra.mxu0 %v2531
    %3010 = vmatprep.subr.bf16.mxu0 %v2536
    %3011 = vmatpush1.bf16.msra.mxu0 %v2535
    %3012 = vmatprep.subr.bf16.mxu0 %v2540
    %3013 = vmatpush1.bf16.msra.mxu0 %v2539
    %3014 = vmatprep.subr.bf16.mxu0 %v2544
    %3015 = vmatpush1.bf16.msra.mxu0 %v2543
    %3016 = vmatprep.subr.bf16.mxu0 %v2548
    %3017 = vmatpush1.bf16.msra.mxu0 %v2547
    %3018 = vmatprep.subr.bf16.mxu0 %v2552
    %3019 = vmatpush1.bf16.msra.mxu0 %v2551
    %3020 = vmatprep.subr.bf16.mxu0 %v2556
    %3021 = vmatpush1.bf16.msra.mxu0 %v2555
    %3022 = vmatprep.subr.bf16.mxu0 %v2560
    %3023 = vmatpush1.bf16.msra.mxu0 %v2559
    %3024 = vmatprep.subr.bf16.mxu0 %v2564
    %3025 = vmatpush1.bf16.msra.mxu0 %v2563
    %3026 = vmatprep.mubr.bf16.mxu0 %v1388
    %3027 = vmatmul.mubr.bf16.gmra.mrb[0].mxu0 %v1387
    %v3028 = vpop.f32.mrb[0].mxu0
    %v3029 = vadd.f32 %v2986, %v3028
    %v3030 = vpop.f32.mrb[0].mxu0
    %v3031 = vadd.f32 %v2988, %v3030
    %v3032 = vpop.f32.mrb[0].mxu0
    %v3033 = vadd.f32 %v2990, %v3032
    %v3034 = vpop.f32.mrb[0].mxu0
    %v3035 = vadd.f32 %v2992, %v3034
    %3036 = vdwg.mxu0
    %3037 = vmatprep.subr.bf16.mxu0 %v2568
    %3038 = vmatpush1.bf16.msra.mxu0 %v2567
    %3039 = vmatprep.subr.bf16.mxu0 %v2572
    %3040 = vmatpush1.bf16.msra.mxu0 %v2571
    %3041 = vmatprep.subr.bf16.mxu0 %v2576
    %3042 = vmatpush1.bf16.msra.mxu0 %v2575
    %3043 = vmatprep.subr.bf16.mxu0 %v2580
    %3044 = vmatpush1.bf16.msra.mxu0 %v2579
    %3045 = vmatprep.subr.bf16.mxu0 %v2584
    %3046 = vmatpush1.bf16.msra.mxu0 %v2583
    %3047 = vmatprep.subr.bf16.mxu0 %v2588
    %3048 = vmatpush1.bf16.msra.mxu0 %v2587
    %3049 = vmatprep.subr.bf16.mxu0 %v2592
    %3050 = vmatpush1.bf16.msra.mxu0 %v2591
    %3051 = vmatprep.subr.bf16.mxu0 %v2596
    %3052 = vmatpush1.bf16.msra.mxu0 %v2595
    %3053 = vmatprep.subr.bf16.mxu0 %v2600
    %3054 = vmatpush1.bf16.msra.mxu0 %v2599
    %3055 = vmatprep.subr.bf16.mxu0 %v2604
    %3056 = vmatpush1.bf16.msra.mxu0 %v2603
    %3057 = vmatprep.subr.bf16.mxu0 %v2608
    %3058 = vmatpush1.bf16.msra.mxu0 %v2607
    %3059 = vmatprep.subr.bf16.mxu0 %v2612
    %3060 = vmatpush1.bf16.msra.mxu0 %v2611
    %3061 = vmatprep.subr.bf16.mxu0 %v2616
    %3062 = vmatpush1.bf16.msra.mxu0 %v2615
    %3063 = vmatprep.subr.bf16.mxu0 %v2620
    %3064 = vmatpush1.bf16.msra.mxu0 %v2619
    %3065 = vmatprep.subr.bf16.mxu0 %v2624
    %3066 = vmatpush1.bf16.msra.mxu0 %v2623
    %3067 = vmatprep.subr.bf16.mxu0 %v2628
    %3068 = vmatpush1.bf16.msra.mxu0 %v2627
    %3069 = vmatprep.mubr.bf16.mxu0 %v1390
    %3070 = vmatmul.mubr.bf16.gmra.mrb[0].mxu0 %v1389
    %v3071 = vpop.f32.mrb[0].mxu0
    %v3072 = vadd.f32 %v3029, %v3071
    %v3073 = vpop.f32.mrb[0].mxu0
    %v3074 = vadd.f32 %v3031, %v3073
    %v3075 = vpop.f32.mrb[0].mxu0
    %v3076 = vadd.f32 %v3033, %v3075
    %v3077 = vpop.f32.mrb[0].mxu0
    %v3078 = vadd.f32 %v3035, %v3077
    %3079 = vdwg.mxu0
    %3080 = vmatprep.subr.bf16.mxu0 %v2632
    %3081 = vmatpush1.bf16.msra.mxu0 %v2631
    %3082 = vmatprep.subr.bf16.mxu0 %v2636
    %3083 = vmatpush1.bf16.msra.mxu0 %v2635
    %3084 = vmatprep.subr.bf16.mxu0 %v2640
    %3085 = vmatpush1.bf16.msra.mxu0 %v2639
    %3086 = vmatprep.subr.bf16.mxu0 %v2644
    %3087 = vmatpush1.bf16.msra.mxu0 %v2643
    %3088 = vmatprep.subr.bf16.mxu0 %v2648
    %3089 = vmatpush1.bf16.msra.mxu0 %v2647
    %3090 = vmatprep.subr.bf16.mxu0 %v2652
    %3091 = vmatpush1.bf16.msra.mxu0 %v2651
    %3092 = vmatprep.subr.bf16.mxu0 %v2656
    %3093 = vmatpush1.bf16.msra.mxu0 %v2655
    %3094 = vmatprep.subr.bf16.mxu0 %v2660
    %3095 = vmatpush1.bf16.msra.mxu0 %v2659
    %3096 = vmatprep.subr.bf16.mxu0 %v2664
    %3097 = vmatpush1.bf16.msra.mxu0 %v2663
    %3098 = vmatprep.subr.bf16.mxu0 %v2668
    %3099 = vmatpush1.bf16.msra.mxu0 %v2667
    %3100 = vmatprep.subr.bf16.mxu0 %v2672
    %3101 = vmatpush1.bf16.msra.mxu0 %v2671
    %3102 = vmatprep.subr.bf16.mxu0 %v2676
    %3103 = vmatpush1.bf16.msra.mxu0 %v2675
    %3104 = vmatprep.subr.bf16.mxu0 %v2680
    %3105 = vmatpush1.bf16.msra.mxu0 %v2679
    %3106 = vmatprep.subr.bf16.mxu0 %v2684
    %3107 = vmatpush1.bf16.msra.mxu0 %v2683
    %3108 = vmatprep.subr.bf16.mxu0 %v2688
    %3109 = vmatpush1.bf16.msra.mxu0 %v2687
    %3110 = vmatprep.subr.bf16.mxu0 %v2692
    %3111 = vmatpush1.bf16.msra.mxu0 %v2691
    %3112 = vmatprep.mubr.bf16.mxu0 %v1392
    %3113 = vmatmul.mubr.bf16.gmra.mrb[0].mxu0 %v1391
    %v3114 = vpop.f32.mrb[0].mxu0
    %v3115 = vadd.f32 %v3072, %v3114
    %v3116 = vpop.f32.mrb[0].mxu0
    %v3117 = vadd.f32 %v3074, %v3116
    %v3118 = vpop.f32.mrb[0].mxu0
    %v3119 = vadd.f32 %v3076, %v3118
    %v3120 = vpop.f32.mrb[0].mxu0
    %v3121 = vadd.f32 %v3078, %v3120
    %3122 = vdwg.mxu0
    %3123 = vmatprep.subr.bf16.mxu0 %v2442
    %3124 = vmatpush1.bf16.msra.mxu0 %v2441
    %3125 = vmatprep.subr.bf16.mxu0 %v2446
    %3126 = vmatpush1.bf16.msra.mxu0 %v2445
    %3127 = vmatprep.subr.bf16.mxu0 %v2450
    %3128 = vmatpush1.bf16.msra.mxu0 %v2449
    %3129 = vmatprep.subr.bf16.mxu0 %v2454
    %3130 = vmatpush1.bf16.msra.mxu0 %v2453
    %3131 = vmatprep.subr.bf16.mxu0 %v2458
    %3132 = vmatpush1.bf16.msra.mxu0 %v2457
    %3133 = vmatprep.subr.bf16.mxu0 %v2462
    %3134 = vmatpush1.bf16.msra.mxu0 %v2461
    %3135 = vmatprep.subr.bf16.mxu0 %v2466
    %3136 = vmatpush1.bf16.msra.mxu0 %v2465
    %3137 = vmatprep.subr.bf16.mxu0 %v2470
    %3138 = vmatpush1.bf16.msra.mxu0 %v2469
    %3139 = vmatprep.subr.bf16.mxu0 %v2474
    %3140 = vmatpush1.bf16.msra.mxu0 %v2473
    %3141 = vmatprep.subr.bf16.mxu0 %v2478
    %3142 = vmatpush1.bf16.msra.mxu0 %v2477
    %3143 = vmatprep.subr.bf16.mxu0 %v2482
    %3144 = vmatpush1.bf16.msra.mxu0 %v2481
    %3145 = vmatprep.subr.bf16.mxu0 %v2486
    %3146 = vmatpush1.bf16.msra.mxu0 %v2485
    %3147 = vmatprep.subr.bf16.mxu0 %v2490
    %3148 = vmatpush1.bf16.msra.mxu0 %v2489
    %3149 = vmatprep.subr.bf16.mxu0 %v2494
    %3150 = vmatpush1.bf16.msra.mxu0 %v2493
    %3151 = vmatprep.subr.bf16.mxu0 %v2498
    %3152 = vmatpush1.bf16.msra.mxu0 %v2497
    %3153 = vmatprep.subr.bf16.mxu0 %v2502
    %3154 = vmatpush1.bf16.msra.mxu0 %v2501
    %3155 = vmatprep.mubr.bf16.mxu0 %v1386
    %3156 = vmatmul.mubr.bf16.gmra.mrb[0].mxu0 %v1385
    %v3157 = vpop.f32.mrb[0].mxu0
    %v3158 = vadd.f32 %v1662, %v3157
    %v3159 = vpop.f32.mrb[0].mxu0
    %v3160 = vadd.f32 %v1666, %v3159
    %v3161 = vpop.f32.mrb[0].mxu0
    %v3162 = vadd.f32 %v1662, %v3161
    %v3163 = vpop.f32.mrb[0].mxu0
    %v3164 = vadd.f32 %v1666, %v3163
    %3165 = vdwg.mxu0
    %3166 = vmatprep.subr.bf16.mxu0 %v2506
    %3167 = vmatpush1.bf16.msra.mxu0 %v2505
    %3168 = vmatprep.subr.bf16.mxu0 %v2510
    %3169 = vmatpush1.bf16.msra.mxu0 %v2509
    %3170 = vmatprep.subr.bf16.mxu0 %v2514
    %3171 = vmatpush1.bf16.msra.mxu0 %v2513
    %3172 = vmatprep.subr.bf16.mxu0 %v2518
    %3173 = vmatpush1.bf16.msra.mxu0 %v2517
    %3174 = vmatprep.subr.bf16.mxu0 %v2522
    %3175 = vmatpush1.bf16.msra.mxu0 %v2521
    %3176 = vmatprep.subr.bf16.mxu0 %v2526
    %3177 = vmatpush1.bf16.msra.mxu0 %v2525
    %3178 = vmatprep.subr.bf16.mxu0 %v2530
    %3179 = vmatpush1.bf16.msra.mxu0 %v2529
    %3180 = vmatprep.subr.bf16.mxu0 %v2534
    %3181 = vmatpush1.bf16.msra.mxu0 %v2533
    %3182 = vmatprep.subr.bf16.mxu0 %v2538
    %3183 = vmatpush1.bf16.msra.mxu0 %v2537
    %3184 = vmatprep.subr.bf16.mxu0 %v2542
    %3185 = vmatpush1.bf16.msra.mxu0 %v2541
    %3186 = vmatprep.subr.bf16.mxu0 %v2546
    %3187 = vmatpush1.bf16.msra.mxu0 %v2545
    %3188 = vmatprep.subr.bf16.mxu0 %v2550
    %3189 = vmatpush1.bf16.msra.mxu0 %v2549
    %3190 = vmatprep.subr.bf16.mxu0 %v2554
    %3191 = vmatpush1.bf16.msra.mxu0 %v2553
    %3192 = vmatprep.subr.bf16.mxu0 %v2558
    %3193 = vmatpush1.bf16.msra.mxu0 %v2557
    %3194 = vmatprep.subr.bf16.mxu0 %v2562
    %3195 = vmatpush1.bf16.msra.mxu0 %v2561
    %3196 = vmatprep.subr.bf16.mxu0 %v2566
    %3197 = vmatpush1.bf16.msra.mxu0 %v2565
    %3198 = vmatprep.mubr.bf16.mxu0 %v1388
    %3199 = vmatmul.mubr.bf16.gmra.mrb[0].mxu0 %v1387
    %v3200 = vpop.f32.mrb[0].mxu0
    %v3201 = vadd.f32 %v3158, %v3200
    %v3202 = vpop.f32.mrb[0].mxu0
    %v3203 = vadd.f32 %v3160, %v3202
    %v3204 = vpop.f32.mrb[0].mxu0
    %v3205 = vadd.f32 %v3162, %v3204
    %v3206 = vpop.f32.mrb[0].mxu0
    %v3207 = vadd.f32 %v3164, %v3206
    %3208 = vdwg.mxu0
    %3209 = vmatprep.subr.bf16.mxu0 %v2570
    %3210 = vmatpush1.bf16.msra.mxu0 %v2569
    %3211 = vmatprep.subr.bf16.mxu0 %v2574
    %3212 = vmatpush1.bf16.msra.mxu0 %v2573
    %3213 = vmatprep.subr.bf16.mxu0 %v2578
    %3214 = vmatpush1.bf16.msra.mxu0 %v2577
    %3215 = vmatprep.subr.bf16.mxu0 %v2582
    %3216 = vmatpush1.bf16.msra.mxu0 %v2581
    %3217 = vmatprep.subr.bf16.mxu0 %v2586
    %3218 = vmatpush1.bf16.msra.mxu0 %v2585
    %3219 = vmatprep.subr.bf16.mxu0 %v2590
    %3220 = vmatpush1.bf16.msra.mxu0 %v2589
    %3221 = vmatprep.subr.bf16.mxu0 %v2594
    %3222 = vmatpush1.bf16.msra.mxu0 %v2593
    %3223 = vmatprep.subr.bf16.mxu0 %v2598
    %3224 = vmatpush1.bf16.msra.mxu0 %v2597
    %3225 = vmatprep.subr.bf16.mxu0 %v2602
    %3226 = vmatpush1.bf16.msra.mxu0 %v2601
    %3227 = vmatprep.subr.bf16.mxu0 %v2606
    %3228 = vmatpush1.bf16.msra.mxu0 %v2605
    %3229 = vmatprep.subr.bf16.mxu0 %v2610
    %3230 = vmatpush1.bf16.msra.mxu0 %v2609
    %3231 = vmatprep.subr.bf16.mxu0 %v2614
    %3232 = vmatpush1.bf16.msra.mxu0 %v2613
    %3233 = vmatprep.subr.bf16.mxu0 %v2618
    %3234 = vmatpush1.bf16.msra.mxu0 %v2617
    %3235 = vmatprep.subr.bf16.mxu0 %v2622
    %3236 = vmatpush1.bf16.msra.mxu0 %v2621
    %3237 = vmatprep.subr.bf16.mxu0 %v2626
    %3238 = vmatpush1.bf16.msra.mxu0 %v2625
    %3239 = vmatprep.subr.bf16.mxu0 %v2630
    %3240 = vmatpush1.bf16.msra.mxu0 %v2629
    %3241 = vmatprep.mubr.bf16.mxu0 %v1390
    %3242 = vmatmul.mubr.bf16.gmra.mrb[0].mxu0 %v1389
    %v3243 = vpop.f32.mrb[0].mxu0
    %v3244 = vadd.f32 %v3201, %v3243
    %v3245 = vpop.f32.mrb[0].mxu0
    %v3246 = vadd.f32 %v3203, %v3245
    %v3247 = vpop.f32.mrb[0].mxu0
    %v3248 = vadd.f32 %v3205, %v3247
    %v3249 = vpop.f32.mrb[0].mxu0
    %v3250 = vadd.f32 %v3207, %v3249
    %3251 = vdwg.mxu0
    %3252 = vmatprep.subr.bf16.mxu0 %v2634
    %3253 = vmatpush1.bf16.msra.mxu0 %v2633
    %3254 = vmatprep.subr.bf16.mxu0 %v2638
    %3255 = vmatpush1.bf16.msra.mxu0 %v2637
    %3256 = vmatprep.subr.bf16.mxu0 %v2642
    %3257 = vmatpush1.bf16.msra.mxu0 %v2641
    %3258 = vmatprep.subr.bf16.mxu0 %v2646
    %3259 = vmatpush1.bf16.msra.mxu0 %v2645
    %3260 = vmatprep.subr.bf16.mxu0 %v2650
    %3261 = vmatpush1.bf16.msra.mxu0 %v2649
    %3262 = vmatprep.subr.bf16.mxu0 %v2654
    %3263 = vmatpush1.bf16.msra.mxu0 %v2653
    %3264 = vmatprep.subr.bf16.mxu0 %v2658
    %3265 = vmatpush1.bf16.msra.mxu0 %v2657
    %3266 = vmatprep.subr.bf16.mxu0 %v2662
    %3267 = vmatpush1.bf16.msra.mxu0 %v2661
    %3268 = vmatprep.subr.bf16.mxu0 %v2666
    %3269 = vmatpush1.bf16.msra.mxu0 %v2665
    %3270 = vmatprep.subr.bf16.mxu0 %v2670
    %3271 = vmatpush1.bf16.msra.mxu0 %v2669
    %3272 = vmatprep.subr.bf16.mxu0 %v2674
    %3273 = vmatpush1.bf16.msra.mxu0 %v2673
    %3274 = vmatprep.subr.bf16.mxu0 %v2678
    %3275 = vmatpush1.bf16.msra.mxu0 %v2677
    %3276 = vmatprep.subr.bf16.mxu0 %v2682
    %3277 = vmatpush1.bf16.msra.mxu0 %v2681
    %3278 = vmatprep.subr.bf16.mxu0 %v2686
    %3279 = vmatpush1.bf16.msra.mxu0 %v2685
    %3280 = vmatprep.subr.bf16.mxu0 %v2690
    %3281 = vmatpush1.bf16.msra.mxu0 %v2689
    %3282 = vmatprep.subr.bf16.mxu0 %v2694
    %3283 = vmatpush1.bf16.msra.mxu0 %v2693
    %3284 = vmatprep.mubr.bf16.mxu0 %v1392
    %3285 = vmatmul.mubr.bf16.gmra.mrb[0].mxu0 %v1391
    %v3286 = vpop.f32.mrb[0].mxu0
    %v3287 = vadd.f32 %v3244, %v3286
    %v3288 = vpop.f32.mrb[0].mxu0
    %v3289 = vadd.f32 %v3246, %v3288
    %v3290 = vpop.f32.mrb[0].mxu0
    %v3291 = vadd.f32 %v3248, %v3290
    %v3292 = vpop.f32.mrb[0].mxu0
    %v3293 = vadd.f32 %v3250, %v3292
    %3294 = vdwg.mxu0
    %v3295 = vadd.f32 %v3115, %v3117
    %v3296 = vadd.f32 %v3295, %v3287
    %v3297 = vadd.f32 %v3296, %v3289
    %3298 = vadd.xlane.f32.xlu0 %v3297
    %v3299 = vpop.xlane.xlu0 %3298
    %v3300 = vadd.f32 %v3119, %v3121
    %v3301 = vadd.f32 %v3300, %v3291
    %v3302 = vadd.f32 %v3301, %v3293
    %3303 = vadd.xlane.f32.xlu0 %v3302
    %v3304 = vpop.xlane.xlu0 %3303
    %v3305 = vmul.f32 %v3299, 0.001953125
    %v3306 = vmul.f32 %v3304, 0.001953125
    %v3307 = vmul.f32 %v3115, %v3115
    %v3308 = vmul.f32 %v3117, %v3117
    %v3309 = vmul.f32 %v3287, %v3287
    %v3310 = vmul.f32 %v3289, %v3289
    %v3311 = vmul.f32 %v3119, %v3119
    %v3312 = vmul.f32 %v3121, %v3121
    %v3313 = vmul.f32 %v3291, %v3291
    %v3314 = vmul.f32 %v3293, %v3293
    %v3315 = vadd.f32 %v3307, %v3308
    %v3316 = vadd.f32 %v3315, %v3309
    %v3317 = vadd.f32 %v3316, %v3310
    %3318 = vadd.xlane.f32.xlu0 %v3317
    %v3319 = vpop.xlane.xlu0 %3318
    %v3320 = vadd.f32 %v3311, %v3312
    %v3321 = vadd.f32 %v3320, %v3313
    %v3322 = vadd.f32 %v3321, %v3314
    %3323 = vadd.xlane.f32.xlu0 %v3322
    %v3324 = vpop.xlane.xlu0 %3323
    %v3325 = vmul.f32 %v3319, 0.001953125
    %v3326 = vmul.f32 %v3324, 0.001953125
    %v3327 = vmul.f32 %v3305, %v3305
    %v3328 = vmul.f32 %v3306, %v3306
    %v3329 = vsub.f32 %v3325, %v3327
    %v3330 = vsub.f32 %v3326, %v3328
    %v3331 = vmax.f32 %v3329, 0.0
    %v3332 = vmax.f32 %v3330, 0.0
    %v3333 = vsub.f32 %v3115, %v3305
    %v3334 = vsub.f32 %v3117, %v3305
    %v3335 = vsub.f32 %v3287, %v3305
    %v3336 = vsub.f32 %v3289, %v3305
    %v3337 = vsub.f32 %v3119, %v3306
    %v3338 = vsub.f32 %v3121, %v3306
    %v3339 = vsub.f32 %v3291, %v3306
    %v3340 = vsub.f32 %v3293, %v3306
    %v3341 = vadd.f32 %v3331, 1e-05
    %v3342 = vadd.f32 %v3332, 1e-05
    %v3343 = vrsqrt.pop %v3341
    %v3344 = vrsqrt.pop %v3342
    %v3345 = vmul.f32 %v3333, %v3343
    %v3346 = vmul.f32 %v3334, %v3343
    %v3347 = vmul.f32 %v3335, %v3343
    %v3348 = vmul.f32 %v3336, %v3343
    %v3349 = vmul.f32 %v3337, %v3344
    %v3350 = vmul.f32 %v3338, %v3344
    %v3351 = vmul.f32 %v3339, %v3344
    %v3352 = vmul.f32 %v3340, %v3344
    %v3353 = vld [vmem:[%s7] sm:$0xf]
    %v3355 = vlaneseq
    %v3356 = vshrl.u32 %v3355, 7
    %v3357 = vsub.s32 0, %v3356
    %v3358 = vrot.slane %v3353, %v3357
    %v3359 = vlaneseq
    %v3360 = vshrl.u32 %v3359, 7
    %v3361 = vsub.s32 1, %v3360
    %v3362 = vrot.slane %v3353, %v3361
    %v3363 = vlaneseq
    %v3364 = vshrl.u32 %v3363, 7
    %v3365 = vsub.s32 2, %v3364
    %v3366 = vrot.slane %v3353, %v3365
    %v3367 = vlaneseq
    %v3368 = vshrl.u32 %v3367, 7
    %v3369 = vsub.s32 3, %v3368
    %v3370 = vrot.slane %v3353, %v3369
    %v3375 = vmul.f32 %v3345, %v3358
    %v3376 = vmul.f32 %v3346, %v3362
    %v3377 = vmul.f32 %v3347, %v3366
    %v3378 = vmul.f32 %v3348, %v3370
    %v3379 = vmul.f32 %v3349, %v3358
    %v3380 = vmul.f32 %v3350, %v3362
    %v3381 = vmul.f32 %v3351, %v3366
    %v3382 = vmul.f32 %v3352, %v3370
    %v3383 = vld [vmem:[#allocation11] sm:$0xf]
    %v3385 = vlaneseq
    %v3386 = vshrl.u32 %v3385, 7
    %v3387 = vsub.s32 0, %v3386
    %v3388 = vrot.slane %v3383, %v3387
    %v3389 = vlaneseq
    %v3390 = vshrl.u32 %v3389, 7
    %v3391 = vsub.s32 1, %v3390
    %v3392 = vrot.slane %v3383, %v3391
    %v3393 = vlaneseq
    %v3394 = vshrl.u32 %v3393, 7
    %v3395 = vsub.s32 2, %v3394
    %v3396 = vrot.slane %v3383, %v3395
    %v3397 = vlaneseq
    %v3398 = vshrl.u32 %v3397, 7
    %v3399 = vsub.s32 3, %v3398
    %v3400 = vrot.slane %v3383, %v3399
    %v3405 = vadd.f32 %v3375, %v3388
    %v3406 = vadd.f32 %v3376, %v3392
    %v3407 = vadd.f32 %v3377, %v3396
    %v3408 = vadd.f32 %v3378, %v3400
    %v3409 = vadd.f32 %v3379, %v3388
    %v3410 = vadd.f32 %v3380, %v3392
    %v3411 = vadd.f32 %v3381, %v3396
    %v3412 = vadd.f32 %v3382, %v3400
    %v3413 = vmax.f32 %v3405, 0.0
    %v3414 = vmax.f32 %v3406, 0.0
    %v3415 = vmax.f32 %v3407, 0.0
    %v3416 = vmax.f32 %v3408, 0.0
    %v3417 = vmax.f32 %v3409, 0.0
    %v3418 = vmax.f32 %v3410, 0.0
    %v3419 = vmax.f32 %v3411, 0.0
    %v3420 = vmax.f32 %v3412, 0.0
    %v3421 = vpack.c.bf16 %v3417, %v3413
    %v3422 = vpack.c.bf16 %v3418, %v3414
    %v3423 = vpack.c.bf16 %v3419, %v3415
    %v3424 = vpack.c.bf16 %v3420, %v3416
    %v3425 = vld [vmem:[#allocation12] sm:$0xff]
    %v3426 = vld [vmem:[#allocation12 + $0x8] sm:$0xff]
    %v3427 = vld [vmem:[#allocation12 + $0x10] sm:$0xff]
    %v3428 = vld [vmem:[#allocation12 + $0x18] sm:$0xff]
    %v3429 = vld [vmem:[#allocation12 + $0x20] sm:$0xff]
    %v3430 = vld [vmem:[#allocation12 + $0x28] sm:$0xff]
    %v3431 = vld [vmem:[#allocation12 + $0x30] sm:$0xff]
    %v3432 = vld [vmem:[#allocation12 + $0x38] sm:$0xff]
    %v3433 = vld [vmem:[#allocation12 + $0x40] sm:$0xff]
    %v3434 = vld [vmem:[#allocation12 + $0x48] sm:$0xff]
    %v3435 = vld [vmem:[#allocation12 + $0x50] sm:$0xff]
    %v3436 = vld [vmem:[#allocation12 + $0x58] sm:$0xff]
    %v3437 = vld [vmem:[#allocation12 + $0x60] sm:$0xff]
    %v3438 = vld [vmem:[#allocation12 + $0x68] sm:$0xff]
    %v3439 = vld [vmem:[#allocation12 + $0x70] sm:$0xff]
    %v3440 = vld [vmem:[#allocation12 + $0x78] sm:$0xff]
    %v3441 = vld [vmem:[#allocation12 + $0x80] sm:$0xff]
    %v3442 = vld [vmem:[#allocation12 + $0x88] sm:$0xff]
    %v3443 = vld [vmem:[#allocation12 + $0x90] sm:$0xff]
    %v3444 = vld [vmem:[#allocation12 + $0x98] sm:$0xff]
    %v3445 = vld [vmem:[#allocation12 + $0xa0] sm:$0xff]
    %v3446 = vld [vmem:[#allocation12 + $0xa8] sm:$0xff]
    %v3447 = vld [vmem:[#allocation12 + $0xb0] sm:$0xff]
    %v3448 = vld [vmem:[#allocation12 + $0xb8] sm:$0xff]
    %v3449 = vld [vmem:[#allocation12 + $0xc0] sm:$0xff]
    %v3450 = vld [vmem:[#allocation12 + $0xc8] sm:$0xff]
    %v3451 = vld [vmem:[#allocation12 + $0xd0] sm:$0xff]
    %v3452 = vld [vmem:[#allocation12 + $0xd8] sm:$0xff]
    %v3453 = vld [vmem:[#allocation12 + $0xe0] sm:$0xff]
    %v3454 = vld [vmem:[#allocation12 + $0xe8] sm:$0xff]
    %v3455 = vld [vmem:[#allocation12 + $0xf0] sm:$0xff]
    %v3456 = vld [vmem:[#allocation12 + $0xf8] sm:$0xff]
    %v3457 = vld [vmem:[#allocation12 + $0x100] sm:$0xff]
    %v3458 = vld [vmem:[#allocation12 + $0x108] sm:$0xff]
    %v3459 = vld [vmem:[#allocation12 + $0x110] sm:$0xff]
    %v3460 = vld [vmem:[#allocation12 + $0x118] sm:$0xff]
    %v3461 = vld [vmem:[#allocation12 + $0x120] sm:$0xff]
    %v3462 = vld [vmem:[#allocation12 + $0x128] sm:$0xff]
    %v3463 = vld [vmem:[#allocation12 + $0x130] sm:$0xff]
    %v3464 = vld [vmem:[#allocation12 + $0x138] sm:$0xff]
    %v3465 = vld [vmem:[#allocation12 + $0x140] sm:$0xff]
    %v3466 = vld [vmem:[#allocation12 + $0x148] sm:$0xff]
    %v3467 = vld [vmem:[#allocation12 + $0x150] sm:$0xff]
    %v3468 = vld [vmem:[#allocation12 + $0x158] sm:$0xff]
    %v3469 = vld [vmem:[#allocation12 + $0x160] sm:$0xff]
    %v3470 = vld [vmem:[#allocation12 + $0x168] sm:$0xff]
    %v3471 = vld [vmem:[#allocation12 + $0x170] sm:$0xff]
    %v3472 = vld [vmem:[#allocation12 + $0x178] sm:$0xff]
    %v3473 = vld [vmem:[#allocation12 + $0x180] sm:$0xff]
    %v3474 = vld [vmem:[#allocation12 + $0x188] sm:$0xff]
    %v3475 = vld [vmem:[#allocation12 + $0x190] sm:$0xff]
    %v3476 = vld [vmem:[#allocation12 + $0x198] sm:$0xff]
    %v3477 = vld [vmem:[#allocation12 + $0x1a0] sm:$0xff]
    %v3478 = vld [vmem:[#allocation12 + $0x1a8] sm:$0xff]
    %v3479 = vld [vmem:[#allocation12 + $0x1b0] sm:$0xff]
    %v3480 = vld [vmem:[#allocation12 + $0x1b8] sm:$0xff]
    %v3481 = vld [vmem:[#allocation12 + $0x1c0] sm:$0xff]
    %v3482 = vld [vmem:[#allocation12 + $0x1c8] sm:$0xff]
    %v3483 = vld [vmem:[#allocation12 + $0x1d0] sm:$0xff]
    %v3484 = vld [vmem:[#allocation12 + $0x1d8] sm:$0xff]
    %v3485 = vld [vmem:[#allocation12 + $0x1e0] sm:$0xff]
    %v3486 = vld [vmem:[#allocation12 + $0x1e8] sm:$0xff]
    %v3487 = vld [vmem:[#allocation12 + $0x1f0] sm:$0xff]
    %v3488 = vld [vmem:[#allocation12 + $0x1f8] sm:$0xff]
    %v3489 = vld [vmem:[%s10] sm:$0x3]
    %v3491 = vlaneseq
    %v3492 = vshrl.u32 %v3491, 7
    %v3493 = vsub.s32 0, %v3492
    %v3494 = vrot.slane %v3489, %v3493
    %v3495 = vlaneseq
    %v3496 = vshrl.u32 %v3495, 7
    %v3497 = vsub.s32 1, %v3496
    %v3498 = vrot.slane %v3489, %v3497
    %v3565 = vunpack.c.l.b16 %v3425
    %v3566 = vunpack.c.h.b16 %v3425
    %v3567 = vunpack.c.l.b16 %v3426
    %v3568 = vunpack.c.h.b16 %v3426
    %v3569 = vunpack.c.l.b16 %v3427
    %v3570 = vunpack.c.h.b16 %v3427
    %v3571 = vunpack.c.l.b16 %v3428
    %v3572 = vunpack.c.h.b16 %v3428
    %v3573 = vunpack.c.l.b16 %v3429
    %v3574 = vunpack.c.h.b16 %v3429
    %v3575 = vunpack.c.l.b16 %v3430
    %v3576 = vunpack.c.h.b16 %v3430
    %v3577 = vunpack.c.l.b16 %v3431
    %v3578 = vunpack.c.h.b16 %v3431
    %v3579 = vunpack.c.l.b16 %v3432
    %v3580 = vunpack.c.h.b16 %v3432
    %v3581 = vunpack.c.l.b16 %v3433
    %v3582 = vunpack.c.h.b16 %v3433
    %v3583 = vunpack.c.l.b16 %v3434
    %v3584 = vunpack.c.h.b16 %v3434
    %v3585 = vunpack.c.l.b16 %v3435
    %v3586 = vunpack.c.h.b16 %v3435
    %v3587 = vunpack.c.l.b16 %v3436
    %v3588 = vunpack.c.h.b16 %v3436
    %v3589 = vunpack.c.l.b16 %v3437
    %v3590 = vunpack.c.h.b16 %v3437
    %v3591 = vunpack.c.l.b16 %v3438
    %v3592 = vunpack.c.h.b16 %v3438
    %v3593 = vunpack.c.l.b16 %v3439
    %v3594 = vunpack.c.h.b16 %v3439
    %v3595 = vunpack.c.l.b16 %v3440
    %v3596 = vunpack.c.h.b16 %v3440
    %v3597 = vunpack.c.l.b16 %v3441
    %v3598 = vunpack.c.h.b16 %v3441
    %v3599 = vunpack.c.l.b16 %v3442
    %v3600 = vunpack.c.h.b16 %v3442
    %v3601 = vunpack.c.l.b16 %v3443
    %v3602 = vunpack.c.h.b16 %v3443
    %v3603 = vunpack.c.l.b16 %v3444
    %v3604 = vunpack.c.h.b16 %v3444
    %v3605 = vunpack.c.l.b16 %v3445
    %v3606 = vunpack.c.h.b16 %v3445
    %v3607 = vunpack.c.l.b16 %v3446
    %v3608 = vunpack.c.h.b16 %v3446
    %v3609 = vunpack.c.l.b16 %v3447
    %v3610 = vunpack.c.h.b16 %v3447
    %v3611 = vunpack.c.l.b16 %v3448
    %v3612 = vunpack.c.h.b16 %v3448
    %v3613 = vunpack.c.l.b16 %v3449
    %v3614 = vunpack.c.h.b16 %v3449
    %v3615 = vunpack.c.l.b16 %v3450
    %v3616 = vunpack.c.h.b16 %v3450
    %v3617 = vunpack.c.l.b16 %v3451
    %v3618 = vunpack.c.h.b16 %v3451
    %v3619 = vunpack.c.l.b16 %v3452
    %v3620 = vunpack.c.h.b16 %v3452
    %v3621 = vunpack.c.l.b16 %v3453
    %v3622 = vunpack.c.h.b16 %v3453
    %v3623 = vunpack.c.l.b16 %v3454
    %v3624 = vunpack.c.h.b16 %v3454
    %v3625 = vunpack.c.l.b16 %v3455
    %v3626 = vunpack.c.h.b16 %v3455
    %v3627 = vunpack.c.l.b16 %v3456
    %v3628 = vunpack.c.h.b16 %v3456
    %v3629 = vunpack.c.l.b16 %v3457
    %v3630 = vunpack.c.h.b16 %v3457
    %v3631 = vunpack.c.l.b16 %v3458
    %v3632 = vunpack.c.h.b16 %v3458
    %v3633 = vunpack.c.l.b16 %v3459
    %v3634 = vunpack.c.h.b16 %v3459
    %v3635 = vunpack.c.l.b16 %v3460
    %v3636 = vunpack.c.h.b16 %v3460
    %v3637 = vunpack.c.l.b16 %v3461
    %v3638 = vunpack.c.h.b16 %v3461
    %v3639 = vunpack.c.l.b16 %v3462
    %v3640 = vunpack.c.h.b16 %v3462
    %v3641 = vunpack.c.l.b16 %v3463
    %v3642 = vunpack.c.h.b16 %v3463
    %v3643 = vunpack.c.l.b16 %v3464
    %v3644 = vunpack.c.h.b16 %v3464
    %v3645 = vunpack.c.l.b16 %v3465
    %v3646 = vunpack.c.h.b16 %v3465
    %v3647 = vunpack.c.l.b16 %v3466
    %v3648 = vunpack.c.h.b16 %v3466
    %v3649 = vunpack.c.l.b16 %v3467
    %v3650 = vunpack.c.h.b16 %v3467
    %v3651 = vunpack.c.l.b16 %v3468
    %v3652 = vunpack.c.h.b16 %v3468
    %v3653 = vunpack.c.l.b16 %v3469
    %v3654 = vunpack.c.h.b16 %v3469
    %v3655 = vunpack.c.l.b16 %v3470
    %v3656 = vunpack.c.h.b16 %v3470
    %v3657 = vunpack.c.l.b16 %v3471
    %v3658 = vunpack.c.h.b16 %v3471
    %v3659 = vunpack.c.l.b16 %v3472
    %v3660 = vunpack.c.h.b16 %v3472
    %v3661 = vunpack.c.l.b16 %v3473
    %v3662 = vunpack.c.h.b16 %v3473
    %v3663 = vunpack.c.l.b16 %v3474
    %v3664 = vunpack.c.h.b16 %v3474
    %v3665 = vunpack.c.l.b16 %v3475
    %v3666 = vunpack.c.h.b16 %v3475
    %v3667 = vunpack.c.l.b16 %v3476
    %v3668 = vunpack.c.h.b16 %v3476
    %v3669 = vunpack.c.l.b16 %v3477
    %v3670 = vunpack.c.h.b16 %v3477
    %v3671 = vunpack.c.l.b16 %v3478
    %v3672 = vunpack.c.h.b16 %v3478
    %v3673 = vunpack.c.l.b16 %v3479
    %v3674 = vunpack.c.h.b16 %v3479
    %v3675 = vunpack.c.l.b16 %v3480
    %v3676 = vunpack.c.h.b16 %v3480
    %v3677 = vunpack.c.l.b16 %v3481
    %v3678 = vunpack.c.h.b16 %v3481
    %v3679 = vunpack.c.l.b16 %v3482
    %v3680 = vunpack.c.h.b16 %v3482
    %v3681 = vunpack.c.l.b16 %v3483
    %v3682 = vunpack.c.h.b16 %v3483
    %v3683 = vunpack.c.l.b16 %v3484
    %v3684 = vunpack.c.h.b16 %v3484
    %v3685 = vunpack.c.l.b16 %v3485
    %v3686 = vunpack.c.h.b16 %v3485
    %v3687 = vunpack.c.l.b16 %v3486
    %v3688 = vunpack.c.h.b16 %v3486
    %v3689 = vunpack.c.l.b16 %v3487
    %v3690 = vunpack.c.h.b16 %v3487
    %v3691 = vunpack.c.l.b16 %v3488
    %v3692 = vunpack.c.h.b16 %v3488
    %v3693 = vpack.c.b16 %v3567, %v3565
    %v3694 = vpack.c.b16 %v3568, %v3566
    %v3695 = vpack.c.b16 %v3571, %v3569
    %v3696 = vpack.c.b16 %v3572, %v3570
    %v3697 = vpack.c.b16 %v3575, %v3573
    %v3698 = vpack.c.b16 %v3576, %v3574
    %v3699 = vpack.c.b16 %v3579, %v3577
    %v3700 = vpack.c.b16 %v3580, %v3578
    %v3701 = vpack.c.b16 %v3583, %v3581
    %v3702 = vpack.c.b16 %v3584, %v3582
    %v3703 = vpack.c.b16 %v3587, %v3585
    %v3704 = vpack.c.b16 %v3588, %v3586
    %v3705 = vpack.c.b16 %v3591, %v3589
    %v3706 = vpack.c.b16 %v3592, %v3590
    %v3707 = vpack.c.b16 %v3595, %v3593
    %v3708 = vpack.c.b16 %v3596, %v3594
    %v3709 = vpack.c.b16 %v3599, %v3597
    %v3710 = vpack.c.b16 %v3600, %v3598
    %v3711 = vpack.c.b16 %v3603, %v3601
    %v3712 = vpack.c.b16 %v3604, %v3602
    %v3713 = vpack.c.b16 %v3607, %v3605
    %v3714 = vpack.c.b16 %v3608, %v3606
    %v3715 = vpack.c.b16 %v3611, %v3609
    %v3716 = vpack.c.b16 %v3612, %v3610
    %v3717 = vpack.c.b16 %v3615, %v3613
    %v3718 = vpack.c.b16 %v3616, %v3614
    %v3719 = vpack.c.b16 %v3619, %v3617
    %v3720 = vpack.c.b16 %v3620, %v3618
    %v3721 = vpack.c.b16 %v3623, %v3621
    %v3722 = vpack.c.b16 %v3624, %v3622
    %v3723 = vpack.c.b16 %v3627, %v3625
    %v3724 = vpack.c.b16 %v3628, %v3626
    %v3725 = vpack.c.b16 %v3631, %v3629
    %v3726 = vpack.c.b16 %v3632, %v3630
    %v3727 = vpack.c.b16 %v3635, %v3633
    %v3728 = vpack.c.b16 %v3636, %v3634
    %v3729 = vpack.c.b16 %v3639, %v3637
    %v3730 = vpack.c.b16 %v3640, %v3638
    %v3731 = vpack.c.b16 %v3643, %v3641
    %v3732 = vpack.c.b16 %v3644, %v3642
    %v3733 = vpack.c.b16 %v3647, %v3645
    %v3734 = vpack.c.b16 %v3648, %v3646
    %v3735 = vpack.c.b16 %v3651, %v3649
    %v3736 = vpack.c.b16 %v3652, %v3650
    %v3737 = vpack.c.b16 %v3655, %v3653
    %v3738 = vpack.c.b16 %v3656, %v3654
    %v3739 = vpack.c.b16 %v3659, %v3657
    %v3740 = vpack.c.b16 %v3660, %v3658
    %v3741 = vpack.c.b16 %v3663, %v3661
    %v3742 = vpack.c.b16 %v3664, %v3662
    %v3743 = vpack.c.b16 %v3667, %v3665
    %v3744 = vpack.c.b16 %v3668, %v3666
    %v3745 = vpack.c.b16 %v3671, %v3669
    %v3746 = vpack.c.b16 %v3672, %v3670
    %v3747 = vpack.c.b16 %v3675, %v3673
    %v3748 = vpack.c.b16 %v3676, %v3674
    %v3749 = vpack.c.b16 %v3679, %v3677
    %v3750 = vpack.c.b16 %v3680, %v3678
    %v3751 = vpack.c.b16 %v3683, %v3681
    %v3752 = vpack.c.b16 %v3684, %v3682
    %v3753 = vpack.c.b16 %v3687, %v3685
    %v3754 = vpack.c.b16 %v3688, %v3686
    %v3755 = vpack.c.b16 %v3691, %v3689
    %v3756 = vpack.c.b16 %v3692, %v3690
    %3821 = vmatprep.subr.bf16.mxu0 %v3694
    %3822 = vmatpush1.bf16.msra.mxu0 %v3693
    %3823 = vmatprep.subr.bf16.mxu0 %v3696
    %3824 = vmatpush1.bf16.msra.mxu0 %v3695
    %3825 = vmatprep.subr.bf16.mxu0 %v3698
    %3826 = vmatpush1.bf16.msra.mxu0 %v3697
    %3827 = vmatprep.subr.bf16.mxu0 %v3700
    %3828 = vmatpush1.bf16.msra.mxu0 %v3699
    %3829 = vmatprep.subr.bf16.mxu0 %v3702
    %3830 = vmatpush1.bf16.msra.mxu0 %v3701
    %3831 = vmatprep.subr.bf16.mxu0 %v3704
    %3832 = vmatpush1.bf16.msra.mxu0 %v3703
    %3833 = vmatprep.subr.bf16.mxu0 %v3706
    %3834 = vmatpush1.bf16.msra.mxu0 %v3705
    %3835 = vmatprep.subr.bf16.mxu0 %v3708
    %3836 = vmatpush1.bf16.msra.mxu0 %v3707
    %3837 = vmatprep.subr.bf16.mxu0 %v3710
    %3838 = vmatpush1.bf16.msra.mxu0 %v3709
    %3839 = vmatprep.subr.bf16.mxu0 %v3712
    %3840 = vmatpush1.bf16.msra.mxu0 %v3711
    %3841 = vmatprep.subr.bf16.mxu0 %v3714
    %3842 = vmatpush1.bf16.msra.mxu0 %v3713
    %3843 = vmatprep.subr.bf16.mxu0 %v3716
    %3844 = vmatpush1.bf16.msra.mxu0 %v3715
    %3845 = vmatprep.subr.bf16.mxu0 %v3718
    %3846 = vmatpush1.bf16.msra.mxu0 %v3717
    %3847 = vmatprep.subr.bf16.mxu0 %v3720
    %3848 = vmatpush1.bf16.msra.mxu0 %v3719
    %3849 = vmatprep.subr.bf16.mxu0 %v3722
    %3850 = vmatpush1.bf16.msra.mxu0 %v3721
    %3851 = vmatprep.subr.bf16.mxu0 %v3724
    %3852 = vmatpush1.bf16.msra.mxu0 %v3723
    %3853 = vmatprep.mubr.bf16.mxu0 %v3422
    %3854 = vmatmul.mubr.bf16.gmra.mrb[0].mxu0 %v3421
    %v3855 = vpop.f32.mrb[0].mxu0
    %v3856 = vadd.f32 %v3494, %v3855
    %v3857 = vpop.f32.mrb[0].mxu0
    %v3858 = vadd.f32 %v3498, %v3857
    %v3859 = vpop.f32.mrb[0].mxu0
    %v3860 = vadd.f32 %v3494, %v3859
    %v3861 = vpop.f32.mrb[0].mxu0
    %v3862 = vadd.f32 %v3498, %v3861
    %3863 = vdwg.mxu0
    %3864 = vmatprep.subr.bf16.mxu0 %v3726
    %3865 = vmatpush1.bf16.msra.mxu0 %v3725
    %3866 = vmatprep.subr.bf16.mxu0 %v3728
    %3867 = vmatpush1.bf16.msra.mxu0 %v3727
    %3868 = vmatprep.subr.bf16.mxu0 %v3730
    %3869 = vmatpush1.bf16.msra.mxu0 %v3729
    %3870 = vmatprep.subr.bf16.mxu0 %v3732
    %3871 = vmatpush1.bf16.msra.mxu0 %v3731
    %3872 = vmatprep.subr.bf16.mxu0 %v3734
    %3873 = vmatpush1.bf16.msra.mxu0 %v3733
    %3874 = vmatprep.subr.bf16.mxu0 %v3736
    %3875 = vmatpush1.bf16.msra.mxu0 %v3735
    %3876 = vmatprep.subr.bf16.mxu0 %v3738
    %3877 = vmatpush1.bf16.msra.mxu0 %v3737
    %3878 = vmatprep.subr.bf16.mxu0 %v3740
    %3879 = vmatpush1.bf16.msra.mxu0 %v3739
    %3880 = vmatprep.subr.bf16.mxu0 %v3742
    %3881 = vmatpush1.bf16.msra.mxu0 %v3741
    %3882 = vmatprep.subr.bf16.mxu0 %v3744
    %3883 = vmatpush1.bf16.msra.mxu0 %v3743
    %3884 = vmatprep.subr.bf16.mxu0 %v3746
    %3885 = vmatpush1.bf16.msra.mxu0 %v3745
    %3886 = vmatprep.subr.bf16.mxu0 %v3748
    %3887 = vmatpush1.bf16.msra.mxu0 %v3747
    %3888 = vmatprep.subr.bf16.mxu0 %v3750
    %3889 = vmatpush1.bf16.msra.mxu0 %v3749
    %3890 = vmatprep.subr.bf16.mxu0 %v3752
    %3891 = vmatpush1.bf16.msra.mxu0 %v3751
    %3892 = vmatprep.subr.bf16.mxu0 %v3754
    %3893 = vmatpush1.bf16.msra.mxu0 %v3753
    %3894 = vmatprep.subr.bf16.mxu0 %v3756
    %3895 = vmatpush1.bf16.msra.mxu0 %v3755
    %3896 = vmatprep.mubr.bf16.mxu0 %v3424
    %3897 = vmatmul.mubr.bf16.gmra.mrb[0].mxu0 %v3423
    %v3898 = vpop.f32.mrb[0].mxu0
    %v3899 = vadd.f32 %v3856, %v3898
    %v3900 = vpop.f32.mrb[0].mxu0
    %v3901 = vadd.f32 %v3858, %v3900
    %v3902 = vpop.f32.mrb[0].mxu0
    %v3903 = vadd.f32 %v3860, %v3902
    %v3904 = vpop.f32.mrb[0].mxu0
    %v3905 = vadd.f32 %v3862, %v3904
    %3906 = vdwg.mxu0
    %v3907 = vadd.f32 %v3899, %v3901
    %3908 = vadd.xlane.f32.xlu0 %v3907
    %v3909 = vpop.xlane.xlu0 %3908
    %v3910 = vadd.f32 %v3903, %v3905
    %3911 = vadd.xlane.f32.xlu0 %v3910
    %v3912 = vpop.xlane.xlu0 %3911
    %v3913 = vmul.f32 %v3909, 0.00390625
    %v3914 = vmul.f32 %v3912, 0.00390625
    %v3915 = vmul.f32 %v3899, %v3899
    %v3916 = vmul.f32 %v3901, %v3901
    %v3917 = vmul.f32 %v3903, %v3903
    %v3918 = vmul.f32 %v3905, %v3905
    %v3919 = vadd.f32 %v3915, %v3916
    %3920 = vadd.xlane.f32.xlu0 %v3919
    %v3921 = vpop.xlane.xlu0 %3920
    %v3922 = vadd.f32 %v3917, %v3918
    %3923 = vadd.xlane.f32.xlu0 %v3922
    %v3924 = vpop.xlane.xlu0 %3923
    %v3925 = vmul.f32 %v3921, 0.00390625
    %v3926 = vmul.f32 %v3924, 0.00390625
    %v3927 = vmul.f32 %v3913, %v3913
    %v3928 = vmul.f32 %v3914, %v3914
    %v3929 = vsub.f32 %v3925, %v3927
    %v3930 = vsub.f32 %v3926, %v3928
    %v3931 = vmax.f32 %v3929, 0.0
    %v3932 = vmax.f32 %v3930, 0.0
    %v3933 = vsub.f32 %v3899, %v3913
    %v3934 = vsub.f32 %v3901, %v3913
    %v3935 = vsub.f32 %v3903, %v3914
    %v3936 = vsub.f32 %v3905, %v3914
    %v3937 = vadd.f32 %v3931, 1e-05
    %v3938 = vadd.f32 %v3932, 1e-05
    %v3939 = vrsqrt.pop %v3937
    %v3940 = vrsqrt.pop %v3938
    %v3941 = vmul.f32 %v3933, %v3939
    %v3942 = vmul.f32 %v3934, %v3939
    %v3943 = vmul.f32 %v3935, %v3940
    %v3944 = vmul.f32 %v3936, %v3940
    %v3945 = vld [vmem:[%s11] sm:$0x3]
    %v3947 = vlaneseq
    %v3948 = vshrl.u32 %v3947, 7
    %v3949 = vsub.s32 0, %v3948
    %v3950 = vrot.slane %v3945, %v3949
    %v3951 = vlaneseq
    %v3952 = vshrl.u32 %v3951, 7
    %v3953 = vsub.s32 1, %v3952
    %v3954 = vrot.slane %v3945, %v3953
    %v3957 = vmul.f32 %v3941, %v3950
    %v3958 = vmul.f32 %v3942, %v3954
    %v3959 = vmul.f32 %v3943, %v3950
    %v3960 = vmul.f32 %v3944, %v3954
    %v3961 = vld [vmem:[%s12] sm:$0x3]
    %v3963 = vlaneseq
    %v3964 = vshrl.u32 %v3963, 7
    %v3965 = vsub.s32 0, %v3964
    %v3966 = vrot.slane %v3961, %v3965
    %v3967 = vlaneseq
    %v3968 = vshrl.u32 %v3967, 7
    %v3969 = vsub.s32 1, %v3968
    %v3970 = vrot.slane %v3961, %v3969
    %v3973 = vadd.f32 %v3957, %v3966
    %v3974 = vadd.f32 %v3958, %v3970
    %v3975 = vadd.f32 %v3959, %v3966
    %v3976 = vadd.f32 %v3960, %v3970
    %v3977 = vmax.f32 %v3973, 0.0
    %v3978 = vmax.f32 %v3974, 0.0
    %v3979 = vmax.f32 %v3975, 0.0
    %v3980 = vmax.f32 %v3976, 0.0
    %v3981 = vpack.c.bf16 %v3979, %v3977
    %v3982 = vpack.c.bf16 %v3980, %v3978
    %v3983 = vld [vmem:[#allocation14] sm:$0xf]
    %v3984 = vld [vmem:[#allocation14 + $0x4] sm:$0xf]
    %v3985 = vld [vmem:[#allocation14 + $0x8] sm:$0xf]
    %v3986 = vld [vmem:[#allocation14 + $0xc] sm:$0xf]
    %v3987 = vld [vmem:[#allocation14 + $0x10] sm:$0xf]
    %v3988 = vld [vmem:[#allocation14 + $0x14] sm:$0xf]
    %v3989 = vld [vmem:[#allocation14 + $0x18] sm:$0xf]
    %v3990 = vld [vmem:[#allocation14 + $0x1c] sm:$0xf]
    %v3991 = vld [vmem:[#allocation14 + $0x20] sm:$0xf]
    %v3992 = vld [vmem:[#allocation14 + $0x24] sm:$0xf]
    %v3993 = vld [vmem:[#allocation14 + $0x28] sm:$0xf]
    %v3994 = vld [vmem:[#allocation14 + $0x2c] sm:$0xf]
    %v3995 = vld [vmem:[#allocation14 + $0x30] sm:$0xf]
    %v3996 = vld [vmem:[#allocation14 + $0x34] sm:$0xf]
    %v3997 = vld [vmem:[#allocation14 + $0x38] sm:$0xf]
    %v3998 = vld [vmem:[#allocation14 + $0x3c] sm:$0xf]
    %v3999 = vld [vmem:[#allocation14 + $0x40] sm:$0xf]
    %v4000 = vld [vmem:[#allocation14 + $0x44] sm:$0xf]
    %v4001 = vld [vmem:[#allocation14 + $0x48] sm:$0xf]
    %v4002 = vld [vmem:[#allocation14 + $0x4c] sm:$0xf]
    %v4003 = vld [vmem:[#allocation14 + $0x50] sm:$0xf]
    %v4004 = vld [vmem:[#allocation14 + $0x54] sm:$0xf]
    %v4005 = vld [vmem:[#allocation14 + $0x58] sm:$0xf]
    %v4006 = vld [vmem:[#allocation14 + $0x5c] sm:$0xf]
    %v4007 = vld [vmem:[#allocation14 + $0x60] sm:$0xf]
    %v4008 = vld [vmem:[#allocation14 + $0x64] sm:$0xf]
    %v4009 = vld [vmem:[#allocation14 + $0x68] sm:$0xf]
    %v4010 = vld [vmem:[#allocation14 + $0x6c] sm:$0xf]
    %v4011 = vld [vmem:[#allocation14 + $0x70] sm:$0xf]
    %v4012 = vld [vmem:[#allocation14 + $0x74] sm:$0xf]
    %v4013 = vld [vmem:[#allocation14 + $0x78] sm:$0xf]
    %v4014 = vld [vmem:[#allocation14 + $0x7c] sm:$0xf]
    %v4015 = vld [vmem:[#allocation15] sm:$0x1]
    %v4017 = vlaneseq
    %v4018 = vshrl.u32 %v4017, 7
    %v4019 = vsub.s32 0, %v4018
    %v4020 = vrot.slane %v4015, %v4019
    %v4054 = vunpack.c.l.b16 %v3983
    %v4055 = vunpack.c.l.b16 %v3984
    %v4056 = vunpack.c.l.b16 %v3985
    %v4057 = vunpack.c.l.b16 %v3986
    %v4058 = vunpack.c.l.b16 %v3987
    %v4059 = vunpack.c.l.b16 %v3988
    %v4060 = vunpack.c.l.b16 %v3989
    %v4061 = vunpack.c.l.b16 %v3990
    %v4062 = vunpack.c.l.b16 %v3991
    %v4063 = vunpack.c.l.b16 %v3992
    %v4064 = vunpack.c.l.b16 %v3993
    %v4065 = vunpack.c.l.b16 %v3994
    %v4066 = vunpack.c.l.b16 %v3995
    %v4067 = vunpack.c.l.b16 %v3996
    %v4068 = vunpack.c.l.b16 %v3997
    %v4069 = vunpack.c.l.b16 %v3998
    %v4070 = vunpack.c.l.b16 %v3999
    %v4071 = vunpack.c.l.b16 %v4000
    %v4072 = vunpack.c.l.b16 %v4001
    %v4073 = vunpack.c.l.b16 %v4002
    %v4074 = vunpack.c.l.b16 %v4003
    %v4075 = vunpack.c.l.b16 %v4004
    %v4076 = vunpack.c.l.b16 %v4005
    %v4077 = vunpack.c.l.b16 %v4006
    %v4078 = vunpack.c.l.b16 %v4007
    %v4079 = vunpack.c.l.b16 %v4008
    %v4080 = vunpack.c.l.b16 %v4009
    %v4081 = vunpack.c.l.b16 %v4010
    %v4082 = vunpack.c.l.b16 %v4011
    %v4083 = vunpack.c.l.b16 %v4012
    %v4084 = vunpack.c.l.b16 %v4013
    %v4085 = vunpack.c.l.b16 %v4014
    %v4086 = vpack.c.b16 %v4055, %v4054
    %v4087 = vpack.c.b16 %v4057, %v4056
    %v4088 = vpack.c.b16 %v4059, %v4058
    %v4089 = vpack.c.b16 %v4061, %v4060
    %v4090 = vpack.c.b16 %v4063, %v4062
    %v4091 = vpack.c.b16 %v4065, %v4064
    %v4092 = vpack.c.b16 %v4067, %v4066
    %v4093 = vpack.c.b16 %v4069, %v4068
    %v4094 = vpack.c.b16 %v4071, %v4070
    %v4095 = vpack.c.b16 %v4073, %v4072
    %v4096 = vpack.c.b16 %v4075, %v4074
    %v4097 = vpack.c.b16 %v4077, %v4076
    %v4098 = vpack.c.b16 %v4079, %v4078
    %v4099 = vpack.c.b16 %v4081, %v4080
    %v4100 = vpack.c.b16 %v4083, %v4082
    %v4101 = vpack.c.b16 %v4085, %v4084
    %4118 = vmatprep.subr.bf16.mxu0 0
    %4119 = vmatpush1.bf16.msra.mxu0 %v4086
    %4120 = vmatprep.subr.bf16.mxu0 0
    %4121 = vmatpush1.bf16.msra.mxu0 %v4087
    %4122 = vmatprep.subr.bf16.mxu0 0
    %4123 = vmatpush1.bf16.msra.mxu0 %v4088
    %4124 = vmatprep.subr.bf16.mxu0 0
    %4125 = vmatpush1.bf16.msra.mxu0 %v4089
    %4126 = vmatprep.subr.bf16.mxu0 0
    %4127 = vmatpush1.bf16.msra.mxu0 %v4090
    %4128 = vmatprep.subr.bf16.mxu0 0
    %4129 = vmatpush1.bf16.msra.mxu0 %v4091
    %4130 = vmatprep.subr.bf16.mxu0 0
    %4131 = vmatpush1.bf16.msra.mxu0 %v4092
    %4132 = vmatprep.subr.bf16.mxu0 0
    %4133 = vmatpush1.bf16.msra.mxu0 %v4093
    %4134 = vmatprep.subr.bf16.mxu0 0
    %4135 = vmatpush1.bf16.msra.mxu0 %v4094
    %4136 = vmatprep.subr.bf16.mxu0 0
    %4137 = vmatpush1.bf16.msra.mxu0 %v4095
    %4138 = vmatprep.subr.bf16.mxu0 0
    %4139 = vmatpush1.bf16.msra.mxu0 %v4096
    %4140 = vmatprep.subr.bf16.mxu0 0
    %4141 = vmatpush1.bf16.msra.mxu0 %v4097
    %4142 = vmatprep.subr.bf16.mxu0 0
    %4143 = vmatpush1.bf16.msra.mxu0 %v4098
    %4144 = vmatprep.subr.bf16.mxu0 0
    %4145 = vmatpush1.bf16.msra.mxu0 %v4099
    %4146 = vmatprep.subr.bf16.mxu0 0
    %4147 = vmatpush1.bf16.msra.mxu0 %v4100
    %4148 = vmatprep.subr.bf16.mxu0 0
    %4149 = vmatpush1.bf16.msra.mxu0 %v4101
    %4150 = vmatprep.mubr.bf16.mxu0 %v3982
    %4151 = vmatmul.mubr.bf16.gmra.mrb[0].mxu0 %v3981
    %v4152 = vpop.f32.mrb[0].mxu0
    %v4153 = vadd.f32 %v4020, %v4152
    %v4154 = vpop.f32.mrb[0].mxu0
    %v4155 = vpop.f32.mrb[0].mxu0
    %v4156 = vadd.f32 %v4020, %v4155
    %v4157 = vpop.f32.mrb[0].mxu0
    %4158 = vdwg.mxu0
    %4159 = vadd.xlane.f32.xlu0 %v4153
    %v4160 = vpop.xlane.xlu0 %4159
    %4161 = vadd.xlane.f32.xlu0 %v4156
    %v4162 = vpop.xlane.xlu0 %4161
    %v4163 = vmul.f32 %v4160, 0.0078125
    %v4164 = vmul.f32 %v4162, 0.0078125
    %v4165 = vmul.f32 %v4153, %v4153
    %v4166 = vmul.f32 %v4156, %v4156
    %4167 = vadd.xlane.f32.xlu0 %v4165
    %v4168 = vpop.xlane.xlu0 %4167
    %4169 = vadd.xlane.f32.xlu0 %v4166
    %v4170 = vpop.xlane.xlu0 %4169
    %v4171 = vmul.f32 %v4168, 0.0078125
    %v4172 = vmul.f32 %v4170, 0.0078125
    %v4173 = vmul.f32 %v4163, %v4163
    %v4174 = vmul.f32 %v4164, %v4164
    %v4175 = vsub.f32 %v4171, %v4173
    %v4176 = vsub.f32 %v4172, %v4174
    %v4177 = vmax.f32 %v4175, 0.0
    %v4178 = vmax.f32 %v4176, 0.0
    %v4179 = vsub.f32 %v4153, %v4163
    %v4180 = vsub.f32 %v4156, %v4164
    %v4181 = vadd.f32 %v4177, 1e-05
    %v4182 = vadd.f32 %v4178, 1e-05
    %v4183 = vrsqrt.pop %v4181
    %v4184 = vrsqrt.pop %v4182
    %v4185 = vmul.f32 %v4179, %v4183
    %v4186 = vmul.f32 %v4180, %v4184
    %v4187 = vld [vmem:[%s15] sm:$0x1]
    %v4189 = vlaneseq
    %v4190 = vshrl.u32 %v4189, 7
    %v4191 = vsub.s32 0, %v4190
    %v4192 = vrot.slane %v4187, %v4191
    %v4194 = vmul.f32 %v4185, %v4192
    %v4195 = vmul.f32 %v4186, %v4192
    %v4196 = vld [vmem:[%s16] sm:$0x1]
    %v4198 = vlaneseq
    %v4199 = vshrl.u32 %v4198, 7
    %v4200 = vsub.s32 0, %v4199
    %v4201 = vrot.slane %v4196, %v4200
    %v4203 = vadd.f32 %v4194, %v4201
    %v4204 = vadd.f32 %v4195, %v4201
    %v4205 = vmax.f32 %v4203, 0.0
    %v4206 = vmax.f32 %v4204, 0.0
    %v4207 = vpack.c.bf16 %v4206, %v4205
    %v4208 = vunpack.c.l.bf16 %v4207
    %v4209 = vunpack.c.h.bf16 %v4207
    %v4210 = vld [vmem:[%s17] sm:$0x1]
    %v4212 = vlaneseq
    %v4213 = vshrl.u32 %v4212, 7
    %v4214 = vsub.s32 0, %v4213
    %v4215 = vrot.slane %v4210, %v4214
    %v4217 = vmul.f32 %v4208, %v4215
    %v4218 = vmul.f32 %v4209, %v4215
    %4219 = vadd.xlane.f32.xlu0 %v4217
    %v4220 = vpop.xlane.xlu0 %4219
    %4221 = vadd.xlane.f32.xlu0 %v4218
    %v4222 = vpop.xlane.xlu0 %4221
    %v4223 = vld [vmem:[#allocation2] sm:$0x1]
    %4225 = vset.pattern.permute.xlu0 0
    %4226 = vperm.xlu0 %4225, %v4223
    %v4227 = vpop.permute.xlu0 %4226
    %v4229 = vlaneseq
    %v4230 = vshrl.u32 %v4229, 7
    %v4231 = vsub.s32 0, %v4230
    %v4232 = vrot.slane %v4227, %v4231
    %v4233 = vadd.f32 %v4220, %v4232
    %v4234 = vadd.f32 %v4222, %v4232
    %v4237 = vlaneseq
    %v4238 = vand.u32 %v4237, 127
    %v4239 = vlaneseq
    %v4240 = vshrl.u32 %v4239, 7
    %v4241 = vsub.s32 %v4238, %v4240
    %v4242 = vrot.slane %v4233, %v4241
    %v4243 = vadd.s32 %v4238, 4294967288
    %v4244 = vlaneseq
    %v4245 = vshrl.u32 %v4244, 7
    %v4246 = vsub.s32 %v4243, %v4245
    %v4247 = vrot.slane %v4234, %v4246
    %vm4248 = vcmask 130112
    %v4249 = vsel %vm4248, %v4247, %v4242
    %vm4251 = vcmask 122880
    %4252 = vst.msk [vmem:[#allocation17] sm:$0x1] %vm4251, %v4249
    // Predicated region
    $region110: #{nd_forward.1} parent=1 // pred_check
      _
    $region111: #{nd_forward.1} parent=1 // pred_check_branch
      %4254 = sbr.rel (0) target = $region113
    $region112: #{nd_forward.1} parent=1 // pred_region
      %s4256 = ssub.s32 16, 16
      %4257 = vsyncadd [#allocation5], %s4256
      %s4259 = sshll.u32 [#allocation17], 4
      %s4260 = int_to_ptr.vmem [resolvable:$true] %s4259
      %4262 = dma.vmem_to_hbm [thread:$0]  %s4260, 16, %s19, [#allocation5]
    $region113: #{nd_forward.1} parent=1 // pred_fallthru
      _
    // Predicated region
    $region114: #{nd_forward.1} parent=1 // pred_check
      _
    $region115: #{nd_forward.1} parent=1 // pred_check_branch
      %4264 = sbr.rel (0) target = $region117
    $region116: #{nd_forward.1} parent=1 // pred_region
      %4265 = dma.done [#allocation5], 16
    $region117: #{nd_forward.1} parent=1 // pred_fallthru
      _
    %4266 = vsyncpa [#allocation4], 1
    %4267 = vsyncpa [#allocation7], 1
    %4268 = vsyncpa [#allocation10], 1
    %4269 = vsyncpa [#allocation13], 1
    %4270 = vsyncpa [#allocation16], 1
    %4271 = vsyncpa [#allocation5], 1

</llo_original>
